<compile_context>
chip_gen: v7x
topology: tpu7x:2x2x1
jax: 0.10.0
libtpu: 0.0.40
codegen_flags: <defaults>
</compile_context>

<pallas_src>
import functools

import jax
import jax.numpy as jnp
from jax.experimental import pallas as pl
from jax.experimental.pallas import tpu as pltpu

C = 256            # channels (fixed by the module)
K = 5              # conv kernel size
PAD = K // 2       # conv padding = 2
NEG_SLOPE = 0.2    # LeakyReLU slope
DEFAULT_TILE = 1024  # time rows per grid step (multiple of 8); v5e/v6e can use 2048.


def _round_up(a, m):
    return -(-a // m) * m


def _resblock_kernel(x_ref, xl_ref, xr_ref, w1_ref, b1_ref, w2_ref, b2_ref,
                     out_ref, xpad_ref, hpad_ref, xcol_ref, hcol_ref,
                     *, seq_len, tile):
    """One (batch, time-tile) per grid step.

    x_ref   : (1, tile, C) f32   current time tile (last tile may be a clipped block)
    xl_ref  : (1, 8, C)    f32   8 rows ending at the tile start (clamped at j=0)
    xr_ref  : (1, 8, C)    f32   8 rows starting at the tile end (clamped at the right edge)
    w1_ref  : (K*C, C)     bf16  conv1 weight, im2col layout (row = k*C + cin)
    b1_ref  : (1, C)       f32
    w2_ref  : (K*C, C)     bf16
    b2_ref  : (1, C)       f32
    out_ref : (1, tile, C) f32
    xpad_ref: VMEM (tile+16, C)  bf16  staged x: rows [0,8)=left halo, [8,8+tile)=body,
                                       [8+tile,16+tile)=right halo  (all stores aligned)
    hpad_ref: VMEM (tile+8, C)   bf16  conv1 output (tile + halo rows), masked for conv2 padding
    xcol_ref: VMEM (tile+8, K*C) bf16  im2col of xpad for conv1
    hcol_ref: VMEM (tile,   K*C) bf16  im2col of hpad for conv2
    """
    j = pl.program_id(1)
    nt = pl.num_programs(1)
    m1 = tile + 8                      # conv1 rows we (re)compute per tile (halo rounded to 8)

    # ---- stage x (+ full 8-row halos) into an aligned bf16 scratch, zeroing every row
    #      whose global position is outside [0, seq_len) (Conv1d zero padding; also covers
    #      the garbage part of clipped / clamped boundary blocks).
    xpad_ref[0:8, :] = jnp.where(j > 0, xl_ref[0], 0.0).astype(jnp.bfloat16)

    @pl.when(j == nt - 1)              # only the last tile can have body rows >= seq_len
    def _():
        pos = j * tile + jax.lax.broadcasted_iota(jnp.int32, (tile, 1), 0)
        xpad_ref[8:8 + tile, :] = jnp.where(pos < seq_len, x_ref[0], 0.0).astype(jnp.bfloat16)

    @pl.when(j < nt - 1)
    def _():                           # interior tiles: plain full-width aligned store
        xpad_ref[8:8 + tile, :] = x_ref[0].astype(jnp.bfloat16)

    rpos = (j + 1) * tile + jax.lax.broadcasted_iota(jnp.int32, (8, 1), 0)
    xpad_ref[8 + tile:, :] = jnp.where(rpos < seq_len, xr_ref[0], 0.0).astype(jnp.bfloat16)

    # ---- conv1 as ONE MXU matmul (im2col: 5 lane-aligned column blocks, aligned stores;
    #      the sublane-shifted accesses are loads, which have slack) ----------------------
    for k in range(K):                 # static unroll
        xcol_ref[:, k * C:(k + 1) * C] = xpad_ref[2 + k:2 + k + m1, :]
    a1 = jnp.dot(xcol_ref[...], w1_ref[...],
                 preferred_element_type=jnp.float32) + b1_ref[...]

    # ---- LeakyReLU(0.2), then zero rows outside [0, seq_len) (conv2's zero padding of h);
    #      fused with the single bf16 store of the intermediate -----------------------------
    h = jnp.where(a1 > 0, a1, NEG_SLOPE * a1)
    hpos = j * tile - 4 + jax.lax.broadcasted_iota(jnp.int32, (m1, 1), 0)
    hvalid = (hpos >= 0) & (hpos < seq_len)
    hpad_ref[...] = jnp.where(hvalid, h, 0.0).astype(jnp.bfloat16)

    # ---- conv2 as ONE MXU matmul -----------------------------------------------------------
    for k in range(K):
        hcol_ref[:, k * C:(k + 1) * C] = hpad_ref[2 + k:2 + k + tile, :]
    acc2 = jnp.dot(hcol_ref[...], w2_ref[...],
                   preferred_element_type=jnp.float32) + b2_ref[...]

    # ---- residual add (exact f32 x) ---------------------------------------------------------
    out_ref[0] = (x_ref[0] + acc2).astype(out_ref.dtype)


def residual_sn_forward_tlc(x_tlc, w1, b1, w2, b2, *, tile=None):
    """Preferred entry point: x_tlc is time-major (B, T, 256); no transposes needed.

    Weights are PyTorch Conv1d layout (Cout, Cin, K).
    """
    B, T, cin = x_tlc.shape
    assert cin == C and w1.shape == (C, C, K) and w2.shape == (C, C, K)

    # Keep the time axis a multiple of 8 (needed for the 8-row halo blocks).  For the
    # usual case T % 8 == 0 this is a no-op -- no wrapper-side full-tensor pad/slice.
    t8 = _round_up(T, 8)
    if t8 != T:
        x_tlc = jnp.pad(x_tlc, ((0, 0), (0, t8 - T), (0, 0)))

    if tile is None:
        tile = DEFAULT_TILE
    tile = min(_round_up(tile, 8), t8)
    assert tile % 8 == 0 and tile >= 8
    nt = -(-t8 // tile)               # ragged last tile handled via clipped blocks + masks
    n_hblk = t8 // 8
    hstep = tile // 8

    # im2col weights: (Cout, Cin, K) -> (K, Cin, Cout) -> (K*Cin, Cout); bf16 MXU operands,
    # accumulation stays f32 inside the kernel.
    w1_col = jnp.transpose(w1, (2, 1, 0)).reshape(K * C, C).astype(jnp.bfloat16)
    w2_col = jnp.transpose(w2, (2, 1, 0)).reshape(K * C, C).astype(jnp.bfloat16)
    b1r = b1.reshape(1, C).astype(jnp.float32)
    b2r = b2.reshape(1, C).astype(jnp.float32)

    kernel = functools.partial(_resblock_kernel, seq_len=T, tile=tile)

    out = pl.pallas_call(
        kernel,
        out_shape=jax.ShapeDtypeStruct((B, t8, C), x_tlc.dtype),
        grid_spec=pltpu.PrefetchScalarGridSpec(
            num_scalar_prefetch=0,
            grid=(B, nt),
            in_specs=[
                # current tile
                pl.BlockSpec((1, tile, C), lambda b, j: (b, j, 0)),
                # 8 rows just before the tile (clamped at the left edge, masked in-kernel)
                pl.BlockSpec((1, 8, C),
                             lambda b, j: (b, jnp.maximum(j * hstep - 1, 0), 0)),
                # 8 rows just after the tile (clamped at the right edge, masked in-kernel)
                pl.BlockSpec((1, 8, C),
                             lambda b, j: (b, jnp.minimum((j + 1) * hstep, n_hblk - 1), 0)),
                # grid-invariant weights / biases (constant index_map -> fetched once;
                # pipeline_mode=pl.Buffered(1) would additionally drop their 2nd buffer)
                pl.BlockSpec((K * C, C), lambda b, j: (0, 0)),
                pl.BlockSpec((1, C), lambda b, j: (0, 0)),
                pl.BlockSpec((K * C, C), lambda b, j: (0, 0)),
                pl.BlockSpec((1, C), lambda b, j: (0, 0)),
            ],
            out_specs=pl.BlockSpec((1, tile, C), lambda b, j: (b, j, 0)),
            scratch_shapes=[
                pltpu.VMEM((tile + 16, C), jnp.bfloat16),     # xpad (aligned staging)
                pltpu.VMEM((tile + 8, C), jnp.bfloat16),      # hpad (conv1 output + halo)
                pltpu.VMEM((tile + 8, K * C), jnp.bfloat16),  # xcol (im2col for conv1)
                pltpu.VMEM((tile, K * C), jnp.bfloat16),      # hcol (im2col for conv2)
            ],
        ),
        compiler_params=pltpu.CompilerParams(
            dimension_semantics=("parallel", "parallel"),
            vmem_limit_bytes=48 * 1024 * 1024),
    )(x_tlc, x_tlc, x_tlc, w1_col, b1r, w2_col, b2r)

    return out[:, :T, :] if t8 != T else out


def residual_sn_forward(x_ncl, w1, b1, w2, b2, *, tile=None):
    """PyTorch-layout entry point: x_ncl is (B, 256, T)."""
    # TODO(synk): the NCL<->TLC transposes are full-tensor HBM passes done by XLA;
    # callers that can keep activations time-major should use residual_sn_forward_tlc.
    x_tlc = jnp.transpose(x_ncl, (0, 2, 1))                     # (B, T, C)
    out_tlc = residual_sn_forward_tlc(x_tlc, w1, b1, w2, b2, tile=tile)
    return jnp.transpose(out_tlc, (0, 2, 1))                    # back to (B, C, T)


def spectral_normalize(w, key, n_power_iterations=1):
    """Mimic nn.utils.spectral_norm for a Conv1d weight (Cout, Cin, K):
    one power iteration from a deterministic random u, sigma = u^T W v.
    (PyTorch keeps a persistent u buffer; this is host-side parameter prep, not kernel.)"""
    cout = w.shape[0]
    w_mat = w.reshape(cout, -1)
    u = jax.random.normal(key, (cout,), dtype=w.dtype)
    u = u / (jnp.linalg.norm(u) + 1e-12)
    v = None
    for _ in range(n_power_iterations):
        v = w_mat.T @ u
        v = v / (jnp.linalg.norm(v) + 1e-12)
        u = w_mat @ v
        u = u / (jnp.linalg.norm(u) + 1e-12)
    sigma = u @ (w_mat @ v)
    return w / sigma


def _reference_forward(x, w1, b1, w2, b2):
    """Pure-JAX f32 reference (matches PyTorch Conv1d semantics) for validation."""
    dn = ("NCH", "OIH", "NCH")
    h = jax.lax.conv_general_dilated(
        x, w1, window_strides=(1,), padding=((PAD, PAD),),
        dimension_numbers=dn) + b1[None, :, None]
    h = jnp.where(h > 0, h, NEG_SLOPE * h)
    y = jax.lax.conv_general_dilated(
        h, w2, window_strides=(1,), padding=((PAD, PAD),),
        dimension_numbers=dn) + b2[None, :, None]
    return x + y


if __name__ == "__main__":
    key = jax.random.PRNGKey(0)
    k_x, k_w1, k_b1, k_w2, k_b2, k_u1, k_u2 = jax.random.split(key, 7)

    B, T = 2, 20
    x = jax.random.normal(k_x, (B, C, T), dtype=jnp.float32)

    # Deterministic parameter init (Conv1d layout: (Cout, Cin, K)), then spectral-normalize.
    w1_raw = 0.05 * jax.random.normal(k_w1, (C, C, K), dtype=jnp.float32)
    b1 = 0.01 * jax.random.normal(k_b1, (C,), dtype=jnp.float32)
    w2_raw = 0.05 * jax.random.normal(k_w2, (C, C, K), dtype=jnp.float32)
    b2 = 0.01 * jax.random.normal(k_b2, (C,), dtype=jnp.float32)

    w1 = spectral_normalize(w1_raw, k_u1)
    w2 = spectral_normalize(w2_raw, k_u2)

    ref = _reference_forward(x, w1, b1, w2, b2)

    # Default tiling: single (clipped) time tile for this small T.
    out = jax.block_until_ready(residual_sn_forward(x, w1, b1, w2, b2))
    assert out.shape == (B, C, T)
    err = float(jnp.max(jnp.abs(out - ref)))
    assert jnp.allclose(out, ref, atol=3e-2, rtol=3e-2), err

    # Tiny 8-row tiles: exercises the multi-tile halo exchange and sequence-edge masks
    # (T=20 -> 3 tiles over the 8-padded axis, last tile partially masked).
    out_t8 = jax.block_until_ready(residual_sn_forward(x, w1, b1, w2, b2, tile=8))
    err2 = float(jnp.max(jnp.abs(out_t8 - ref)))
    assert jnp.allclose(out_t8, ref, atol=3e-2, rtol=3e-2), err2

    # 16-row tiles: exercises the ragged last tile (clipped input/output blocks) path.
    out_t16 = jax.block_until_ready(residual_sn_forward(x, w1, b1, w2, b2, tile=16))
    err3 = float(jnp.max(jnp.abs(out_t16 - ref)))
    assert jnp.allclose(out_t16, ref, atol=3e-2, rtol=3e-2), err3

    print("KERNEL_OK")
</pallas_src>

<mosaic_0001>
module attributes {stable_mosaic.version = 11 : i64} {
  func.func @_resblock_kernel(%arg0: i32, %arg1: i32, %arg2: memref<1x24x256xf32, #tpu.memory_space<vmem>>, %arg3: memref<1x8x256xf32, #tpu.memory_space<vmem>>, %arg4: memref<1x8x256xf32, #tpu.memory_space<vmem>>, %arg5: memref<1280x256xbf16, #tpu.memory_space<vmem>>, %arg6: memref<1x256xf32, #tpu.memory_space<vmem>>, %arg7: memref<1280x256xbf16, #tpu.memory_space<vmem>>, %arg8: memref<1x256xf32, #tpu.memory_space<vmem>>, %arg9: memref<1x24x256xf32, #tpu.memory_space<vmem>>, %arg10: memref<40x256xbf16, #tpu.memory_space<vmem>>, %arg11: memref<32x256xbf16, #tpu.memory_space<vmem>>, %arg12: memref<32x1280xbf16, #tpu.memory_space<vmem>>, %arg13: memref<24x1280xbf16, #tpu.memory_space<vmem>>) attributes {dimension_semantics = [#tpu.dimension_semantics<parallel>, #tpu.dimension_semantics<parallel>], iteration_bounds = array<i64: 2, 1>, scalar_prefetch = 0 : i64, scratch_operands = 4 : i64, tpu.core_type = #tpu.core_type<tc>, window_params = [{transform_indices = @transform_0, window_bounds = array<i64: 1, 24, 256>}, {transform_indices = @transform_1, window_bounds = array<i64: 1, 8, 256>}, {transform_indices = @transform_2, window_bounds = array<i64: 1, 8, 256>}, {pipeline_mode = #tpu.pipeline_mode<synchronous>, transform_indices = @transform_3, window_bounds = array<i64: 1280, 256>}, {pipeline_mode = #tpu.pipeline_mode<synchronous>, transform_indices = @transform_4, window_bounds = array<i64: 1, 256>}, {pipeline_mode = #tpu.pipeline_mode<synchronous>, transform_indices = @transform_5, window_bounds = array<i64: 1280, 256>}, {pipeline_mode = #tpu.pipeline_mode<synchronous>, transform_indices = @transform_6, window_bounds = array<i64: 1, 256>}, {transform_indices = @transform_7, window_bounds = array<i64: 1, 24, 256>}]} {
    %c0_i32 = arith.constant 0 : i32
    %0 = arith.cmpi sgt, %arg1, %c0_i32 : i32
    %c0 = arith.constant 0 : index
    %c0_0 = arith.constant 0 : index
    %c0_1 = arith.constant 0 : index
    %1 = vector.load %arg3[%c0, %c0_0, %c0_1] : memref<1x8x256xf32, #tpu.memory_space<vmem>>, vector<1x8x256xf32>
    %2 = vector.shape_cast %1 : vector<1x8x256xf32> to vector<8x256xf32>
    %cst = arith.constant 0.000000e+00 : f32
    %3 = vector.broadcast %cst : f32 to vector<8x256xf32>
    %4 = arith.select %0, %2, %3 : vector<8x256xf32>
    %5 = arith.truncf %4 : vector<8x256xf32> to vector<8x256xbf16>
    %c0_2 = arith.constant 0 : index
    %c0_3 = arith.constant 0 : index
    %6 = vector.load %arg10[%c0_2, %c0_3] : memref<40x256xbf16, #tpu.memory_space<vmem>>, vector<8x256xbf16>
    tpu.vector_store %arg10[%c0_2, %c0_3], %5 {strides = array<i32>} : memref<40x256xbf16, #tpu.memory_space<vmem>>, vector<8x256xbf16>,
    %c0_i32_4 = arith.constant 0 : i32
    %7 = arith.cmpi eq, %arg1, %c0_i32_4 : i32
    %8 = arith.extui %7 : i1 to i32
    %c0_i32_5 = arith.constant 0 : i32
    %9 = arith.cmpi ne, %8, %c0_i32_5 : i32
    scf.if %9 {
      %c24_i32_72 = arith.constant 24 : i32
      %87 = arith.muli %arg1, %c24_i32_72 : i32
      %88 = tpu.iota {dimensions = array<i32: 0>} : vector<24x1xi32>
      %89 = vector.broadcast %87 : i32 to vector<24x1xi32>
      %90 = arith.addi %89, %88 : vector<24x1xi32>
      %c20_i32_73 = arith.constant 20 : i32
      %91 = vector.broadcast %c20_i32_73 : i32 to vector<24x1xi32>
      %92 = arith.cmpi slt, %90, %91 : vector<24x1xi32>
      %c0_74 = arith.constant 0 : index
      %c0_75 = arith.constant 0 : index
      %c0_76 = arith.constant 0 : index
      %93 = vector.load %arg2[%c0_74, %c0_75, %c0_76] : memref<1x24x256xf32, #tpu.memory_space<vmem>>, vector<1x24x256xf32>
      %94 = vector.shape_cast %93 : vector<1x24x256xf32> to vector<24x256xf32>
      %cst_77 = arith.constant 0.000000e+00 : f32
      %95 = vector.shape_cast %92 : vector<24x1xi1> to vector<24x1xi1>
      %96 = vector.broadcast %95 : vector<24x1xi1> to vector<24x256xi1>
      %97 = vector.broadcast %cst_77 : f32 to vector<24x256xf32>
      %98 = arith.select %96, %94, %97 : vector<24x256xi1>, vector<24x256xf32>
      %99 = arith.truncf %98 : vector<24x256xf32> to vector<24x256xbf16>
      %c8 = arith.constant 8 : index
      %c0_78 = arith.constant 0 : index
      %100 = vector.load %arg10[%c8, %c0_78] : memref<40x256xbf16, #tpu.memory_space<vmem>>, vector<24x256xbf16>
      tpu.vector_store %arg10[%c8, %c0_78], %99 {strides = array<i32>} : memref<40x256xbf16, #tpu.memory_space<vmem>>, vector<24x256xbf16>,
    } else {
    }
    %c0_i32_6 = arith.constant 0 : i32
    %10 = arith.cmpi slt, %arg1, %c0_i32_6 : i32
    %11 = arith.extui %10 : i1 to i32
    %c0_i32_7 = arith.constant 0 : i32
    %12 = arith.cmpi ne, %11, %c0_i32_7 : i32
    scf.if %12 {
      %c0_72 = arith.constant 0 : index
      %c0_73 = arith.constant 0 : index
      %c0_74 = arith.constant 0 : index
      %87 = vector.load %arg2[%c0_72, %c0_73, %c0_74] : memref<1x24x256xf32, #tpu.memory_space<vmem>>, vector<1x24x256xf32>
      %88 = vector.shape_cast %87 : vector<1x24x256xf32> to vector<24x256xf32>
      %89 = arith.truncf %88 : vector<24x256xf32> to vector<24x256xbf16>
      %c8 = arith.constant 8 : index
      %c0_75 = arith.constant 0 : index
      %90 = vector.load %arg10[%c8, %c0_75] : memref<40x256xbf16, #tpu.memory_space<vmem>>, vector<24x256xbf16>
      tpu.vector_store %arg10[%c8, %c0_75], %89 {strides = array<i32>} : memref<40x256xbf16, #tpu.memory_space<vmem>>, vector<24x256xbf16>,
    } else {
    }
    %c1_i32 = arith.constant 1 : i32
    %13 = arith.addi %arg1, %c1_i32 : i32
    %c24_i32 = arith.constant 24 : i32
    %14 = arith.muli %13, %c24_i32 : i32
    %15 = tpu.iota {dimensions = array<i32: 0>} : vector<8x1xi32>
    %16 = vector.broadcast %14 : i32 to vector<8x1xi32>
    %17 = arith.addi %16, %15 : vector<8x1xi32>
    %c20_i32 = arith.constant 20 : i32
    %18 = vector.broadcast %c20_i32 : i32 to vector<8x1xi32>
    %19 = arith.cmpi slt, %17, %18 : vector<8x1xi32>
    %c0_8 = arith.constant 0 : index
    %c0_9 = arith.constant 0 : index
    %c0_10 = arith.constant 0 : index
    %20 = vector.load %arg4[%c0_8, %c0_9, %c0_10] : memref<1x8x256xf32, #tpu.memory_space<vmem>>, vector<1x8x256xf32>
    %21 = vector.shape_cast %20 : vector<1x8x256xf32> to vector<8x256xf32>
    %cst_11 = arith.constant 0.000000e+00 : f32
    %22 = vector.shape_cast %19 : vector<8x1xi1> to vector<8x1xi1>
    %23 = vector.broadcast %22 : vector<8x1xi1> to vector<8x256xi1>
    %24 = vector.broadcast %cst_11 : f32 to vector<8x256xf32>
    %25 = arith.select %23, %21, %24 : vector<8x256xi1>, vector<8x256xf32>
    %26 = arith.truncf %25 : vector<8x256xf32> to vector<8x256xbf16>
    %c32 = arith.constant 32 : index
    %c0_12 = arith.constant 0 : index
    %27 = vector.load %arg10[%c32, %c0_12] : memref<40x256xbf16, #tpu.memory_space<vmem>>, vector<8x256xbf16>
    tpu.vector_store %arg10[%c32, %c0_12], %26 {strides = array<i32>} : memref<40x256xbf16, #tpu.memory_space<vmem>>, vector<8x256xbf16>,
    %c2 = arith.constant 2 : index
    %c0_13 = arith.constant 0 : index
    %28 = vector.load %arg10[%c2, %c0_13] : memref<40x256xbf16, #tpu.memory_space<vmem>>, vector<32x256xbf16>
    %c0_14 = arith.constant 0 : index
    %c0_15 = arith.constant 0 : index
    %29 = vector.load %arg12[%c0_14, %c0_15] : memref<32x1280xbf16, #tpu.memory_space<vmem>>, vector<32x256xbf16>
    tpu.vector_store %arg12[%c0_14, %c0_15], %28 {strides = array<i32>} : memref<32x1280xbf16, #tpu.memory_space<vmem>>, vector<32x256xbf16>,
    %c3 = arith.constant 3 : index
    %c0_16 = arith.constant 0 : index
    %30 = vector.load %arg10[%c3, %c0_16] : memref<40x256xbf16, #tpu.memory_space<vmem>>, vector<32x256xbf16>
    %c0_17 = arith.constant 0 : index
    %c256 = arith.constant 256 : index
    %31 = vector.load %arg12[%c0_17, %c256] : memref<32x1280xbf16, #tpu.memory_space<vmem>>, vector<32x256xbf16>
    tpu.vector_store %arg12[%c0_17, %c256], %30 {strides = array<i32>} : memref<32x1280xbf16, #tpu.memory_space<vmem>>, vector<32x256xbf16>,
    %c4 = arith.constant 4 : index
    %c0_18 = arith.constant 0 : index
    %32 = vector.load %arg10[%c4, %c0_18] : memref<40x256xbf16, #tpu.memory_space<vmem>>, vector<32x256xbf16>
    %c0_19 = arith.constant 0 : index
    %c512 = arith.constant 512 : index
    %33 = vector.load %arg12[%c0_19, %c512] : memref<32x1280xbf16, #tpu.memory_space<vmem>>, vector<32x256xbf16>
    tpu.vector_store %arg12[%c0_19, %c512], %32 {strides = array<i32>} : memref<32x1280xbf16, #tpu.memory_space<vmem>>, vector<32x256xbf16>,
    %c5 = arith.constant 5 : index
    %c0_20 = arith.constant 0 : index
    %34 = vector.load %arg10[%c5, %c0_20] : memref<40x256xbf16, #tpu.memory_space<vmem>>, vector<32x256xbf16>
    %c0_21 = arith.constant 0 : index
    %c768 = arith.constant 768 : index
    %35 = vector.load %arg12[%c0_21, %c768] : memref<32x1280xbf16, #tpu.memory_space<vmem>>, vector<32x256xbf16>
    tpu.vector_store %arg12[%c0_21, %c768], %34 {strides = array<i32>} : memref<32x1280xbf16, #tpu.memory_space<vmem>>, vector<32x256xbf16>,
    %c6 = arith.constant 6 : index
    %c0_22 = arith.constant 0 : index
    %36 = vector.load %arg10[%c6, %c0_22] : memref<40x256xbf16, #tpu.memory_space<vmem>>, vector<32x256xbf16>
    %c0_23 = arith.constant 0 : index
    %c1024 = arith.constant 1024 : index
    %37 = vector.load %arg12[%c0_23, %c1024] : memref<32x1280xbf16, #tpu.memory_space<vmem>>, vector<32x256xbf16>
    tpu.vector_store %arg12[%c0_23, %c1024], %36 {strides = array<i32>} : memref<32x1280xbf16, #tpu.memory_space<vmem>>, vector<32x256xbf16>,
    %c0_24 = arith.constant 0 : index
    %c0_25 = arith.constant 0 : index
    %38 = vector.load %arg12[%c0_24, %c0_25] : memref<32x1280xbf16, #tpu.memory_space<vmem>>, vector<32x1280xbf16>
    %c0_26 = arith.constant 0 : index
    %c0_27 = arith.constant 0 : index
    %39 = vector.load %arg5[%c0_26, %c0_27] : memref<1280x256xbf16, #tpu.memory_space<vmem>>, vector<1280x256xbf16>
    %cst_28 = arith.constant dense<0.000000e+00> : vector<32x256xf32>
    %40 = tpu.matmul %38, %39, %cst_28 {dimension_numbers = #tpu.dot_dimension_numbers<[1], [0], [0], [1], [0, 0, 1, 1], [], []>} : vector<32x1280xbf16>, vector<1280x256xbf16>, vector<32x256xf32> -> vector<32x256xf32>
    %c0_29 = arith.constant 0 : index
    %c0_30 = arith.constant 0 : index
    %41 = vector.load %arg6[%c0_29, %c0_30] : memref<1x256xf32, #tpu.memory_space<vmem>>, vector<1x256xf32>
    %42 = vector.broadcast %41 : vector<1x256xf32> to vector<32x256xf32>
    %43 = arith.addf %40, %42 : vector<32x256xf32>
    %cst_31 = arith.constant 0.000000e+00 : f32
    %44 = vector.broadcast %cst_31 : f32 to vector<32x256xf32>
    %45 = arith.cmpf ogt, %43, %44 : vector<32x256xf32>
    %cst_32 = arith.constant 2.000000e-01 : f32
    %46 = vector.broadcast %cst_32 : f32 to vector<32x256xf32>
    %47 = arith.mulf %46, %43 : vector<32x256xf32>
    %48 = arith.select %45, %43, %47 : vector<32x256xi1>, vector<32x256xf32>
    %c24_i32_33 = arith.constant 24 : i32
    %49 = arith.muli %arg1, %c24_i32_33 : i32
    %c4_i32 = arith.constant 4 : i32
    %50 = arith.subi %49, %c4_i32 : i32
    %51 = tpu.iota {dimensions = array<i32: 0>} : vector<32x1xi32>
    %52 = vector.broadcast %50 : i32 to vector<32x1xi32>
    %53 = arith.addi %52, %51 : vector<32x1xi32>
    %c0_i32_34 = arith.constant 0 : i32
    %54 = vector.broadcast %c0_i32_34 : i32 to vector<32x1xi32>
    %55 = arith.cmpi sge, %53, %54 : vector<32x1xi32>
    %c20_i32_35 = arith.constant 20 : i32
    %56 = vector.broadcast %c20_i32_35 : i32 to vector<32x1xi32>
    %57 = arith.cmpi slt, %53, %56 : vector<32x1xi32>
    %58 = arith.andi %55, %57 : vector<32x1xi1>
    %cst_36 = arith.constant 0.000000e+00 : f32
    %59 = vector.shape_cast %58 : vector<32x1xi1> to vector<32x1xi1>
    %60 = vector.broadcast %59 : vector<32x1xi1> to vector<32x256xi1>
    %61 = vector.broadcast %cst_36 : f32 to vector<32x256xf32>
    %62 = arith.select %60, %48, %61 : vector<32x256xi1>, vector<32x256xf32>
    %63 = arith.truncf %62 : vector<32x256xf32> to vector<32x256xbf16>
    %c0_37 = arith.constant 0 : index
    %c0_38 = arith.constant 0 : index
    %64 = vector.load %arg11[%c0_37, %c0_38] : memref<32x256xbf16, #tpu.memory_space<vmem>>, vector<32x256xbf16>
    tpu.vector_store %arg11[%c0_37, %c0_38], %63 {strides = array<i32>} : memref<32x256xbf16, #tpu.memory_space<vmem>>, vector<32x256xbf16>,
    %c2_39 = arith.constant 2 : index
    %c0_40 = arith.constant 0 : index
    %65 = vector.load %arg11[%c2_39, %c0_40] : memref<32x256xbf16, #tpu.memory_space<vmem>>, vector<24x256xbf16>
    %c0_41 = arith.constant 0 : index
    %c0_42 = arith.constant 0 : index
    %66 = vector.load %arg13[%c0_41, %c0_42] : memref<24x1280xbf16, #tpu.memory_space<vmem>>, vector<24x256xbf16>
    tpu.vector_store %arg13[%c0_41, %c0_42], %65 {strides = array<i32>} : memref<24x1280xbf16, #tpu.memory_space<vmem>>, vector<24x256xbf16>,
    %c3_43 = arith.constant 3 : index
    %c0_44 = arith.constant 0 : index
    %67 = vector.load %arg11[%c3_43, %c0_44] : memref<32x256xbf16, #tpu.memory_space<vmem>>, vector<24x256xbf16>
    %c0_45 = arith.constant 0 : index
    %c256_46 = arith.constant 256 : index
    %68 = vector.load %arg13[%c0_45, %c256_46] : memref<24x1280xbf16, #tpu.memory_space<vmem>>, vector<24x256xbf16>
    tpu.vector_store %arg13[%c0_45, %c256_46], %67 {strides = array<i32>} : memref<24x1280xbf16, #tpu.memory_space<vmem>>, vector<24x256xbf16>,
    %c4_47 = arith.constant 4 : index
    %c0_48 = arith.constant 0 : index
    %69 = vector.load %arg11[%c4_47, %c0_48] : memref<32x256xbf16, #tpu.memory_space<vmem>>, vector<24x256xbf16>
    %c0_49 = arith.constant 0 : index
    %c512_50 = arith.constant 512 : index
    %70 = vector.load %arg13[%c0_49, %c512_50] : memref<24x1280xbf16, #tpu.memory_space<vmem>>, vector<24x256xbf16>
    tpu.vector_store %arg13[%c0_49, %c512_50], %69 {strides = array<i32>} : memref<24x1280xbf16, #tpu.memory_space<vmem>>, vector<24x256xbf16>,
    %c5_51 = arith.constant 5 : index
    %c0_52 = arith.constant 0 : index
    %71 = vector.load %arg11[%c5_51, %c0_52] : memref<32x256xbf16, #tpu.memory_space<vmem>>, vector<24x256xbf16>
    %c0_53 = arith.constant 0 : index
    %c768_54 = arith.constant 768 : index
    %72 = vector.load %arg13[%c0_53, %c768_54] : memref<24x1280xbf16, #tpu.memory_space<vmem>>, vector<24x256xbf16>
    tpu.vector_store %arg13[%c0_53, %c768_54], %71 {strides = array<i32>} : memref<24x1280xbf16, #tpu.memory_space<vmem>>, vector<24x256xbf16>,
    %c6_55 = arith.constant 6 : index
    %c0_56 = arith.constant 0 : index
    %73 = vector.load %arg11[%c6_55, %c0_56] : memref<32x256xbf16, #tpu.memory_space<vmem>>, vector<24x256xbf16>
    %c0_57 = arith.constant 0 : index
    %c1024_58 = arith.constant 1024 : index
    %74 = vector.load %arg13[%c0_57, %c1024_58] : memref<24x1280xbf16, #tpu.memory_space<vmem>>, vector<24x256xbf16>
    tpu.vector_store %arg13[%c0_57, %c1024_58], %73 {strides = array<i32>} : memref<24x1280xbf16, #tpu.memory_space<vmem>>, vector<24x256xbf16>,
    %c0_59 = arith.constant 0 : index
    %c0_60 = arith.constant 0 : index
    %75 = vector.load %arg13[%c0_59, %c0_60] : memref<24x1280xbf16, #tpu.memory_space<vmem>>, vector<24x1280xbf16>
    %c0_61 = arith.constant 0 : index
    %c0_62 = arith.constant 0 : index
    %76 = vector.load %arg7[%c0_61, %c0_62] : memref<1280x256xbf16, #tpu.memory_space<vmem>>, vector<1280x256xbf16>
    %cst_63 = arith.constant dense<0.000000e+00> : vector<24x256xf32>
    %77 = tpu.matmul %75, %76, %cst_63 {dimension_numbers = #tpu.dot_dimension_numbers<[1], [0], [0], [1], [0, 0, 1, 1], [], []>} : vector<24x1280xbf16>, vector<1280x256xbf16>, vector<24x256xf32> -> vector<24x256xf32>
    %c0_64 = arith.constant 0 : index
    %c0_65 = arith.constant 0 : index
    %78 = vector.load %arg8[%c0_64, %c0_65] : memref<1x256xf32, #tpu.memory_space<vmem>>, vector<1x256xf32>
    %79 = vector.broadcast %78 : vector<1x256xf32> to vector<24x256xf32>
    %80 = arith.addf %77, %79 : vector<24x256xf32>
    %c0_66 = arith.constant 0 : index
    %c0_67 = arith.constant 0 : index
    %c0_68 = arith.constant 0 : index
    %81 = vector.load %arg2[%c0_66, %c0_67, %c0_68] : memref<1x24x256xf32, #tpu.memory_space<vmem>>, vector<1x24x256xf32>
    %82 = vector.shape_cast %81 : vector<1x24x256xf32> to vector<24x256xf32>
    %83 = arith.addf %82, %80 : vector<24x256xf32>
    %c0_69 = arith.constant 0 : index
    %c0_70 = arith.constant 0 : index
    %c0_71 = arith.constant 0 : index
    %84 = vector.load %arg9[%c0_69, %c0_70, %c0_71] : memref<1x24x256xf32, #tpu.memory_space<vmem>>, vector<1x24x256xf32>
    %85 = vector.shape_cast %84 : vector<1x24x256xf32> to vector<24x256xf32>
    %86 = vector.shape_cast %83 : vector<24x256xf32> to vector<1x24x256xf32>
    tpu.vector_store %arg9[%c0_69, %c0_70, %c0_71], %86 {strides = array<i32>} : memref<1x24x256xf32, #tpu.memory_space<vmem>>, vector<1x24x256xf32>,
    return
  }
  func.func @transform_0(%arg0: i32, %arg1: i32) -> (i32, i32, i32) {
    %c0_i32 = arith.constant 0 : i32
    %c0_i32_0 = arith.constant 0 : i32
    return %arg0, %arg1, %c0_i32 : i32, i32, i32
  }
  func.func @transform_1(%arg0: i32, %arg1: i32) -> (i32, i32, i32) {
    %c3_i32 = arith.constant 3 : i32
    %0 = arith.muli %arg1, %c3_i32 : i32
    %c1_i32 = arith.constant 1 : i32
    %1 = arith.subi %0, %c1_i32 : i32
    %c0_i32 = arith.constant 0 : i32
    %2 = arith.maxsi %1, %c0_i32 : i32
    %c0_i32_0 = arith.constant 0 : i32
    %c0_i32_1 = arith.constant 0 : i32
    return %arg0, %2, %c0_i32_0 : i32, i32, i32
  }
  func.func @transform_2(%arg0: i32, %arg1: i32) -> (i32, i32, i32) {
    %c1_i32 = arith.constant 1 : i32
    %0 = arith.addi %arg1, %c1_i32 : i32
    %c3_i32 = arith.constant 3 : i32
    %1 = arith.muli %0, %c3_i32 : i32
    %c2_i32 = arith.constant 2 : i32
    %2 = arith.minsi %1, %c2_i32 : i32
    %c0_i32 = arith.constant 0 : i32
    %c0_i32_0 = arith.constant 0 : i32
    return %arg0, %2, %c0_i32 : i32, i32, i32
  }
  func.func @transform_3(%arg0: i32, %arg1: i32) -> (i32, i32) {
    %c0_i32 = arith.constant 0 : i32
    %c0_i32_0 = arith.constant 0 : i32
    %c0_i32_1 = arith.constant 0 : i32
    return %c0_i32, %c0_i32_0 : i32, i32
  }
  func.func @transform_4(%arg0: i32, %arg1: i32) -> (i32, i32) {
    %c0_i32 = arith.constant 0 : i32
    %c0_i32_0 = arith.constant 0 : i32
    %c0_i32_1 = arith.constant 0 : i32
    return %c0_i32, %c0_i32_0 : i32, i32
  }
  func.func @transform_5(%arg0: i32, %arg1: i32) -> (i32, i32) {
    %c0_i32 = arith.constant 0 : i32
    %c0_i32_0 = arith.constant 0 : i32
    %c0_i32_1 = arith.constant 0 : i32
    return %c0_i32, %c0_i32_0 : i32, i32
  }
  func.func @transform_6(%arg0: i32, %arg1: i32) -> (i32, i32) {
    %c0_i32 = arith.constant 0 : i32
    %c0_i32_0 = arith.constant 0 : i32
    %c0_i32_1 = arith.constant 0 : i32
    return %c0_i32, %c0_i32_0 : i32, i32
  }
  func.func @transform_7(%arg0: i32, %arg1: i32) -> (i32, i32, i32) {
    %c0_i32 = arith.constant 0 : i32
    %c0_i32_0 = arith.constant 0 : i32
    return %arg0, %arg1, %c0_i32 : i32, i32, i32
  }
}

</mosaic_0001>

<llo_original>
// kernel: tpu_custom_call.1
$region0: #{tpu_custom_call.1}
  #allocation0 [shape = 'u32[]', space=smem, size = 0x4, offset = 0x4, fixed_abs, tag = 'smem constant byte address 0x4 - core index']
  #allocation1 [shape = 'u32[144,128]{1,0:T(1,128)}', space=vmem, size = 0x12000, scoped, tag = 'internal scratch']
  #allocation2 [shape = 'bf16[40,256]{1,0:T(8,128)(2,1)}', space=vmem, size = 0x5000, scoped, tag = 'scratch operand']
  #allocation3 [shape = 'bf16[32,256]{1,0:T(16,128)(2,1)}', space=vmem, size = 0x4000, scoped, tag = 'scratch operand']
  #allocation4 [shape = 'bf16[32,1280]{1,0:T(16,128)(2,1)}', space=vmem, size = 0x14000, scoped, tag = 'scratch operand']
  #allocation5 [shape = 'bf16[24,1280]{1,0:T(8,128)(2,1)}', space=vmem, size = 0xf000, scoped, tag = 'scratch operand']
  %s0 = inlined_call_operand.hbm [shape: f32[2,24,256], index: 0, kind: input, shape index: {}]
  %s1 = inlined_call_operand.hbm [shape: f32[2,24,256], index: 1, kind: input, shape index: {}]
  %s2 = inlined_call_operand.hbm [shape: f32[2,24,256], index: 2, kind: input, shape index: {}]
  %s3 = inlined_call_operand.hbm [shape: bf16[1280,256], index: 3, kind: input, shape index: {}]
  %s4 = inlined_call_operand.vmem [shape: f32[1,256], index: 4, kind: input, shape index: {}]
  %s5 = inlined_call_operand.hbm [shape: bf16[1280,256], index: 5, kind: input, shape index: {}]
  %s6 = inlined_call_operand.vmem [shape: f32[1,256], index: 6, kind: input, shape index: {}]
  %s7 = inlined_call_operand.hbm [shape: f32[2,24,256], index: 7, kind: output, shape index: {}]
  %s8 = sld [smem:[#allocation0]]
  $region89: #{tpu_custom_call.1} parent=0
    _
  %s10 = ssub.s32 1, %s8
  %s11 = scalar_select 0, %s10, %s8
  $region1: #{tpu_custom_call.1} parent=0
    #allocation6 [shape = 'u8[49152]{0}', space=vmem, size = 0xc000, scoped, tag = 'input window, operand 0']
    #allocation7 [shape = 's32[2]{0}', space=sflag, size = 0x8, scoped, tag = 'scoped memory for tpu_custom_call.1']
    #allocation8 [shape = 's32[2]{0}', space=sflag, size = 0x8, scoped, tag = 'scoped memory for tpu_custom_call.1']
    #allocation9 [shape = 'u8[16384]{0}', space=vmem, size = 0x4000, scoped, tag = 'input window, operand 1']
    #allocation10 [shape = 's32[2]{0}', space=sflag, size = 0x8, scoped, tag = 'scoped memory for tpu_custom_call.1']
    #allocation11 [shape = 'u8[16384]{0}', space=vmem, size = 0x4000, scoped, tag = 'input window, operand 2']
    #allocation12 [shape = 'u8[655360]{0}', space=vmem, size = 0xa0000, scoped, tag = 'input window, operand 3, single buffered']
    #allocation13 [shape = 's32[1]{0}', space=sflag, size = 0x4, scoped, tag = 'scoped memory for tpu_custom_call.1']
    #allocation14 [shape = 'u8[655360]{0}', space=vmem, size = 0xa0000, scoped, tag = 'input window, operand 5, single buffered']
    #allocation15 [shape = 'u8[49152]{0}', space=vmem, size = 0xc000, scoped, tag = 'output window, operand 0']
    %12 = vsyncpa [#allocation7], 0
    %s13 = scalar_lea.sflag [#allocation7], 1
    %14 = vsyncpa %s13, 0
    %15 = vsyncpa [#allocation10], 0
    %s16 = scalar_lea.sflag [#allocation10], 1
    %17 = vsyncpa %s16, 0
    %18 = vsyncpa [#allocation13], 0
    %19 = vsyncpa [#allocation8], 0
    %s20 = scalar_lea.sflag [#allocation8], 1
    %21 = vsyncpa %s20, 0
    loop: start=0, step=1, limit=4
    $region2: #{tpu_custom_call.1} parent=1 // loop_pre_header
      _
    $region3: #{tpu_custom_call.1} parent=1 // loop_header
      %s23 = sphi 0, %s27
      %p24 = scmp.ge.s32.totalorder %s23, 4
      %s30 = sphi 0, %s42
      %s31 = sphi 0, %s38
      %s32 = sphi 0, %s30
      %s33 = sphi 0, %s31
      %s34 = sphi 0, %s32
      %s35 = sphi 0, %s33
      %s47 = sphi 0, %s49
      %s50 = sphi 0, %s47
      %s51 = sphi 0, %s50
      %s67 = sphi 0, %s51
      %s83 = sphi 0, %s85
      %s86 = sphi 0, %s83
      %s87 = sphi 0, %s86
      %s103 = sphi 0, %s87
      %s119 = sphi 0, %s121
      %s122 = sphi 0, %s119
      %s123 = sphi 0, %s122
      %s139 = sphi 0, %s123
      %s143 = sphi 0, %s143
      %s145 = sphi 0, %s143
      %s146 = sphi 0, %s145
      %s160 = sphi 0, %s146
      %s164 = sphi 0, %s164
      %s166 = sphi 0, %s164
      %s167 = sphi 0, %s166
      %s181 = sphi 0, %s167
      %s185 = sphi 0, %s185
      %s187 = sphi 0, %s185
      %s188 = sphi 0, %s187
      %s202 = sphi 0, %s188
      %s206 = sphi 0, %s206
      %s208 = sphi 0, %s206
      %s209 = sphi 0, %s208
      %s223 = sphi 0, %s209
      %s231 = sphi 0, %s233
      %s234 = sphi 0, %s231
      %s235 = sphi 0, %s234
      %s251 = sphi 0, %s235
    $region4: #{tpu_custom_call.1} parent=1 // loop_header_branch
      %26 = sbr.rel (%p24) target = $region8
    $region5: #{tpu_custom_call.1} parent=1 // loop_body
      %s28 = ssub.s32 %s23, 1
      %s29 = ssub.s32 %s23, 2
      %s36 = sadd.s32 1, %s31
      %p37 = scmp.ge.s32.totalorder %s36, 1
      %s38 = scalar_select %p37, 0, %s36
      %s39 = sadd.s32 1, %s30
      %s40 = scalar_select %p37, %s39, %s30
      %p41 = scmp.ge.s32.totalorder %s40, 2
      %s42 = scalar_select %p41, 0, %s40
      %s43 = ssub.s32 %s30, %s42
      %s44 = ssub.s32 %s31, %s38
      %s45 = sor.u32 %s43, %s44
      %p46 = scmp.eq.s32.totalorder %s45, 0
      %s48 = sadd.s32 %s47, 1
      %s49 = scalar_select %p46, %s47, %s48
      %p52 = pneg %p46
      %p53 = scmp.eq.s32.totalorder %s23, 1
      %p54 = por %p52, %p53
      %p55 = scmp.ne.s32.totalorder %s47, %s50
      %p56 = scmp.eq.s32.totalorder %s23, 0
      %p57 = por %p55, %p56
      %p58 = scmp.ne.s32.totalorder %s47, %s50
      %p59 = scmp.eq.s32.totalorder %s28, 1
      %p60 = por %p58, %p59
      %p61 = scmp.ne.s32.totalorder %s50, %s51
      %p62 = scmp.eq.s32.totalorder %s28, 0
      %p63 = por %p61, %p62
      %p64 = scmp.ne.s32.totalorder %s50, %s51
      %p65 = scmp.eq.s32.totalorder %s29, 1
      %p66 = por %p64, %p65
      %p68 = scmp.ne.s32.totalorder %s51, %s67
      %p69 = scmp.eq.s32.totalorder %s29, 0
      %p70 = por %p68, %p69
      %s71 = smul.u32 %s31, 3
      %s72 = ssub.s32 %s71, 1
      %p73 = scmp.gt.s32.totalorder %s72, 0
      %s74 = scalar_select %p73, %s72, 0
      %s75 = smul.u32 %s38, 3
      %s76 = ssub.s32 %s75, 1
      %p77 = scmp.gt.s32.totalorder %s76, 0
      %s78 = scalar_select %p77, %s76, 0
      %s79 = ssub.s32 %s30, %s42
      %s80 = ssub.s32 %s74, %s78
      %s81 = sor.u32 %s79, %s80
      %p82 = scmp.eq.s32.totalorder %s81, 0
      %s84 = sadd.s32 %s83, 1
      %s85 = scalar_select %p82, %s83, %s84
      %p88 = pneg %p82
      %p89 = scmp.eq.s32.totalorder %s23, 1
      %p90 = por %p88, %p89
      %p91 = scmp.ne.s32.totalorder %s83, %s86
      %p92 = scmp.eq.s32.totalorder %s23, 0
      %p93 = por %p91, %p92
      %p94 = scmp.ne.s32.totalorder %s83, %s86
      %p95 = scmp.eq.s32.totalorder %s28, 1
      %p96 = por %p94, %p95
      %p97 = scmp.ne.s32.totalorder %s86, %s87
      %p98 = scmp.eq.s32.totalorder %s28, 0
      %p99 = por %p97, %p98
      %p100 = scmp.ne.s32.totalorder %s86, %s87
      %p101 = scmp.eq.s32.totalorder %s29, 1
      %p102 = por %p100, %p101
      %p104 = scmp.ne.s32.totalorder %s87, %s103
      %p105 = scmp.eq.s32.totalorder %s29, 0
      %p106 = por %p104, %p105
      %s107 = sadd.s32 %s31, 1
      %s108 = smul.u32 %s107, 3
      %p109 = scmp.lt.s32.totalorder %s108, 2
      %s110 = scalar_select %p109, %s108, 2
      %s111 = sadd.s32 %s38, 1
      %s112 = smul.u32 %s111, 3
      %p113 = scmp.lt.s32.totalorder %s112, 2
      %s114 = scalar_select %p113, %s112, 2
      %s115 = ssub.s32 %s30, %s42
      %s116 = ssub.s32 %s110, %s114
      %s117 = sor.u32 %s115, %s116
      %p118 = scmp.eq.s32.totalorder %s117, 0
      %s120 = sadd.s32 %s119, 1
      %s121 = scalar_select %p118, %s119, %s120
      %p124 = pneg %p118
      %p125 = scmp.eq.s32.totalorder %s23, 1
      %p126 = por %p124, %p125
      %p127 = scmp.ne.s32.totalorder %s119, %s122
      %p128 = scmp.eq.s32.totalorder %s23, 0
      %p129 = por %p127, %p128
      %p130 = scmp.ne.s32.totalorder %s119, %s122
      %p131 = scmp.eq.s32.totalorder %s28, 1
      %p132 = por %p130, %p131
      %p133 = scmp.ne.s32.totalorder %s122, %s123
      %p134 = scmp.eq.s32.totalorder %s28, 0
      %p135 = por %p133, %p134
      %p136 = scmp.ne.s32.totalorder %s122, %s123
      %p137 = scmp.eq.s32.totalorder %s29, 1
      %p138 = por %p136, %p137
      %p140 = scmp.ne.s32.totalorder %s123, %s139
      %p141 = scmp.eq.s32.totalorder %s29, 0
      %p142 = por %p140, %p141
      %s144 = sadd.s32 %s143, 1
      %p147 = scmp.eq.s32.totalorder %s23, 1
      %p148 = scmp.ne.s32.totalorder %s143, %s145
      %p149 = scmp.eq.s32.totalorder %s23, 0
      %p150 = por %p148, %p149
      %p151 = scmp.ne.s32.totalorder %s143, %s145
      %p152 = scmp.eq.s32.totalorder %s28, 1
      %p153 = por %p151, %p152
      %p154 = scmp.ne.s32.totalorder %s145, %s146
      %p155 = scmp.eq.s32.totalorder %s28, 0
      %p156 = por %p154, %p155
      %p157 = scmp.ne.s32.totalorder %s145, %s146
      %p158 = scmp.eq.s32.totalorder %s29, 1
      %p159 = por %p157, %p158
      %p161 = scmp.ne.s32.totalorder %s146, %s160
      %p162 = scmp.eq.s32.totalorder %s29, 0
      %p163 = por %p161, %p162
      %s165 = sadd.s32 %s164, 1
      %p168 = scmp.eq.s32.totalorder %s23, 1
      %p169 = scmp.ne.s32.totalorder %s164, %s166
      %p170 = scmp.eq.s32.totalorder %s23, 0
      %p171 = por %p169, %p170
      %p172 = scmp.ne.s32.totalorder %s164, %s166
      %p173 = scmp.eq.s32.totalorder %s28, 1
      %p174 = por %p172, %p173
      %p175 = scmp.ne.s32.totalorder %s166, %s167
      %p176 = scmp.eq.s32.totalorder %s28, 0
      %p177 = por %p175, %p176
      %p178 = scmp.ne.s32.totalorder %s166, %s167
      %p179 = scmp.eq.s32.totalorder %s29, 1
      %p180 = por %p178, %p179
      %p182 = scmp.ne.s32.totalorder %s167, %s181
      %p183 = scmp.eq.s32.totalorder %s29, 0
      %p184 = por %p182, %p183
      %s186 = sadd.s32 %s185, 1
      %p189 = scmp.eq.s32.totalorder %s23, 1
      %p190 = scmp.ne.s32.totalorder %s185, %s187
      %p191 = scmp.eq.s32.totalorder %s23, 0
      %p192 = por %p190, %p191
      %p193 = scmp.ne.s32.totalorder %s185, %s187
      %p194 = scmp.eq.s32.totalorder %s28, 1
      %p195 = por %p193, %p194
      %p196 = scmp.ne.s32.totalorder %s187, %s188
      %p197 = scmp.eq.s32.totalorder %s28, 0
      %p198 = por %p196, %p197
      %p199 = scmp.ne.s32.totalorder %s187, %s188
      %p200 = scmp.eq.s32.totalorder %s29, 1
      %p201 = por %p199, %p200
      %p203 = scmp.ne.s32.totalorder %s188, %s202
      %p204 = scmp.eq.s32.totalorder %s29, 0
      %p205 = por %p203, %p204
      %s207 = sadd.s32 %s206, 1
      %p210 = scmp.eq.s32.totalorder %s23, 1
      %p211 = scmp.ne.s32.totalorder %s206, %s208
      %p212 = scmp.eq.s32.totalorder %s23, 0
      %p213 = por %p211, %p212
      %p214 = scmp.ne.s32.totalorder %s206, %s208
      %p215 = scmp.eq.s32.totalorder %s28, 1
      %p216 = por %p214, %p215
      %p217 = scmp.ne.s32.totalorder %s208, %s209
      %p218 = scmp.eq.s32.totalorder %s28, 0
      %p219 = por %p217, %p218
      %p220 = scmp.ne.s32.totalorder %s208, %s209
      %p221 = scmp.eq.s32.totalorder %s29, 1
      %p222 = por %p220, %p221
      %p224 = scmp.ne.s32.totalorder %s209, %s223
      %p225 = scmp.eq.s32.totalorder %s29, 0
      %p226 = por %p224, %p225
      %s227 = ssub.s32 %s30, %s42
      %s228 = ssub.s32 %s31, %s38
      %s229 = sor.u32 %s227, %s228
      %p230 = scmp.eq.s32.totalorder %s229, 0
      %s232 = sadd.s32 %s231, 1
      %s233 = scalar_select %p230, %s231, %s232
      %p236 = pneg %p230
      %p237 = scmp.eq.s32.totalorder %s23, 1
      %p238 = por %p236, %p237
      %p239 = scmp.ne.s32.totalorder %s231, %s234
      %p240 = scmp.eq.s32.totalorder %s23, 0
      %p241 = por %p239, %p240
      %p242 = scmp.ne.s32.totalorder %s231, %s234
      %p243 = scmp.eq.s32.totalorder %s28, 1
      %p244 = por %p242, %p243
      %p245 = scmp.ne.s32.totalorder %s234, %s235
      %p246 = scmp.eq.s32.totalorder %s28, 0
      %p247 = por %p245, %p246
      %p248 = scmp.ne.s32.totalorder %s234, %s235
      %p249 = scmp.eq.s32.totalorder %s29, 1
      %p250 = por %p248, %p249
      %p252 = scmp.ne.s32.totalorder %s235, %s251
      %p253 = scmp.eq.s32.totalorder %s29, 0
      %p254 = por %p252, %p253
      %p255 = scmp.le.s32.totalorder 1, %s23
      %p256 = scmp.lt.s32.totalorder %s23, 3
      %p257 = pnand %p255, %p256
      %p258 = pneg %p257
      // Predicated region
      $region9: #{tpu_custom_call.1} parent=5 // pred_check
        _
      $region10: #{tpu_custom_call.1} parent=5 // pred_check_branch
        %260 = sbr.rel (%p257) target = $region12
      $region11: #{tpu_custom_call.1} parent=5 // pred_region
        %s261 = ssub.s32 %s23, 1
        // Predicated region
        $region13: #{tpu_custom_call.1} parent=11 // pred_check
          %p262 = pneg %p156
        $region14: #{tpu_custom_call.1} parent=11 // pred_check_branch
          %264 = sbr.rel (%p262) target = $region16
        $region15: #{tpu_custom_call.1} parent=11 // pred_region
          %s266 = ssub.s32 20480, 20480
          %267 = vsyncadd [#allocation13], %s266
          %s268 = sshll.u32 [#allocation12], 4
          %s269 = int_to_ptr.vmem [resolvable:$true] %s268
          %274 = dma.hbm_to_vmem [thread:$0]  %s3, 20480, %s269, [#allocation13], 128, 128, 8
        $region16: #{tpu_custom_call.1} parent=11 // pred_fallthru
          _
        // Predicated region
        $region17: #{tpu_custom_call.1} parent=11 // pred_check
          %p275 = pneg %p177
        $region18: #{tpu_custom_call.1} parent=11 // pred_check_branch
          %277 = sbr.rel (%p275) target = $region20
        $region19: #{tpu_custom_call.1} parent=11 // pred_region
          _
        $region20: #{tpu_custom_call.1} parent=11 // pred_fallthru
          _
        // Predicated region
        $region21: #{tpu_custom_call.1} parent=11 // pred_check
          %p278 = pneg %p198
        $region22: #{tpu_custom_call.1} parent=11 // pred_check_branch
          %280 = sbr.rel (%p278) target = $region24
        $region23: #{tpu_custom_call.1} parent=11 // pred_region
          %s282 = ssub.s32 20480, 20480
          %283 = vsyncadd [#allocation13], %s282
          %s284 = sshll.u32 [#allocation14], 4
          %s285 = int_to_ptr.vmem [resolvable:$true] %s284
          %290 = dma.hbm_to_vmem [thread:$0]  %s5, 20480, %s285, [#allocation13], 128, 128, 8
        $region24: #{tpu_custom_call.1} parent=11 // pred_fallthru
          _
        // Predicated region
        $region25: #{tpu_custom_call.1} parent=11 // pred_check
          %p291 = pneg %p219
        $region26: #{tpu_custom_call.1} parent=11 // pred_check_branch
          %293 = sbr.rel (%p291) target = $region28
        $region27: #{tpu_custom_call.1} parent=11 // pred_region
          _
        $region28: #{tpu_custom_call.1} parent=11 // pred_fallthru
          _
      $region12: #{tpu_custom_call.1} parent=5 // pred_fallthru
        _
      %p294 = scmp.lt.s32.totalorder %s23, 2
      // Predicated region
      $region29: #{tpu_custom_call.1} parent=5 // pred_check
        %p295 = pneg %p294
      $region30: #{tpu_custom_call.1} parent=5 // pred_check_branch
        %297 = sbr.rel (%p295) target = $region32
      $region31: #{tpu_custom_call.1} parent=5 // pred_region
        // Predicated region
        $region33: #{tpu_custom_call.1} parent=31 // pred_check
          %p298 = pneg %p57
        $region34: #{tpu_custom_call.1} parent=31 // pred_check_branch
          %300 = sbr.rel (%p298) target = $region36
        $region35: #{tpu_custom_call.1} parent=31 // pred_region
          %s301 = sand.u32 %s47, 1
          %s302 = scalar_lea.sflag [#allocation7], %s301
          %s303 = sand.u32 %s47, 1
          %s304 = smul.addr %s303, 48
          %s305 = scalar_lea.vmem [#allocation6], %s304
          %s306 = smul.u32 3, %s31
          %s308 = ssub.s32 768, 768
          %309 = vsyncadd %s302, %s308
          %s310 = smul.addr %s306, 2
          %s311 = smul.addr %s30, 6
          %s312 = sadd.s32 %s310, %s311
          %s313 = smul.addr %s312, 128
          %s314 = scalar_lea.hbm %s0, %s313
          %s315 = sshll.u32 %s305, 4
          %s316 = int_to_ptr.vmem [resolvable:$true] %s315
          %321 = dma.hbm_to_vmem [thread:$0]  %s314, 768, %s316, %s302, 256, 256, 16
        $region36: #{tpu_custom_call.1} parent=31 // pred_fallthru
          _
        // Predicated region
        $region37: #{tpu_custom_call.1} parent=31 // pred_check
          %p322 = pneg %p93
        $region38: #{tpu_custom_call.1} parent=31 // pred_check_branch
          %324 = sbr.rel (%p322) target = $region40
        $region39: #{tpu_custom_call.1} parent=31 // pred_region
          %s325 = sand.u32 %s23, 1
          %s326 = scalar_lea.sflag [#allocation10], %s325
          %s327 = sand.u32 %s83, 1
          %s328 = smul.addr %s327, 16
          %s329 = scalar_lea.vmem [#allocation9], %s328
          %s330 = smul.u32 %s31, 3
          %s331 = ssub.s32 %s330, 1
          %p332 = scmp.gt.s32.totalorder %s331, 0
          %s333 = scalar_select %p332, %s331, 0
          %s335 = ssub.s32 256, 256
          %336 = vsyncadd %s326, %s335
          %s337 = smul.addr %s333, 2
          %s338 = smul.addr %s30, 6
          %s339 = sadd.s32 %s337, %s338
          %s340 = smul.addr %s339, 128
          %s341 = scalar_lea.hbm %s1, %s340
          %s343 = sshll.u32 %s329, 4
          %s344 = int_to_ptr.vmem [resolvable:$true] %s343
          %346 = dma.hbm_to_vmem [thread:$0]  %s341, 256, %s344, %s326
        $region40: #{tpu_custom_call.1} parent=31 // pred_fallthru
          _
        // Predicated region
        $region41: #{tpu_custom_call.1} parent=31 // pred_check
          %p347 = pneg %p129
        $region42: #{tpu_custom_call.1} parent=31 // pred_check_branch
          %349 = sbr.rel (%p347) target = $region44
        $region43: #{tpu_custom_call.1} parent=31 // pred_region
          %s350 = sand.u32 %s23, 1
          %s351 = scalar_lea.sflag [#allocation10], %s350
          %s352 = sand.u32 %s119, 1
          %s353 = smul.addr %s352, 16
          %s354 = scalar_lea.vmem [#allocation11], %s353
          %s355 = sadd.s32 %s31, 1
          %s356 = smul.u32 %s355, 3
          %p357 = scmp.lt.s32.totalorder %s356, 2
          %s358 = scalar_select %p357, %s356, 2
          %s360 = ssub.s32 256, 256
          %361 = vsyncadd %s351, %s360
          %s362 = smul.addr %s358, 2
          %s363 = smul.addr %s30, 6
          %s364 = sadd.s32 %s362, %s363
          %s365 = smul.addr %s364, 128
          %s366 = scalar_lea.hbm %s2, %s365
          %s368 = sshll.u32 %s354, 4
          %s369 = int_to_ptr.vmem [resolvable:$true] %s368
          %371 = dma.hbm_to_vmem [thread:$0]  %s366, 256, %s369, %s351
        $region44: #{tpu_custom_call.1} parent=31 // pred_fallthru
          _
      $region32: #{tpu_custom_call.1} parent=5 // pred_fallthru
        _
      %p372 = scmp.le.s32.totalorder 1, %s23
      %p373 = scmp.lt.s32.totalorder %s23, 3
      %p374 = pnand %p372, %p373
      %p375 = pneg %p374
      // Predicated region
      $region45: #{tpu_custom_call.1} parent=5 // pred_check
        _
      $region46: #{tpu_custom_call.1} parent=5 // pred_check_branch
        %377 = sbr.rel (%p374) target = $region48
      $region47: #{tpu_custom_call.1} parent=5 // pred_region
        %s378 = ssub.s32 %s23, 1
        %s379 = sand.u32 %s50, 1
        %s380 = scalar_lea.sflag [#allocation7], %s379
        %s381 = sand.u32 %s50, 1
        %s382 = smul.addr %s381, 48
        %s383 = scalar_lea.vmem [#allocation6], %s382
        // Predicated region
        $region49: #{tpu_custom_call.1} parent=47 // pred_check
          %p384 = pneg %p63
        $region50: #{tpu_custom_call.1} parent=47 // pred_check_branch
          %386 = sbr.rel (%p384) target = $region52
        $region51: #{tpu_custom_call.1} parent=47 // pred_region
          %387 = dma.done %s380, 768
        $region52: #{tpu_custom_call.1} parent=47 // pred_fallthru
          _
        %s388 = sand.u32 %s28, 1
        %s389 = scalar_lea.sflag [#allocation10], %s388
        %s390 = sand.u32 %s86, 1
        %s391 = smul.addr %s390, 16
        %s392 = scalar_lea.vmem [#allocation9], %s391
        // Predicated region
        $region53: #{tpu_custom_call.1} parent=47 // pred_check
          %p393 = pneg %p99
        $region54: #{tpu_custom_call.1} parent=47 // pred_check_branch
          %395 = sbr.rel (%p393) target = $region56
        $region55: #{tpu_custom_call.1} parent=47 // pred_region
          %396 = dma.done %s389, 256
        $region56: #{tpu_custom_call.1} parent=47 // pred_fallthru
          _
        %s397 = sand.u32 %s28, 1
        %s398 = scalar_lea.sflag [#allocation10], %s397
        %s399 = sand.u32 %s122, 1
        %s400 = smul.addr %s399, 16
        %s401 = scalar_lea.vmem [#allocation11], %s400
        // Predicated region
        $region57: #{tpu_custom_call.1} parent=47 // pred_check
          %p402 = pneg %p135
        $region58: #{tpu_custom_call.1} parent=47 // pred_check_branch
          %404 = sbr.rel (%p402) target = $region60
        $region59: #{tpu_custom_call.1} parent=47 // pred_region
          %405 = dma.done %s398, 256
        $region60: #{tpu_custom_call.1} parent=47 // pred_fallthru
          _
        // Predicated region
        $region61: #{tpu_custom_call.1} parent=47 // pred_check
          %p406 = pneg %p156
        $region62: #{tpu_custom_call.1} parent=47 // pred_check_branch
          %408 = sbr.rel (%p406) target = $region64
        $region63: #{tpu_custom_call.1} parent=47 // pred_region
          %409 = dma.done [#allocation13], 20480
        $region64: #{tpu_custom_call.1} parent=47 // pred_fallthru
          _
        // Predicated region
        $region65: #{tpu_custom_call.1} parent=47 // pred_check
          %p410 = pneg %p198
        $region66: #{tpu_custom_call.1} parent=47 // pred_check_branch
          %412 = sbr.rel (%p410) target = $region68
        $region67: #{tpu_custom_call.1} parent=47 // pred_region
          %413 = dma.done [#allocation13], 20480
        $region68: #{tpu_custom_call.1} parent=47 // pred_fallthru
          _
        %s414 = sand.u32 %s50, 1
        %s415 = scalar_lea.sflag [#allocation7], %s414
        %s416 = sand.u32 %s50, 1
        %s417 = smul.addr %s416, 48
        %s418 = scalar_lea.vmem [#allocation6], %s417
        %p419 = pneg %p63
        %p420 = pneg %p60
        %s421 = sand.u32 %s28, 1
        %s422 = scalar_lea.sflag [#allocation10], %s421
        %s423 = sand.u32 %s86, 1
        %s424 = smul.addr %s423, 16
        %s425 = scalar_lea.vmem [#allocation9], %s424
        %p426 = pneg %p99
        %p427 = pneg %p96
        %s428 = sand.u32 %s28, 1
        %s429 = scalar_lea.sflag [#allocation10], %s428
        %s430 = sand.u32 %s122, 1
        %s431 = smul.addr %s430, 16
        %s432 = scalar_lea.vmem [#allocation11], %s431
        %p433 = pneg %p135
        %p434 = pneg %p132
        %p435 = pneg %p156
        %p436 = pneg %p153
        %p437 = pneg %p177
        %p438 = pneg %p174
        %p439 = pneg %p198
        %p440 = pneg %p195
        %p441 = pneg %p219
        %p442 = pneg %p216
        %p443 = pneg %p247
        %p444 = pneg %p244
        %s445 = sand.u32 %s234, 1
        %s446 = scalar_lea.sflag [#allocation8], %s445
        %s447 = sand.u32 %s234, 1
        %s448 = smul.addr %s447, 48
        %s449 = scalar_lea.vmem [#allocation15], %s448
        %s450 = smul.u32 3, %s33
        %s451 = smul.u32 %s33, 3
        %s452 = ssub.s32 %s451, 1
        %p453 = scmp.gt.s32.totalorder %s452, 0
        %s454 = scalar_select %p453, %s452, 0
        %s455 = sadd.s32 %s33, 1
        %s456 = smul.u32 %s455, 3
        %p457 = scmp.lt.s32.totalorder %s456, 2
        %s458 = scalar_select %p457, %s456, 2
        %s459 = smul.u32 3, %s33
        %p460 = scmp.gt.s32.totalorder %s33, 0
        %v461 = vld [vmem:[%s392] sm:$0xff]
        %v462 = vld [vmem:[%s392 + $0x8] sm:$0xff]
        %s463 = scalar_select %p460, 1, 0
        %v464 = vstv %s463
        %vm465 = vcmp.eq.s32.totalorder %v464, 1
        %v466 = vsel %vm465, %v461, 0.0
        %v467 = vsel %vm465, %v462, 0.0
        %v468 = vpack.c.bf16 %v466, %v466
        %v469 = vpack.c.bf16 %v467, %v467
        %v472 = vunpack.c.l.b16 %v468
        %v473 = vunpack.c.l.b16 %v469
        %v474 = vpack.c.b16 %v473, %v472
        %476 = vst [vmem:[#allocation2] sm:$0xff] %v474
        %p477 = scmp.eq.s32.totalorder %s33, 0
        // Predicated region
        $region69: #{tpu_custom_call.1} parent=47 // pred_check
          %p478 = pneg %p477
        $region70: #{tpu_custom_call.1} parent=47 // pred_check_branch
          %480 = sbr.rel (%p478) target = $region72
        $region71: #{tpu_custom_call.1} parent=47 // pred_region
          %s481 = smul.u32 %s33, 24
          %v482 = vlaneseq
          %v483 = vshrl.u32 %v482, 7
          %v484 = vadd.s32 %v483, 8
          %v485 = vadd.s32 %v483, 16
          %v486 = vstv %s481
          %v487 = vadd.s32 %v486, %v483
          %v488 = vadd.s32 %v486, %v484
          %v489 = vadd.s32 %v486, %v485
          %vm490 = vcmp.lt.s32.totalorder %v487, 20
          %vm491 = vcmp.lt.s32.totalorder %v488, 20
          %vm492 = vcmp.lt.s32.totalorder %v489, 20
          %v493 = vld [vmem:[%s383] sm:$0xff]
          %v494 = vld [vmem:[%s383 + $0x8] sm:$0xff]
          %v495 = vld [vmem:[%s383 + $0x10] sm:$0xff]
          %v496 = vld [vmem:[%s383 + $0x18] sm:$0xff]
          %v497 = vld [vmem:[%s383 + $0x20] sm:$0xff]
          %v498 = vld [vmem:[%s383 + $0x28] sm:$0xff]
          %v499 = vsel %vm490, 1, 0
          %v500 = vsel %vm491, 1, 0
          %v501 = vsel %vm492, 1, 0
          %vm502 = vcmp.eq.s32.totalorder %v499, 1
          %vm503 = vcmp.eq.s32.totalorder %v500, 1
          %vm504 = vcmp.eq.s32.totalorder %v501, 1
          %v505 = vsel %vm502, %v493, 0.0
          %v506 = vsel %vm502, %v494, 0.0
          %v507 = vsel %vm503, %v495, 0.0
          %v508 = vsel %vm503, %v496, 0.0
          %v509 = vsel %vm504, %v497, 0.0
          %v510 = vsel %vm504, %v498, 0.0
          %v511 = vpack.c.bf16 %v507, %v505
          %v512 = vpack.c.bf16 %v508, %v506
          %v513 = vpack.c.bf16 %v509, %v509
          %v514 = vpack.c.bf16 %v510, %v510
          %v519 = vunpack.c.l.b16 %v511
          %v520 = vunpack.c.l.b16 %v512
          %v521 = vunpack.c.h.b16 %v511
          %v522 = vunpack.c.h.b16 %v512
          %v523 = vunpack.c.l.b16 %v513
          %v524 = vunpack.c.l.b16 %v514
          %v525 = vpack.c.b16 %v520, %v519
          %v526 = vpack.c.b16 %v522, %v521
          %v527 = vpack.c.b16 %v524, %v523
          %531 = vst [vmem:[#allocation2 + $0x8] sm:$0xff] %v525
          %532 = vst [vmem:[#allocation2 + $0x10] sm:$0xff] %v526
          %533 = vst [vmem:[#allocation2 + $0x18] sm:$0xff] %v527
        $region72: #{tpu_custom_call.1} parent=47 // pred_fallthru
          _
        %p534 = scmp.lt.s32.totalorder %s33, 0
        // Predicated region
        $region73: #{tpu_custom_call.1} parent=47 // pred_check
          %p535 = pneg %p534
        $region74: #{tpu_custom_call.1} parent=47 // pred_check_branch
          %537 = sbr.rel (%p535) target = $region76
        $region75: #{tpu_custom_call.1} parent=47 // pred_region
          %v538 = vld [vmem:[%s383] sm:$0xff]
          %v539 = vld [vmem:[%s383 + $0x8] sm:$0xff]
          %v540 = vld [vmem:[%s383 + $0x10] sm:$0xff]
          %v541 = vld [vmem:[%s383 + $0x18] sm:$0xff]
          %v542 = vld [vmem:[%s383 + $0x20] sm:$0xff]
          %v543 = vld [vmem:[%s383 + $0x28] sm:$0xff]
          %v544 = vpack.c.bf16 %v540, %v538
          %v545 = vpack.c.bf16 %v541, %v539
          %v546 = vpack.c.bf16 %v542, %v542
          %v547 = vpack.c.bf16 %v543, %v543
          %v552 = vunpack.c.l.b16 %v544
          %v553 = vunpack.c.l.b16 %v545
          %v554 = vunpack.c.h.b16 %v544
          %v555 = vunpack.c.h.b16 %v545
          %v556 = vunpack.c.l.b16 %v546
          %v557 = vunpack.c.l.b16 %v547
          %v558 = vpack.c.b16 %v553, %v552
          %v559 = vpack.c.b16 %v555, %v554
          %v560 = vpack.c.b16 %v557, %v556
          %564 = vst [vmem:[#allocation2 + $0x8] sm:$0xff] %v558
          %565 = vst [vmem:[#allocation2 + $0x10] sm:$0xff] %v559
          %566 = vst [vmem:[#allocation2 + $0x18] sm:$0xff] %v560
        $region76: #{tpu_custom_call.1} parent=47 // pred_fallthru
          _
        %s567 = sadd.s32 %s33, 1
        %s568 = smul.u32 %s567, 24
        %v569 = vlaneseq
        %v570 = vshrl.u32 %v569, 7
        %v571 = vstv %s568
        %v572 = vadd.s32 %v571, %v570
        %vm573 = vcmp.lt.s32.totalorder %v572, 20
        %v574 = vld [vmem:[%s401] sm:$0xff]
        %v575 = vld [vmem:[%s401 + $0x8] sm:$0xff]
        %v576 = vsel %vm573, 1, 0
        %vm577 = vcmp.eq.s32.totalorder %v576, 1
        %v578 = vsel %vm577, %v574, 0.0
        %v579 = vsel %vm577, %v575, 0.0
        %v580 = vpack.c.bf16 %v578, %v578
        %v581 = vpack.c.bf16 %v579, %v579
        %v584 = vunpack.c.l.b16 %v580
        %v585 = vunpack.c.l.b16 %v581
        %v586 = vpack.c.b16 %v585, %v584
        %588 = vst [vmem:[#allocation2 + $0x20] sm:$0xff] %v586
        %v589 = vld [vmem:[#allocation2] sm:$0xee]
        %v590 = vld [vmem:[#allocation2 + $0x8] sm:$0xff]
        %v591 = vld [vmem:[#allocation2 + $0x10] sm:$0xff]
        %v592 = vld [vmem:[#allocation2 + $0x18] sm:$0xff]
        %v593 = vld [vmem:[#allocation2 + $0x20] sm:$0x11]
        %v599 = vunpack.c.l.b16 %v589
        %v600 = vunpack.c.h.b16 %v589
        %v601 = vunpack.c.l.b16 %v590
        %v602 = vunpack.c.h.b16 %v590
        %v603 = vunpack.c.l.b16 %v591
        %v604 = vunpack.c.h.b16 %v591
        %v605 = vunpack.c.l.b16 %v592
        %v606 = vunpack.c.h.b16 %v592
        %v607 = vunpack.c.l.b16 %v593
        %v608 = vunpack.c.h.b16 %v593
        %v609 = vpack.c.b16 %v601, %v599
        %v610 = vpack.c.b16 %v602, %v600
        %v611 = vpack.c.b16 %v605, %v603
        %v612 = vpack.c.b16 %v606, %v604
        %v613 = vpack.c.b16 %v607, %v607
        %v614 = vpack.c.b16 %v608, %v608
        %vm615 = vcmask 1046528
        %v616 = vrot.slane %v609, 1
        %v617 = vrot.slane %v611, 1
        %v618 = vsel %vm615, %v616, %v617
        %v619 = vrot.slane %v610, 1
        %v620 = vrot.slane %v612, 1
        %v621 = vsel %vm615, %v619, %v620
        %v622 = vrot.slane %v613, 1
        %v623 = vsel %vm615, %v617, %v622
        %v624 = vrot.slane %v614, 1
        %v625 = vsel %vm615, %v620, %v624
        %630 = vst [vmem:[#allocation4] sm:$0xff] %v618
        %631 = vst [vmem:[#allocation4 + $0x8] sm:$0xff] %v621
        %632 = vst [vmem:[#allocation4 + $0x50] sm:$0xff] %v623
        %633 = vst [vmem:[#allocation4 + $0x58] sm:$0xff] %v625
        %v634 = vld [vmem:[#allocation2] sm:$0xee]
        %v635 = vld [vmem:[#allocation2 + $0x8] sm:$0xff]
        %v636 = vld [vmem:[#allocation2 + $0x10] sm:$0xff]
        %v637 = vld [vmem:[#allocation2 + $0x18] sm:$0xff]
        %v638 = vld [vmem:[#allocation2 + $0x20] sm:$0x33]
        %v644 = vunpack.c.l.b16 %v634
        %v645 = vunpack.c.h.b16 %v634
        %v646 = vunpack.c.l.b16 %v635
        %v647 = vunpack.c.h.b16 %v635
        %v648 = vunpack.c.l.b16 %v636
        %v649 = vunpack.c.h.b16 %v636
        %v650 = vunpack.c.l.b16 %v637
        %v651 = vunpack.c.h.b16 %v637
        %v652 = vunpack.c.l.b16 %v638
        %v653 = vunpack.c.h.b16 %v638
        %v654 = vpack.c.b16 %v646, %v644
        %v655 = vpack.c.b16 %v647, %v645
        %v656 = vpack.c.b16 %v650, %v648
        %v657 = vpack.c.b16 %v651, %v649
        %v658 = vpack.c.b16 %v652, %v652
        %v659 = vpack.c.b16 %v653, %v653
        %vm660 = vsmask.f32 6400
        %v662 = vshrl.u32 %v654, 16
        %v664 = vrot.slane %v662, 1
        %v665 = vshll.u32 %v654, 16
        %v667 = vrot.slane %v665, 2
        %v668 = vor.u32 %v664, %v667
        %v670 = vshrl.u32 %v656, 16
        %v672 = vrot.slane %v670, 1
        %v673 = vshll.u32 %v656, 16
        %v675 = vrot.slane %v673, 2
        %v676 = vor.u32 %v672, %v675
        %v677 = vsel %vm660, %v668, %v676
        %v679 = vshrl.u32 %v655, 16
        %v681 = vrot.slane %v679, 1
        %v682 = vshll.u32 %v655, 16
        %v684 = vrot.slane %v682, 2
        %v685 = vor.u32 %v681, %v684
        %v687 = vshrl.u32 %v657, 16
        %v689 = vrot.slane %v687, 1
        %v690 = vshll.u32 %v657, 16
        %v692 = vrot.slane %v690, 2
        %v693 = vor.u32 %v689, %v692
        %v694 = vsel %vm660, %v685, %v693
        %v696 = vshrl.u32 %v658, 16
        %v698 = vrot.slane %v696, 1
        %v699 = vshll.u32 %v658, 16
        %v701 = vrot.slane %v699, 2
        %v702 = vor.u32 %v698, %v701
        %v703 = vsel %vm660, %v676, %v702
        %v705 = vshrl.u32 %v659, 16
        %v707 = vrot.slane %v705, 1
        %v708 = vshll.u32 %v659, 16
        %v710 = vrot.slane %v708, 2
        %v711 = vor.u32 %v707, %v710
        %v712 = vsel %vm660, %v693, %v711
        %717 = vst [vmem:[#allocation4 + $0x10] sm:$0xff] %v677
        %718 = vst [vmem:[#allocation4 + $0x18] sm:$0xff] %v694
        %719 = vst [vmem:[#allocation4 + $0x60] sm:$0xff] %v703
        %720 = vst [vmem:[#allocation4 + $0x68] sm:$0xff] %v712
        %v721 = vld [vmem:[#allocation2] sm:$0xcc]
        %v722 = vld [vmem:[#allocation2 + $0x8] sm:$0xff]
        %v723 = vld [vmem:[#allocation2 + $0x10] sm:$0xff]
        %v724 = vld [vmem:[#allocation2 + $0x18] sm:$0xff]
        %v725 = vld [vmem:[#allocation2 + $0x20] sm:$0x33]
        %v731 = vunpack.c.l.b16 %v721
        %v732 = vunpack.c.h.b16 %v721
        %v733 = vunpack.c.l.b16 %v722
        %v734 = vunpack.c.h.b16 %v722
        %v735 = vunpack.c.l.b16 %v723
        %v736 = vunpack.c.h.b16 %v723
        %v737 = vunpack.c.l.b16 %v724
        %v738 = vunpack.c.h.b16 %v724
        %v739 = vunpack.c.l.b16 %v725
        %v740 = vunpack.c.h.b16 %v725
        %v741 = vpack.c.b16 %v733, %v731
        %v742 = vpack.c.b16 %v734, %v732
        %v743 = vpack.c.b16 %v737, %v735
        %v744 = vpack.c.b16 %v738, %v736
        %v745 = vpack.c.b16 %v739, %v739
        %v746 = vpack.c.b16 %v740, %v740
        %vm747 = vcmask 1045504
        %v748 = vrot.slane %v741, 2
        %v749 = vrot.slane %v743, 2
        %v750 = vsel %vm747, %v748, %v749
        %v751 = vrot.slane %v742, 2
        %v752 = vrot.slane %v744, 2
        %v753 = vsel %vm747, %v751, %v752
        %v754 = vrot.slane %v745, 2
        %v755 = vsel %vm747, %v749, %v754
        %v756 = vrot.slane %v746, 2
        %v757 = vsel %vm747, %v752, %v756
        %762 = vst [vmem:[#allocation4 + $0x20] sm:$0xff] %v750
        %763 = vst [vmem:[#allocation4 + $0x28] sm:$0xff] %v753
        %764 = vst [vmem:[#allocation4 + $0x70] sm:$0xff] %v755
        %765 = vst [vmem:[#allocation4 + $0x78] sm:$0xff] %v757
        %v766 = vld [vmem:[#allocation2] sm:$0xcc]
        %v767 = vld [vmem:[#allocation2 + $0x8] sm:$0xff]
        %v768 = vld [vmem:[#allocation2 + $0x10] sm:$0xff]
        %v769 = vld [vmem:[#allocation2 + $0x18] sm:$0xff]
        %v770 = vld [vmem:[#allocation2 + $0x20] sm:$0x77]
        %v776 = vunpack.c.l.b16 %v766
        %v777 = vunpack.c.h.b16 %v766
        %v778 = vunpack.c.l.b16 %v767
        %v779 = vunpack.c.h.b16 %v767
        %v780 = vunpack.c.l.b16 %v768
        %v781 = vunpack.c.h.b16 %v768
        %v782 = vunpack.c.l.b16 %v769
        %v783 = vunpack.c.h.b16 %v769
        %v784 = vunpack.c.l.b16 %v770
        %v785 = vunpack.c.h.b16 %v770
        %v786 = vpack.c.b16 %v778, %v776
        %v787 = vpack.c.b16 %v779, %v777
        %v788 = vpack.c.b16 %v782, %v780
        %v789 = vpack.c.b16 %v783, %v781
        %v790 = vpack.c.b16 %v784, %v784
        %v791 = vpack.c.b16 %v785, %v785
        %vm792 = vsmask.f32 5376
        %v794 = vshrl.u32 %v786, 16
        %v796 = vrot.slane %v794, 2
        %v797 = vshll.u32 %v786, 16
        %v799 = vrot.slane %v797, 3
        %v800 = vor.u32 %v796, %v799
        %v802 = vshrl.u32 %v788, 16
        %v804 = vrot.slane %v802, 2
        %v805 = vshll.u32 %v788, 16
        %v807 = vrot.slane %v805, 3
        %v808 = vor.u32 %v804, %v807
        %v809 = vsel %vm792, %v800, %v808
        %v811 = vshrl.u32 %v787, 16
        %v813 = vrot.slane %v811, 2
        %v814 = vshll.u32 %v787, 16
        %v816 = vrot.slane %v814, 3
        %v817 = vor.u32 %v813, %v816
        %v819 = vshrl.u32 %v789, 16
        %v821 = vrot.slane %v819, 2
        %v822 = vshll.u32 %v789, 16
        %v824 = vrot.slane %v822, 3
        %v825 = vor.u32 %v821, %v824
        %v826 = vsel %vm792, %v817, %v825
        %v828 = vshrl.u32 %v790, 16
        %v830 = vrot.slane %v828, 2
        %v831 = vshll.u32 %v790, 16
        %v833 = vrot.slane %v831, 3
        %v834 = vor.u32 %v830, %v833
        %v835 = vsel %vm792, %v808, %v834
        %v837 = vshrl.u32 %v791, 16
        %v839 = vrot.slane %v837, 2
        %v840 = vshll.u32 %v791, 16
        %v842 = vrot.slane %v840, 3
        %v843 = vor.u32 %v839, %v842
        %v844 = vsel %vm792, %v825, %v843
        %849 = vst [vmem:[#allocation4 + $0x30] sm:$0xff] %v809
        %850 = vst [vmem:[#allocation4 + $0x38] sm:$0xff] %v826
        %851 = vst [vmem:[#allocation4 + $0x80] sm:$0xff] %v835
        %852 = vst [vmem:[#allocation4 + $0x88] sm:$0xff] %v844
        %v853 = vld [vmem:[#allocation2] sm:$0x88]
        %v854 = vld [vmem:[#allocation2 + $0x8] sm:$0xff]
        %v855 = vld [vmem:[#allocation2 + $0x10] sm:$0xff]
        %v856 = vld [vmem:[#allocation2 + $0x18] sm:$0xff]
        %v857 = vld [vmem:[#allocation2 + $0x20] sm:$0x77]
        %v863 = vunpack.c.l.b16 %v853
        %v864 = vunpack.c.h.b16 %v853
        %v865 = vunpack.c.l.b16 %v854
        %v866 = vunpack.c.h.b16 %v854
        %v867 = vunpack.c.l.b16 %v855
        %v868 = vunpack.c.h.b16 %v855
        %v869 = vunpack.c.l.b16 %v856
        %v870 = vunpack.c.h.b16 %v856
        %v871 = vunpack.c.l.b16 %v857
        %v872 = vunpack.c.h.b16 %v857
        %v873 = vpack.c.b16 %v865, %v863
        %v874 = vpack.c.b16 %v866, %v864
        %v875 = vpack.c.b16 %v869, %v867
        %v876 = vpack.c.b16 %v870, %v868
        %v877 = vpack.c.b16 %v871, %v871
        %v878 = vpack.c.b16 %v872, %v872
        %vm879 = vcmask 1044480
        %v880 = vrot.slane %v873, 3
        %v881 = vrot.slane %v875, 3
        %v882 = vsel %vm879, %v880, %v881
        %v883 = vrot.slane %v874, 3
        %v884 = vrot.slane %v876, 3
        %v885 = vsel %vm879, %v883, %v884
        %v886 = vrot.slane %v877, 3
        %v887 = vsel %vm879, %v881, %v886
        %v888 = vrot.slane %v878, 3
        %v889 = vsel %vm879, %v884, %v888
        %894 = vst [vmem:[#allocation4 + $0x40] sm:$0xff] %v882
        %895 = vst [vmem:[#allocation4 + $0x48] sm:$0xff] %v885
        %896 = vst [vmem:[#allocation4 + $0x90] sm:$0xff] %v887
        %897 = vst [vmem:[#allocation4 + $0x98] sm:$0xff] %v889
        %v898 = vld [vmem:[#allocation4] sm:$0xff]
        %v899 = vld [vmem:[#allocation4 + $0x8] sm:$0xff]
        %v900 = vld [vmem:[#allocation4 + $0x10] sm:$0xff]
        %v901 = vld [vmem:[#allocation4 + $0x18] sm:$0xff]
        %v902 = vld [vmem:[#allocation4 + $0x20] sm:$0xff]
        %v903 = vld [vmem:[#allocation4 + $0x28] sm:$0xff]
        %v904 = vld [vmem:[#allocation4 + $0x30] sm:$0xff]
        %v905 = vld [vmem:[#allocation4 + $0x38] sm:$0xff]
        %v906 = vld [vmem:[#allocation4 + $0x40] sm:$0xff]
        %v907 = vld [vmem:[#allocation4 + $0x48] sm:$0xff]
        %v908 = vld [vmem:[#allocation4 + $0x50] sm:$0xff]
        %v909 = vld [vmem:[#allocation4 + $0x58] sm:$0xff]
        %v910 = vld [vmem:[#allocation4 + $0x60] sm:$0xff]
        %v911 = vld [vmem:[#allocation4 + $0x68] sm:$0xff]
        %v912 = vld [vmem:[#allocation4 + $0x70] sm:$0xff]
        %v913 = vld [vmem:[#allocation4 + $0x78] sm:$0xff]
        %v914 = vld [vmem:[#allocation4 + $0x80] sm:$0xff]
        %v915 = vld [vmem:[#allocation4 + $0x88] sm:$0xff]
        %v916 = vld [vmem:[#allocation4 + $0x90] sm:$0xff]
        %v917 = vld [vmem:[#allocation4 + $0x98] sm:$0xff]
        %v918 = vld [vmem:[#allocation12] sm:$0xff]
        %v919 = vld [vmem:[#allocation12 + $0x8] sm:$0xff]
        %v920 = vld [vmem:[#allocation12 + $0x10] sm:$0xff]
        %v921 = vld [vmem:[#allocation12 + $0x18] sm:$0xff]
        %v922 = vld [vmem:[#allocation12 + $0x20] sm:$0xff]
        %v923 = vld [vmem:[#allocation12 + $0x28] sm:$0xff]
        %v924 = vld [vmem:[#allocation12 + $0x30] sm:$0xff]
        %v925 = vld [vmem:[#allocation12 + $0x38] sm:$0xff]
        %v926 = vld [vmem:[#allocation12 + $0x40] sm:$0xff]
        %v927 = vld [vmem:[#allocation12 + $0x48] sm:$0xff]
        %v928 = vld [vmem:[#allocation12 + $0x50] sm:$0xff]
        %v929 = vld [vmem:[#allocation12 + $0x58] sm:$0xff]
        %v930 = vld [vmem:[#allocation12 + $0x60] sm:$0xff]
        %v931 = vld [vmem:[#allocation12 + $0x68] sm:$0xff]
        %v932 = vld [vmem:[#allocation12 + $0x70] sm:$0xff]
        %v933 = vld [vmem:[#allocation12 + $0x78] sm:$0xff]
        %v934 = vld [vmem:[#allocation12 + $0x80] sm:$0xff]
        %v935 = vld [vmem:[#allocation12 + $0x88] sm:$0xff]
        %v936 = vld [vmem:[#allocation12 + $0x90] sm:$0xff]
        %v937 = vld [vmem:[#allocation12 + $0x98] sm:$0xff]
        %v938 = vld [vmem:[#allocation12 + $0xa0] sm:$0xff]
        %v939 = vld [vmem:[#allocation12 + $0xa8] sm:$0xff]
        %v940 = vld [vmem:[#allocation12 + $0xb0] sm:$0xff]
        %v941 = vld [vmem:[#allocation12 + $0xb8] sm:$0xff]
        %v942 = vld [vmem:[#allocation12 + $0xc0] sm:$0xff]
        %v943 = vld [vmem:[#allocation12 + $0xc8] sm:$0xff]
        %v944 = vld [vmem:[#allocation12 + $0xd0] sm:$0xff]
        %v945 = vld [vmem:[#allocation12 + $0xd8] sm:$0xff]
        %v946 = vld [vmem:[#allocation12 + $0xe0] sm:$0xff]
        %v947 = vld [vmem:[#allocation12 + $0xe8] sm:$0xff]
        %v948 = vld [vmem:[#allocation12 + $0xf0] sm:$0xff]
        %v949 = vld [vmem:[#allocation12 + $0xf8] sm:$0xff]
        %v950 = vld [vmem:[#allocation12 + $0x100] sm:$0xff]
        %v951 = vld [vmem:[#allocation12 + $0x108] sm:$0xff]
        %v952 = vld [vmem:[#allocation12 + $0x110] sm:$0xff]
        %v953 = vld [vmem:[#allocation12 + $0x118] sm:$0xff]
        %v954 = vld [vmem:[#allocation12 + $0x120] sm:$0xff]
        %v955 = vld [vmem:[#allocation12 + $0x128] sm:$0xff]
        %v956 = vld [vmem:[#allocation12 + $0x130] sm:$0xff]
        %v957 = vld [vmem:[#allocation12 + $0x138] sm:$0xff]
        %v958 = vld [vmem:[#allocation12 + $0x140] sm:$0xff]
        %v959 = vld [vmem:[#allocation12 + $0x148] sm:$0xff]
        %v960 = vld [vmem:[#allocation12 + $0x150] sm:$0xff]
        %v961 = vld [vmem:[#allocation12 + $0x158] sm:$0xff]
        %v962 = vld [vmem:[#allocation12 + $0x160] sm:$0xff]
        %v963 = vld [vmem:[#allocation12 + $0x168] sm:$0xff]
        %v964 = vld [vmem:[#allocation12 + $0x170] sm:$0xff]
        %v965 = vld [vmem:[#allocation12 + $0x178] sm:$0xff]
        %v966 = vld [vmem:[#allocation12 + $0x180] sm:$0xff]
        %v967 = vld [vmem:[#allocation12 + $0x188] sm:$0xff]
        %v968 = vld [vmem:[#allocation12 + $0x190] sm:$0xff]
        %v969 = vld [vmem:[#allocation12 + $0x198] sm:$0xff]
        %v970 = vld [vmem:[#allocation12 + $0x1a0] sm:$0xff]
        %v971 = vld [vmem:[#allocation12 + $0x1a8] sm:$0xff]
        %v972 = vld [vmem:[#allocation12 + $0x1b0] sm:$0xff]
        %v973 = vld [vmem:[#allocation12 + $0x1b8] sm:$0xff]
        %v974 = vld [vmem:[#allocation12 + $0x1c0] sm:$0xff]
        %v975 = vld [vmem:[#allocation12 + $0x1c8] sm:$0xff]
        %v976 = vld [vmem:[#allocation12 + $0x1d0] sm:$0xff]
        %v977 = vld [vmem:[#allocation12 + $0x1d8] sm:$0xff]
        %v978 = vld [vmem:[#allocation12 + $0x1e0] sm:$0xff]
        %v979 = vld [vmem:[#allocation12 + $0x1e8] sm:$0xff]
        %v980 = vld [vmem:[#allocation12 + $0x1f0] sm:$0xff]
        %v981 = vld [vmem:[#allocation12 + $0x1f8] sm:$0xff]
        %v982 = vld [vmem:[#allocation12 + $0x200] sm:$0xff]
        %v983 = vld [vmem:[#allocation12 + $0x208] sm:$0xff]
        %v984 = vld [vmem:[#allocation12 + $0x210] sm:$0xff]
        %v985 = vld [vmem:[#allocation12 + $0x218] sm:$0xff]
        %v986 = vld [vmem:[#allocation12 + $0x220] sm:$0xff]
        %v987 = vld [vmem:[#allocation12 + $0x228] sm:$0xff]
        %v988 = vld [vmem:[#allocation12 + $0x230] sm:$0xff]
        %v989 = vld [vmem:[#allocation12 + $0x238] sm:$0xff]
        %v990 = vld [vmem:[#allocation12 + $0x240] sm:$0xff]
        %v991 = vld [vmem:[#allocation12 + $0x248] sm:$0xff]
        %v992 = vld [vmem:[#allocation12 + $0x250] sm:$0xff]
        %v993 = vld [vmem:[#allocation12 + $0x258] sm:$0xff]
        %v994 = vld [vmem:[#allocation12 + $0x260] sm:$0xff]
        %v995 = vld [vmem:[#allocation12 + $0x268] sm:$0xff]
        %v996 = vld [vmem:[#allocation12 + $0x270] sm:$0xff]
        %v997 = vld [vmem:[#allocation12 + $0x278] sm:$0xff]
        %v998 = vld [vmem:[#allocation12 + $0x280] sm:$0xff]
        %v999 = vld [vmem:[#allocation12 + $0x288] sm:$0xff]
        %v1000 = vld [vmem:[#allocation12 + $0x290] sm:$0xff]
        %v1001 = vld [vmem:[#allocation12 + $0x298] sm:$0xff]
        %v1002 = vld [vmem:[#allocation12 + $0x2a0] sm:$0xff]
        %v1003 = vld [vmem:[#allocation12 + $0x2a8] sm:$0xff]
        %v1004 = vld [vmem:[#allocation12 + $0x2b0] sm:$0xff]
        %v1005 = vld [vmem:[#allocation12 + $0x2b8] sm:$0xff]
        %v1006 = vld [vmem:[#allocation12 + $0x2c0] sm:$0xff]
        %v1007 = vld [vmem:[#allocation12 + $0x2c8] sm:$0xff]
        %v1008 = vld [vmem:[#allocation12 + $0x2d0] sm:$0xff]
        %v1009 = vld [vmem:[#allocation12 + $0x2d8] sm:$0xff]
        %v1010 = vld [vmem:[#allocation12 + $0x2e0] sm:$0xff]
        %v1011 = vld [vmem:[#allocation12 + $0x2e8] sm:$0xff]
        %v1012 = vld [vmem:[#allocation12 + $0x2f0] sm:$0xff]
        %v1013 = vld [vmem:[#allocation12 + $0x2f8] sm:$0xff]
        %v1014 = vld [vmem:[#allocation12 + $0x300] sm:$0xff]
        %v1015 = vld [vmem:[#allocation12 + $0x308] sm:$0xff]
        %v1016 = vld [vmem:[#allocation12 + $0x310] sm:$0xff]
        %v1017 = vld [vmem:[#allocation12 + $0x318] sm:$0xff]
        %v1018 = vld [vmem:[#allocation12 + $0x320] sm:$0xff]
        %v1019 = vld [vmem:[#allocation12 + $0x328] sm:$0xff]
        %v1020 = vld [vmem:[#allocation12 + $0x330] sm:$0xff]
        %v1021 = vld [vmem:[#allocation12 + $0x338] sm:$0xff]
        %v1022 = vld [vmem:[#allocation12 + $0x340] sm:$0xff]
        %v1023 = vld [vmem:[#allocation12 + $0x348] sm:$0xff]
        %v1024 = vld [vmem:[#allocation12 + $0x350] sm:$0xff]
        %v1025 = vld [vmem:[#allocation12 + $0x358] sm:$0xff]
        %v1026 = vld [vmem:[#allocation12 + $0x360] sm:$0xff]
        %v1027 = vld [vmem:[#allocation12 + $0x368] sm:$0xff]
        %v1028 = vld [vmem:[#allocation12 + $0x370] sm:$0xff]
        %v1029 = vld [vmem:[#allocation12 + $0x378] sm:$0xff]
        %v1030 = vld [vmem:[#allocation12 + $0x380] sm:$0xff]
        %v1031 = vld [vmem:[#allocation12 + $0x388] sm:$0xff]
        %v1032 = vld [vmem:[#allocation12 + $0x390] sm:$0xff]
        %v1033 = vld [vmem:[#allocation12 + $0x398] sm:$0xff]
        %v1034 = vld [vmem:[#allocation12 + $0x3a0] sm:$0xff]
        %v1035 = vld [vmem:[#allocation12 + $0x3a8] sm:$0xff]
        %v1036 = vld [vmem:[#allocation12 + $0x3b0] sm:$0xff]
        %v1037 = vld [vmem:[#allocation12 + $0x3b8] sm:$0xff]
        %v1038 = vld [vmem:[#allocation12 + $0x3c0] sm:$0xff]
        %v1039 = vld [vmem:[#allocation12 + $0x3c8] sm:$0xff]
        %v1040 = vld [vmem:[#allocation12 + $0x3d0] sm:$0xff]
        %v1041 = vld [vmem:[#allocation12 + $0x3d8] sm:$0xff]
        %v1042 = vld [vmem:[#allocation12 + $0x3e0] sm:$0xff]
        %v1043 = vld [vmem:[#allocation12 + $0x3e8] sm:$0xff]
        %v1044 = vld [vmem:[#allocation12 + $0x3f0] sm:$0xff]
        %v1045 = vld [vmem:[#allocation12 + $0x3f8] sm:$0xff]
        %v1046 = vld [vmem:[#allocation12 + $0x400] sm:$0xff]
        %v1047 = vld [vmem:[#allocation12 + $0x408] sm:$0xff]
        %v1048 = vld [vmem:[#allocation12 + $0x410] sm:$0xff]
        %v1049 = vld [vmem:[#allocation12 + $0x418] sm:$0xff]
        %v1050 = vld [vmem:[#allocation12 + $0x420] sm:$0xff]
        %v1051 = vld [vmem:[#allocation12 + $0x428] sm:$0xff]
        %v1052 = vld [vmem:[#allocation12 + $0x430] sm:$0xff]
        %v1053 = vld [vmem:[#allocation12 + $0x438] sm:$0xff]
        %v1054 = vld [vmem:[#allocation12 + $0x440] sm:$0xff]
        %v1055 = vld [vmem:[#allocation12 + $0x448] sm:$0xff]
        %v1056 = vld [vmem:[#allocation12 + $0x450] sm:$0xff]
        %v1057 = vld [vmem:[#allocation12 + $0x458] sm:$0xff]
        %v1058 = vld [vmem:[#allocation12 + $0x460] sm:$0xff]
        %v1059 = vld [vmem:[#allocation12 + $0x468] sm:$0xff]
        %v1060 = vld [vmem:[#allocation12 + $0x470] sm:$0xff]
        %v1061 = vld [vmem:[#allocation12 + $0x478] sm:$0xff]
        %v1062 = vld [vmem:[#allocation12 + $0x480] sm:$0xff]
        %v1063 = vld [vmem:[#allocation12 + $0x488] sm:$0xff]
        %v1064 = vld [vmem:[#allocation12 + $0x490] sm:$0xff]
        %v1065 = vld [vmem:[#allocation12 + $0x498] sm:$0xff]
        %v1066 = vld [vmem:[#allocation12 + $0x4a0] sm:$0xff]
        %v1067 = vld [vmem:[#allocation12 + $0x4a8] sm:$0xff]
        %v1068 = vld [vmem:[#allocation12 + $0x4b0] sm:$0xff]
        %v1069 = vld [vmem:[#allocation12 + $0x4b8] sm:$0xff]
        %v1070 = vld [vmem:[#allocation12 + $0x4c0] sm:$0xff]
        %v1071 = vld [vmem:[#allocation12 + $0x4c8] sm:$0xff]
        %v1072 = vld [vmem:[#allocation12 + $0x4d0] sm:$0xff]
        %v1073 = vld [vmem:[#allocation12 + $0x4d8] sm:$0xff]
        %v1074 = vld [vmem:[#allocation12 + $0x4e0] sm:$0xff]
        %v1075 = vld [vmem:[#allocation12 + $0x4e8] sm:$0xff]
        %v1076 = vld [vmem:[#allocation12 + $0x4f0] sm:$0xff]
        %v1077 = vld [vmem:[#allocation12 + $0x4f8] sm:$0xff]
        %v1078 = vld [vmem:[%s4] sm:$0x3]
        %v1080 = vlaneseq
        %v1081 = vshrl.u32 %v1080, 7
        %v1082 = vsub.s32 0, %v1081
        %v1083 = vrot.slane %v1078, %v1082
        %v1084 = vlaneseq
        %v1085 = vshrl.u32 %v1084, 7
        %v1086 = vsub.s32 1, %v1085
        %v1087 = vrot.slane %v1078, %v1086
        %v1250 = vunpack.c.l.b16 %v918
        %v1251 = vunpack.c.h.b16 %v918
        %v1252 = vunpack.c.l.b16 %v919
        %v1253 = vunpack.c.h.b16 %v919
        %v1254 = vunpack.c.l.b16 %v920
        %v1255 = vunpack.c.h.b16 %v920
        %v1256 = vunpack.c.l.b16 %v921
        %v1257 = vunpack.c.h.b16 %v921
        %v1258 = vunpack.c.l.b16 %v922
        %v1259 = vunpack.c.h.b16 %v922
        %v1260 = vunpack.c.l.b16 %v923
        %v1261 = vunpack.c.h.b16 %v923
        %v1262 = vunpack.c.l.b16 %v924
        %v1263 = vunpack.c.h.b16 %v924
        %v1264 = vunpack.c.l.b16 %v925
        %v1265 = vunpack.c.h.b16 %v925
        %v1266 = vunpack.c.l.b16 %v926
        %v1267 = vunpack.c.h.b16 %v926
        %v1268 = vunpack.c.l.b16 %v927
        %v1269 = vunpack.c.h.b16 %v927
        %v1270 = vunpack.c.l.b16 %v928
        %v1271 = vunpack.c.h.b16 %v928
        %v1272 = vunpack.c.l.b16 %v929
        %v1273 = vunpack.c.h.b16 %v929
        %v1274 = vunpack.c.l.b16 %v930
        %v1275 = vunpack.c.h.b16 %v930
        %v1276 = vunpack.c.l.b16 %v931
        %v1277 = vunpack.c.h.b16 %v931
        %v1278 = vunpack.c.l.b16 %v932
        %v1279 = vunpack.c.h.b16 %v932
        %v1280 = vunpack.c.l.b16 %v933
        %v1281 = vunpack.c.h.b16 %v933
        %v1282 = vunpack.c.l.b16 %v934
        %v1283 = vunpack.c.h.b16 %v934
        %v1284 = vunpack.c.l.b16 %v935
        %v1285 = vunpack.c.h.b16 %v935
        %v1286 = vunpack.c.l.b16 %v936
        %v1287 = vunpack.c.h.b16 %v936
        %v1288 = vunpack.c.l.b16 %v937
        %v1289 = vunpack.c.h.b16 %v937
        %v1290 = vunpack.c.l.b16 %v938
        %v1291 = vunpack.c.h.b16 %v938
        %v1292 = vunpack.c.l.b16 %v939
        %v1293 = vunpack.c.h.b16 %v939
        %v1294 = vunpack.c.l.b16 %v940
        %v1295 = vunpack.c.h.b16 %v940
        %v1296 = vunpack.c.l.b16 %v941
        %v1297 = vunpack.c.h.b16 %v941
        %v1298 = vunpack.c.l.b16 %v942
        %v1299 = vunpack.c.h.b16 %v942
        %v1300 = vunpack.c.l.b16 %v943
        %v1301 = vunpack.c.h.b16 %v943
        %v1302 = vunpack.c.l.b16 %v944
        %v1303 = vunpack.c.h.b16 %v944
        %v1304 = vunpack.c.l.b16 %v945
        %v1305 = vunpack.c.h.b16 %v945
        %v1306 = vunpack.c.l.b16 %v946
        %v1307 = vunpack.c.h.b16 %v946
        %v1308 = vunpack.c.l.b16 %v947
        %v1309 = vunpack.c.h.b16 %v947
        %v1310 = vunpack.c.l.b16 %v948
        %v1311 = vunpack.c.h.b16 %v948
        %v1312 = vunpack.c.l.b16 %v949
        %v1313 = vunpack.c.h.b16 %v949
        %v1314 = vunpack.c.l.b16 %v950
        %v1315 = vunpack.c.h.b16 %v950
        %v1316 = vunpack.c.l.b16 %v951
        %v1317 = vunpack.c.h.b16 %v951
        %v1318 = vunpack.c.l.b16 %v952
        %v1319 = vunpack.c.h.b16 %v952
        %v1320 = vunpack.c.l.b16 %v953
        %v1321 = vunpack.c.h.b16 %v953
        %v1322 = vunpack.c.l.b16 %v954
        %v1323 = vunpack.c.h.b16 %v954
        %v1324 = vunpack.c.l.b16 %v955
        %v1325 = vunpack.c.h.b16 %v955
        %v1326 = vunpack.c.l.b16 %v956
        %v1327 = vunpack.c.h.b16 %v956
        %v1328 = vunpack.c.l.b16 %v957
        %v1329 = vunpack.c.h.b16 %v957
        %v1330 = vunpack.c.l.b16 %v958
        %v1331 = vunpack.c.h.b16 %v958
        %v1332 = vunpack.c.l.b16 %v959
        %v1333 = vunpack.c.h.b16 %v959
        %v1334 = vunpack.c.l.b16 %v960
        %v1335 = vunpack.c.h.b16 %v960
        %v1336 = vunpack.c.l.b16 %v961
        %v1337 = vunpack.c.h.b16 %v961
        %v1338 = vunpack.c.l.b16 %v962
        %v1339 = vunpack.c.h.b16 %v962
        %v1340 = vunpack.c.l.b16 %v963
        %v1341 = vunpack.c.h.b16 %v963
        %v1342 = vunpack.c.l.b16 %v964
        %v1343 = vunpack.c.h.b16 %v964
        %v1344 = vunpack.c.l.b16 %v965
        %v1345 = vunpack.c.h.b16 %v965
        %v1346 = vunpack.c.l.b16 %v966
        %v1347 = vunpack.c.h.b16 %v966
        %v1348 = vunpack.c.l.b16 %v967
        %v1349 = vunpack.c.h.b16 %v967
        %v1350 = vunpack.c.l.b16 %v968
        %v1351 = vunpack.c.h.b16 %v968
        %v1352 = vunpack.c.l.b16 %v969
        %v1353 = vunpack.c.h.b16 %v969
        %v1354 = vunpack.c.l.b16 %v970
        %v1355 = vunpack.c.h.b16 %v970
        %v1356 = vunpack.c.l.b16 %v971
        %v1357 = vunpack.c.h.b16 %v971
        %v1358 = vunpack.c.l.b16 %v972
        %v1359 = vunpack.c.h.b16 %v972
        %v1360 = vunpack.c.l.b16 %v973
        %v1361 = vunpack.c.h.b16 %v973
        %v1362 = vunpack.c.l.b16 %v974
        %v1363 = vunpack.c.h.b16 %v974
        %v1364 = vunpack.c.l.b16 %v975
        %v1365 = vunpack.c.h.b16 %v975
        %v1366 = vunpack.c.l.b16 %v976
        %v1367 = vunpack.c.h.b16 %v976
        %v1368 = vunpack.c.l.b16 %v977
        %v1369 = vunpack.c.h.b16 %v977
        %v1370 = vunpack.c.l.b16 %v978
        %v1371 = vunpack.c.h.b16 %v978
        %v1372 = vunpack.c.l.b16 %v979
        %v1373 = vunpack.c.h.b16 %v979
        %v1374 = vunpack.c.l.b16 %v980
        %v1375 = vunpack.c.h.b16 %v980
        %v1376 = vunpack.c.l.b16 %v981
        %v1377 = vunpack.c.h.b16 %v981
        %v1378 = vunpack.c.l.b16 %v982
        %v1379 = vunpack.c.h.b16 %v982
        %v1380 = vunpack.c.l.b16 %v983
        %v1381 = vunpack.c.h.b16 %v983
        %v1382 = vunpack.c.l.b16 %v984
        %v1383 = vunpack.c.h.b16 %v984
        %v1384 = vunpack.c.l.b16 %v985
        %v1385 = vunpack.c.h.b16 %v985
        %v1386 = vunpack.c.l.b16 %v986
        %v1387 = vunpack.c.h.b16 %v986
        %v1388 = vunpack.c.l.b16 %v987
        %v1389 = vunpack.c.h.b16 %v987
        %v1390 = vunpack.c.l.b16 %v988
        %v1391 = vunpack.c.h.b16 %v988
        %v1392 = vunpack.c.l.b16 %v989
        %v1393 = vunpack.c.h.b16 %v989
        %v1394 = vunpack.c.l.b16 %v990
        %v1395 = vunpack.c.h.b16 %v990
        %v1396 = vunpack.c.l.b16 %v991
        %v1397 = vunpack.c.h.b16 %v991
        %v1398 = vunpack.c.l.b16 %v992
        %v1399 = vunpack.c.h.b16 %v992
        %v1400 = vunpack.c.l.b16 %v993
        %v1401 = vunpack.c.h.b16 %v993
        %v1402 = vunpack.c.l.b16 %v994
        %v1403 = vunpack.c.h.b16 %v994
        %v1404 = vunpack.c.l.b16 %v995
        %v1405 = vunpack.c.h.b16 %v995
        %v1406 = vunpack.c.l.b16 %v996
        %v1407 = vunpack.c.h.b16 %v996
        %v1408 = vunpack.c.l.b16 %v997
        %v1409 = vunpack.c.h.b16 %v997
        %v1410 = vunpack.c.l.b16 %v998
        %v1411 = vunpack.c.h.b16 %v998
        %v1412 = vunpack.c.l.b16 %v999
        %v1413 = vunpack.c.h.b16 %v999
        %v1414 = vunpack.c.l.b16 %v1000
        %v1415 = vunpack.c.h.b16 %v1000
        %v1416 = vunpack.c.l.b16 %v1001
        %v1417 = vunpack.c.h.b16 %v1001
        %v1418 = vunpack.c.l.b16 %v1002
        %v1419 = vunpack.c.h.b16 %v1002
        %v1420 = vunpack.c.l.b16 %v1003
        %v1421 = vunpack.c.h.b16 %v1003
        %v1422 = vunpack.c.l.b16 %v1004
        %v1423 = vunpack.c.h.b16 %v1004
        %v1424 = vunpack.c.l.b16 %v1005
        %v1425 = vunpack.c.h.b16 %v1005
        %v1426 = vunpack.c.l.b16 %v1006
        %v1427 = vunpack.c.h.b16 %v1006
        %v1428 = vunpack.c.l.b16 %v1007
        %v1429 = vunpack.c.h.b16 %v1007
        %v1430 = vunpack.c.l.b16 %v1008
        %v1431 = vunpack.c.h.b16 %v1008
        %v1432 = vunpack.c.l.b16 %v1009
        %v1433 = vunpack.c.h.b16 %v1009
        %v1434 = vunpack.c.l.b16 %v1010
        %v1435 = vunpack.c.h.b16 %v1010
        %v1436 = vunpack.c.l.b16 %v1011
        %v1437 = vunpack.c.h.b16 %v1011
        %v1438 = vunpack.c.l.b16 %v1012
        %v1439 = vunpack.c.h.b16 %v1012
        %v1440 = vunpack.c.l.b16 %v1013
        %v1441 = vunpack.c.h.b16 %v1013
        %v1442 = vunpack.c.l.b16 %v1014
        %v1443 = vunpack.c.h.b16 %v1014
        %v1444 = vunpack.c.l.b16 %v1015
        %v1445 = vunpack.c.h.b16 %v1015
        %v1446 = vunpack.c.l.b16 %v1016
        %v1447 = vunpack.c.h.b16 %v1016
        %v1448 = vunpack.c.l.b16 %v1017
        %v1449 = vunpack.c.h.b16 %v1017
        %v1450 = vunpack.c.l.b16 %v1018
        %v1451 = vunpack.c.h.b16 %v1018
        %v1452 = vunpack.c.l.b16 %v1019
        %v1453 = vunpack.c.h.b16 %v1019
        %v1454 = vunpack.c.l.b16 %v1020
        %v1455 = vunpack.c.h.b16 %v1020
        %v1456 = vunpack.c.l.b16 %v1021
        %v1457 = vunpack.c.h.b16 %v1021
        %v1458 = vunpack.c.l.b16 %v1022
        %v1459 = vunpack.c.h.b16 %v1022
        %v1460 = vunpack.c.l.b16 %v1023
        %v1461 = vunpack.c.h.b16 %v1023
        %v1462 = vunpack.c.l.b16 %v1024
        %v1463 = vunpack.c.h.b16 %v1024
        %v1464 = vunpack.c.l.b16 %v1025
        %v1465 = vunpack.c.h.b16 %v1025
        %v1466 = vunpack.c.l.b16 %v1026
        %v1467 = vunpack.c.h.b16 %v1026
        %v1468 = vunpack.c.l.b16 %v1027
        %v1469 = vunpack.c.h.b16 %v1027
        %v1470 = vunpack.c.l.b16 %v1028
        %v1471 = vunpack.c.h.b16 %v1028
        %v1472 = vunpack.c.l.b16 %v1029
        %v1473 = vunpack.c.h.b16 %v1029
        %v1474 = vunpack.c.l.b16 %v1030
        %v1475 = vunpack.c.h.b16 %v1030
        %v1476 = vunpack.c.l.b16 %v1031
        %v1477 = vunpack.c.h.b16 %v1031
        %v1478 = vunpack.c.l.b16 %v1032
        %v1479 = vunpack.c.h.b16 %v1032
        %v1480 = vunpack.c.l.b16 %v1033
        %v1481 = vunpack.c.h.b16 %v1033
        %v1482 = vunpack.c.l.b16 %v1034
        %v1483 = vunpack.c.h.b16 %v1034
        %v1484 = vunpack.c.l.b16 %v1035
        %v1485 = vunpack.c.h.b16 %v1035
        %v1486 = vunpack.c.l.b16 %v1036
        %v1487 = vunpack.c.h.b16 %v1036
        %v1488 = vunpack.c.l.b16 %v1037
        %v1489 = vunpack.c.h.b16 %v1037
        %v1490 = vunpack.c.l.b16 %v1038
        %v1491 = vunpack.c.h.b16 %v1038
        %v1492 = vunpack.c.l.b16 %v1039
        %v1493 = vunpack.c.h.b16 %v1039
        %v1494 = vunpack.c.l.b16 %v1040
        %v1495 = vunpack.c.h.b16 %v1040
        %v1496 = vunpack.c.l.b16 %v1041
        %v1497 = vunpack.c.h.b16 %v1041
        %v1498 = vunpack.c.l.b16 %v1042
        %v1499 = vunpack.c.h.b16 %v1042
        %v1500 = vunpack.c.l.b16 %v1043
        %v1501 = vunpack.c.h.b16 %v1043
        %v1502 = vunpack.c.l.b16 %v1044
        %v1503 = vunpack.c.h.b16 %v1044
        %v1504 = vunpack.c.l.b16 %v1045
        %v1505 = vunpack.c.h.b16 %v1045
        %v1506 = vunpack.c.l.b16 %v1046
        %v1507 = vunpack.c.h.b16 %v1046
        %v1508 = vunpack.c.l.b16 %v1047
        %v1509 = vunpack.c.h.b16 %v1047
        %v1510 = vunpack.c.l.b16 %v1048
        %v1511 = vunpack.c.h.b16 %v1048
        %v1512 = vunpack.c.l.b16 %v1049
        %v1513 = vunpack.c.h.b16 %v1049
        %v1514 = vunpack.c.l.b16 %v1050
        %v1515 = vunpack.c.h.b16 %v1050
        %v1516 = vunpack.c.l.b16 %v1051
        %v1517 = vunpack.c.h.b16 %v1051
        %v1518 = vunpack.c.l.b16 %v1052
        %v1519 = vunpack.c.h.b16 %v1052
        %v1520 = vunpack.c.l.b16 %v1053
        %v1521 = vunpack.c.h.b16 %v1053
        %v1522 = vunpack.c.l.b16 %v1054
        %v1523 = vunpack.c.h.b16 %v1054
        %v1524 = vunpack.c.l.b16 %v1055
        %v1525 = vunpack.c.h.b16 %v1055
        %v1526 = vunpack.c.l.b16 %v1056
        %v1527 = vunpack.c.h.b16 %v1056
        %v1528 = vunpack.c.l.b16 %v1057
        %v1529 = vunpack.c.h.b16 %v1057
        %v1530 = vunpack.c.l.b16 %v1058
        %v1531 = vunpack.c.h.b16 %v1058
        %v1532 = vunpack.c.l.b16 %v1059
        %v1533 = vunpack.c.h.b16 %v1059
        %v1534 = vunpack.c.l.b16 %v1060
        %v1535 = vunpack.c.h.b16 %v1060
        %v1536 = vunpack.c.l.b16 %v1061
        %v1537 = vunpack.c.h.b16 %v1061
        %v1538 = vunpack.c.l.b16 %v1062
        %v1539 = vunpack.c.h.b16 %v1062
        %v1540 = vunpack.c.l.b16 %v1063
        %v1541 = vunpack.c.h.b16 %v1063
        %v1542 = vunpack.c.l.b16 %v1064
        %v1543 = vunpack.c.h.b16 %v1064
        %v1544 = vunpack.c.l.b16 %v1065
        %v1545 = vunpack.c.h.b16 %v1065
        %v1546 = vunpack.c.l.b16 %v1066
        %v1547 = vunpack.c.h.b16 %v1066
        %v1548 = vunpack.c.l.b16 %v1067
        %v1549 = vunpack.c.h.b16 %v1067
        %v1550 = vunpack.c.l.b16 %v1068
        %v1551 = vunpack.c.h.b16 %v1068
        %v1552 = vunpack.c.l.b16 %v1069
        %v1553 = vunpack.c.h.b16 %v1069
        %v1554 = vunpack.c.l.b16 %v1070
        %v1555 = vunpack.c.h.b16 %v1070
        %v1556 = vunpack.c.l.b16 %v1071
        %v1557 = vunpack.c.h.b16 %v1071
        %v1558 = vunpack.c.l.b16 %v1072
        %v1559 = vunpack.c.h.b16 %v1072
        %v1560 = vunpack.c.l.b16 %v1073
        %v1561 = vunpack.c.h.b16 %v1073
        %v1562 = vunpack.c.l.b16 %v1074
        %v1563 = vunpack.c.h.b16 %v1074
        %v1564 = vunpack.c.l.b16 %v1075
        %v1565 = vunpack.c.h.b16 %v1075
        %v1566 = vunpack.c.l.b16 %v1076
        %v1567 = vunpack.c.h.b16 %v1076
        %v1568 = vunpack.c.l.b16 %v1077
        %v1569 = vunpack.c.h.b16 %v1077
        %v1570 = vpack.c.b16 %v1252, %v1250
        %v1571 = vpack.c.b16 %v1253, %v1251
        %v1572 = vpack.c.b16 %v1256, %v1254
        %v1573 = vpack.c.b16 %v1257, %v1255
        %v1574 = vpack.c.b16 %v1260, %v1258
        %v1575 = vpack.c.b16 %v1261, %v1259
        %v1576 = vpack.c.b16 %v1264, %v1262
        %v1577 = vpack.c.b16 %v1265, %v1263
        %v1578 = vpack.c.b16 %v1268, %v1266
        %v1579 = vpack.c.b16 %v1269, %v1267
        %v1580 = vpack.c.b16 %v1272, %v1270
        %v1581 = vpack.c.b16 %v1273, %v1271
        %v1582 = vpack.c.b16 %v1276, %v1274
        %v1583 = vpack.c.b16 %v1277, %v1275
        %v1584 = vpack.c.b16 %v1280, %v1278
        %v1585 = vpack.c.b16 %v1281, %v1279
        %v1586 = vpack.c.b16 %v1284, %v1282
        %v1587 = vpack.c.b16 %v1285, %v1283
        %v1588 = vpack.c.b16 %v1288, %v1286
        %v1589 = vpack.c.b16 %v1289, %v1287
        %v1590 = vpack.c.b16 %v1292, %v1290
        %v1591 = vpack.c.b16 %v1293, %v1291
        %v1592 = vpack.c.b16 %v1296, %v1294
        %v1593 = vpack.c.b16 %v1297, %v1295
        %v1594 = vpack.c.b16 %v1300, %v1298
        %v1595 = vpack.c.b16 %v1301, %v1299
        %v1596 = vpack.c.b16 %v1304, %v1302
        %v1597 = vpack.c.b16 %v1305, %v1303
        %v1598 = vpack.c.b16 %v1308, %v1306
        %v1599 = vpack.c.b16 %v1309, %v1307
        %v1600 = vpack.c.b16 %v1312, %v1310
        %v1601 = vpack.c.b16 %v1313, %v1311
        %v1602 = vpack.c.b16 %v1316, %v1314
        %v1603 = vpack.c.b16 %v1317, %v1315
        %v1604 = vpack.c.b16 %v1320, %v1318
        %v1605 = vpack.c.b16 %v1321, %v1319
        %v1606 = vpack.c.b16 %v1324, %v1322
        %v1607 = vpack.c.b16 %v1325, %v1323
        %v1608 = vpack.c.b16 %v1328, %v1326
        %v1609 = vpack.c.b16 %v1329, %v1327
        %v1610 = vpack.c.b16 %v1332, %v1330
        %v1611 = vpack.c.b16 %v1333, %v1331
        %v1612 = vpack.c.b16 %v1336, %v1334
        %v1613 = vpack.c.b16 %v1337, %v1335
        %v1614 = vpack.c.b16 %v1340, %v1338
        %v1615 = vpack.c.b16 %v1341, %v1339
        %v1616 = vpack.c.b16 %v1344, %v1342
        %v1617 = vpack.c.b16 %v1345, %v1343
        %v1618 = vpack.c.b16 %v1348, %v1346
        %v1619 = vpack.c.b16 %v1349, %v1347
        %v1620 = vpack.c.b16 %v1352, %v1350
        %v1621 = vpack.c.b16 %v1353, %v1351
        %v1622 = vpack.c.b16 %v1356, %v1354
        %v1623 = vpack.c.b16 %v1357, %v1355
        %v1624 = vpack.c.b16 %v1360, %v1358
        %v1625 = vpack.c.b16 %v1361, %v1359
        %v1626 = vpack.c.b16 %v1364, %v1362
        %v1627 = vpack.c.b16 %v1365, %v1363
        %v1628 = vpack.c.b16 %v1368, %v1366
        %v1629 = vpack.c.b16 %v1369, %v1367
        %v1630 = vpack.c.b16 %v1372, %v1370
        %v1631 = vpack.c.b16 %v1373, %v1371
        %v1632 = vpack.c.b16 %v1376, %v1374
        %v1633 = vpack.c.b16 %v1377, %v1375
        %v1634 = vpack.c.b16 %v1380, %v1378
        %v1635 = vpack.c.b16 %v1381, %v1379
        %v1636 = vpack.c.b16 %v1384, %v1382
        %v1637 = vpack.c.b16 %v1385, %v1383
        %v1638 = vpack.c.b16 %v1388, %v1386
        %v1639 = vpack.c.b16 %v1389, %v1387
        %v1640 = vpack.c.b16 %v1392, %v1390
        %v1641 = vpack.c.b16 %v1393, %v1391
        %v1642 = vpack.c.b16 %v1396, %v1394
        %v1643 = vpack.c.b16 %v1397, %v1395
        %v1644 = vpack.c.b16 %v1400, %v1398
        %v1645 = vpack.c.b16 %v1401, %v1399
        %v1646 = vpack.c.b16 %v1404, %v1402
        %v1647 = vpack.c.b16 %v1405, %v1403
        %v1648 = vpack.c.b16 %v1408, %v1406
        %v1649 = vpack.c.b16 %v1409, %v1407
        %v1650 = vpack.c.b16 %v1412, %v1410
        %v1651 = vpack.c.b16 %v1413, %v1411
        %v1652 = vpack.c.b16 %v1416, %v1414
        %v1653 = vpack.c.b16 %v1417, %v1415
        %v1654 = vpack.c.b16 %v1420, %v1418
        %v1655 = vpack.c.b16 %v1421, %v1419
        %v1656 = vpack.c.b16 %v1424, %v1422
        %v1657 = vpack.c.b16 %v1425, %v1423
        %v1658 = vpack.c.b16 %v1428, %v1426
        %v1659 = vpack.c.b16 %v1429, %v1427
        %v1660 = vpack.c.b16 %v1432, %v1430
        %v1661 = vpack.c.b16 %v1433, %v1431
        %v1662 = vpack.c.b16 %v1436, %v1434
        %v1663 = vpack.c.b16 %v1437, %v1435
        %v1664 = vpack.c.b16 %v1440, %v1438
        %v1665 = vpack.c.b16 %v1441, %v1439
        %v1666 = vpack.c.b16 %v1444, %v1442
        %v1667 = vpack.c.b16 %v1445, %v1443
        %v1668 = vpack.c.b16 %v1448, %v1446
        %v1669 = vpack.c.b16 %v1449, %v1447
        %v1670 = vpack.c.b16 %v1452, %v1450
        %v1671 = vpack.c.b16 %v1453, %v1451
        %v1672 = vpack.c.b16 %v1456, %v1454
        %v1673 = vpack.c.b16 %v1457, %v1455
        %v1674 = vpack.c.b16 %v1460, %v1458
        %v1675 = vpack.c.b16 %v1461, %v1459
        %v1676 = vpack.c.b16 %v1464, %v1462
        %v1677 = vpack.c.b16 %v1465, %v1463
        %v1678 = vpack.c.b16 %v1468, %v1466
        %v1679 = vpack.c.b16 %v1469, %v1467
        %v1680 = vpack.c.b16 %v1472, %v1470
        %v1681 = vpack.c.b16 %v1473, %v1471
        %v1682 = vpack.c.b16 %v1476, %v1474
        %v1683 = vpack.c.b16 %v1477, %v1475
        %v1684 = vpack.c.b16 %v1480, %v1478
        %v1685 = vpack.c.b16 %v1481, %v1479
        %v1686 = vpack.c.b16 %v1484, %v1482
        %v1687 = vpack.c.b16 %v1485, %v1483
        %v1688 = vpack.c.b16 %v1488, %v1486
        %v1689 = vpack.c.b16 %v1489, %v1487
        %v1690 = vpack.c.b16 %v1492, %v1490
        %v1691 = vpack.c.b16 %v1493, %v1491
        %v1692 = vpack.c.b16 %v1496, %v1494
        %v1693 = vpack.c.b16 %v1497, %v1495
        %v1694 = vpack.c.b16 %v1500, %v1498
        %v1695 = vpack.c.b16 %v1501, %v1499
        %v1696 = vpack.c.b16 %v1504, %v1502
        %v1697 = vpack.c.b16 %v1505, %v1503
        %v1698 = vpack.c.b16 %v1508, %v1506
        %v1699 = vpack.c.b16 %v1509, %v1507
        %v1700 = vpack.c.b16 %v1512, %v1510
        %v1701 = vpack.c.b16 %v1513, %v1511
        %v1702 = vpack.c.b16 %v1516, %v1514
        %v1703 = vpack.c.b16 %v1517, %v1515
        %v1704 = vpack.c.b16 %v1520, %v1518
        %v1705 = vpack.c.b16 %v1521, %v1519
        %v1706 = vpack.c.b16 %v1524, %v1522
        %v1707 = vpack.c.b16 %v1525, %v1523
        %v1708 = vpack.c.b16 %v1528, %v1526
        %v1709 = vpack.c.b16 %v1529, %v1527
        %v1710 = vpack.c.b16 %v1532, %v1530
        %v1711 = vpack.c.b16 %v1533, %v1531
        %v1712 = vpack.c.b16 %v1536, %v1534
        %v1713 = vpack.c.b16 %v1537, %v1535
        %v1714 = vpack.c.b16 %v1540, %v1538
        %v1715 = vpack.c.b16 %v1541, %v1539
        %v1716 = vpack.c.b16 %v1544, %v1542
        %v1717 = vpack.c.b16 %v1545, %v1543
        %v1718 = vpack.c.b16 %v1548, %v1546
        %v1719 = vpack.c.b16 %v1549, %v1547
        %v1720 = vpack.c.b16 %v1552, %v1550
        %v1721 = vpack.c.b16 %v1553, %v1551
        %v1722 = vpack.c.b16 %v1556, %v1554
        %v1723 = vpack.c.b16 %v1557, %v1555
        %v1724 = vpack.c.b16 %v1560, %v1558
        %v1725 = vpack.c.b16 %v1561, %v1559
        %v1726 = vpack.c.b16 %v1564, %v1562
        %v1727 = vpack.c.b16 %v1565, %v1563
        %v1728 = vpack.c.b16 %v1568, %v1566
        %v1729 = vpack.c.b16 %v1569, %v1567
        %1890 = vmatprep.subr.bf16.mxu0 %v1571
        %1891 = vmatpush1.bf16.msra.mxu0 %v1570
        %1892 = vmatprep.subr.bf16.mxu0 %v1573
        %1893 = vmatpush1.bf16.msra.mxu0 %v1572
        %1894 = vmatprep.subr.bf16.mxu0 %v1575
        %1895 = vmatpush1.bf16.msra.mxu0 %v1574
        %1896 = vmatprep.subr.bf16.mxu0 %v1577
        %1897 = vmatpush1.bf16.msra.mxu0 %v1576
        %1898 = vmatprep.subr.bf16.mxu0 %v1579
        %1899 = vmatpush1.bf16.msra.mxu0 %v1578
        %1900 = vmatprep.subr.bf16.mxu0 %v1581
        %1901 = vmatpush1.bf16.msra.mxu0 %v1580
        %1902 = vmatprep.subr.bf16.mxu0 %v1583
        %1903 = vmatpush1.bf16.msra.mxu0 %v1582
        %1904 = vmatprep.subr.bf16.mxu0 %v1585
        %1905 = vmatpush1.bf16.msra.mxu0 %v1584
        %1906 = vmatprep.subr.bf16.mxu0 %v1587
        %1907 = vmatpush1.bf16.msra.mxu0 %v1586
        %1908 = vmatprep.subr.bf16.mxu0 %v1589
        %1909 = vmatpush1.bf16.msra.mxu0 %v1588
        %1910 = vmatprep.subr.bf16.mxu0 %v1591
        %1911 = vmatpush1.bf16.msra.mxu0 %v1590
        %1912 = vmatprep.subr.bf16.mxu0 %v1593
        %1913 = vmatpush1.bf16.msra.mxu0 %v1592
        %1914 = vmatprep.subr.bf16.mxu0 %v1595
        %1915 = vmatpush1.bf16.msra.mxu0 %v1594
        %1916 = vmatprep.subr.bf16.mxu0 %v1597
        %1917 = vmatpush1.bf16.msra.mxu0 %v1596
        %1918 = vmatprep.subr.bf16.mxu0 %v1599
        %1919 = vmatpush1.bf16.msra.mxu0 %v1598
        %1920 = vmatprep.subr.bf16.mxu0 %v1601
        %1921 = vmatpush1.bf16.msra.mxu0 %v1600
        %1922 = vmatprep.mubr.bf16.mxu0 %v899
        %1923 = vmatmul.mubr.bf16.gmra.mrb[0].mxu0 %v898
        %v1924 = vpop.f32.mrb[0].mxu0
        %v1925 = vadd.f32 %v1083, %v1924
        %v1926 = vpop.f32.mrb[0].mxu0
        %v1927 = vadd.f32 %v1087, %v1926
        %v1928 = vpop.f32.mrb[0].mxu0
        %v1929 = vadd.f32 %v1083, %v1928
        %v1930 = vpop.f32.mrb[0].mxu0
        %v1931 = vadd.f32 %v1087, %v1930
        %1932 = vmatprep.mubr.bf16.mxu0 %v909
        %1933 = vmatmul.mubr.bf16.gmra.mrb[0].mxu0 %v908
        %v1934 = vpop.f32.mrb[0].mxu0
        %v1935 = vadd.f32 %v1083, %v1934
        %v1936 = vpop.f32.mrb[0].mxu0
        %v1937 = vadd.f32 %v1087, %v1936
        %v1938 = vpop.f32.mrb[0].mxu0
        %v1939 = vadd.f32 %v1083, %v1938
        %v1940 = vpop.f32.mrb[0].mxu0
        %v1941 = vadd.f32 %v1087, %v1940
        %1942 = vdwg.mxu0
        %1943 = vmatprep.subr.bf16.mxu0 %v1603
        %1944 = vmatpush1.bf16.msra.mxu0 %v1602
        %1945 = vmatprep.subr.bf16.mxu0 %v1605
        %1946 = vmatpush1.bf16.msra.mxu0 %v1604
        %1947 = vmatprep.subr.bf16.mxu0 %v1607
        %1948 = vmatpush1.bf16.msra.mxu0 %v1606
        %1949 = vmatprep.subr.bf16.mxu0 %v1609
        %1950 = vmatpush1.bf16.msra.mxu0 %v1608
        %1951 = vmatprep.subr.bf16.mxu0 %v1611
        %1952 = vmatpush1.bf16.msra.mxu0 %v1610
        %1953 = vmatprep.subr.bf16.mxu0 %v1613
        %1954 = vmatpush1.bf16.msra.mxu0 %v1612
        %1955 = vmatprep.subr.bf16.mxu0 %v1615
        %1956 = vmatpush1.bf16.msra.mxu0 %v1614
        %1957 = vmatprep.subr.bf16.mxu0 %v1617
        %1958 = vmatpush1.bf16.msra.mxu0 %v1616
        %1959 = vmatprep.subr.bf16.mxu0 %v1619
        %1960 = vmatpush1.bf16.msra.mxu0 %v1618
        %1961 = vmatprep.subr.bf16.mxu0 %v1621
        %1962 = vmatpush1.bf16.msra.mxu0 %v1620
        %1963 = vmatprep.subr.bf16.mxu0 %v1623
        %1964 = vmatpush1.bf16.msra.mxu0 %v1622
        %1965 = vmatprep.subr.bf16.mxu0 %v1625
        %1966 = vmatpush1.bf16.msra.mxu0 %v1624
        %1967 = vmatprep.subr.bf16.mxu0 %v1627
        %1968 = vmatpush1.bf16.msra.mxu0 %v1626
        %1969 = vmatprep.subr.bf16.mxu0 %v1629
        %1970 = vmatpush1.bf16.msra.mxu0 %v1628
        %1971 = vmatprep.subr.bf16.mxu0 %v1631
        %1972 = vmatpush1.bf16.msra.mxu0 %v1630
        %1973 = vmatprep.subr.bf16.mxu0 %v1633
        %1974 = vmatpush1.bf16.msra.mxu0 %v1632
        %1975 = vmatprep.mubr.bf16.mxu0 %v901
        %1976 = vmatmul.mubr.bf16.gmra.mrb[0].mxu0 %v900
        %v1977 = vpop.f32.mrb[0].mxu0
        %v1978 = vadd.f32 %v1925, %v1977
        %v1979 = vpop.f32.mrb[0].mxu0
        %v1980 = vadd.f32 %v1927, %v1979
        %v1981 = vpop.f32.mrb[0].mxu0
        %v1982 = vadd.f32 %v1929, %v1981
        %v1983 = vpop.f32.mrb[0].mxu0
        %v1984 = vadd.f32 %v1931, %v1983
        %1985 = vmatprep.mubr.bf16.mxu0 %v911
        %1986 = vmatmul.mubr.bf16.gmra.mrb[0].mxu0 %v910
        %v1987 = vpop.f32.mrb[0].mxu0
        %v1988 = vadd.f32 %v1935, %v1987
        %v1989 = vpop.f32.mrb[0].mxu0
        %v1990 = vadd.f32 %v1937, %v1989
        %v1991 = vpop.f32.mrb[0].mxu0
        %v1992 = vadd.f32 %v1939, %v1991
        %v1993 = vpop.f32.mrb[0].mxu0
        %v1994 = vadd.f32 %v1941, %v1993
        %1995 = vdwg.mxu0
        %1996 = vmatprep.subr.bf16.mxu0 %v1635
        %1997 = vmatpush1.bf16.msra.mxu0 %v1634
        %1998 = vmatprep.subr.bf16.mxu0 %v1637
        %1999 = vmatpush1.bf16.msra.mxu0 %v1636
        %2000 = vmatprep.subr.bf16.mxu0 %v1639
        %2001 = vmatpush1.bf16.msra.mxu0 %v1638
        %2002 = vmatprep.subr.bf16.mxu0 %v1641
        %2003 = vmatpush1.bf16.msra.mxu0 %v1640
        %2004 = vmatprep.subr.bf16.mxu0 %v1643
        %2005 = vmatpush1.bf16.msra.mxu0 %v1642
        %2006 = vmatprep.subr.bf16.mxu0 %v1645
        %2007 = vmatpush1.bf16.msra.mxu0 %v1644
        %2008 = vmatprep.subr.bf16.mxu0 %v1647
        %2009 = vmatpush1.bf16.msra.mxu0 %v1646
        %2010 = vmatprep.subr.bf16.mxu0 %v1649
        %2011 = vmatpush1.bf16.msra.mxu0 %v1648
        %2012 = vmatprep.subr.bf16.mxu0 %v1651
        %2013 = vmatpush1.bf16.msra.mxu0 %v1650
        %2014 = vmatprep.subr.bf16.mxu0 %v1653
        %2015 = vmatpush1.bf16.msra.mxu0 %v1652
        %2016 = vmatprep.subr.bf16.mxu0 %v1655
        %2017 = vmatpush1.bf16.msra.mxu0 %v1654
        %2018 = vmatprep.subr.bf16.mxu0 %v1657
        %2019 = vmatpush1.bf16.msra.mxu0 %v1656
        %2020 = vmatprep.subr.bf16.mxu0 %v1659
        %2021 = vmatpush1.bf16.msra.mxu0 %v1658
        %2022 = vmatprep.subr.bf16.mxu0 %v1661
        %2023 = vmatpush1.bf16.msra.mxu0 %v1660
        %2024 = vmatprep.subr.bf16.mxu0 %v1663
        %2025 = vmatpush1.bf16.msra.mxu0 %v1662
        %2026 = vmatprep.subr.bf16.mxu0 %v1665
        %2027 = vmatpush1.bf16.msra.mxu0 %v1664
        %2028 = vmatprep.mubr.bf16.mxu0 %v903
        %2029 = vmatmul.mubr.bf16.gmra.mrb[0].mxu0 %v902
        %v2030 = vpop.f32.mrb[0].mxu0
        %v2031 = vadd.f32 %v1978, %v2030
        %v2032 = vpop.f32.mrb[0].mxu0
        %v2033 = vadd.f32 %v1980, %v2032
        %v2034 = vpop.f32.mrb[0].mxu0
        %v2035 = vadd.f32 %v1982, %v2034
        %v2036 = vpop.f32.mrb[0].mxu0
        %v2037 = vadd.f32 %v1984, %v2036
        %2038 = vmatprep.mubr.bf16.mxu0 %v913
        %2039 = vmatmul.mubr.bf16.gmra.mrb[0].mxu0 %v912
        %v2040 = vpop.f32.mrb[0].mxu0
        %v2041 = vadd.f32 %v1988, %v2040
        %v2042 = vpop.f32.mrb[0].mxu0
        %v2043 = vadd.f32 %v1990, %v2042
        %v2044 = vpop.f32.mrb[0].mxu0
        %v2045 = vadd.f32 %v1992, %v2044
        %v2046 = vpop.f32.mrb[0].mxu0
        %v2047 = vadd.f32 %v1994, %v2046
        %2048 = vdwg.mxu0
        %2049 = vmatprep.subr.bf16.mxu0 %v1667
        %2050 = vmatpush1.bf16.msra.mxu0 %v1666
        %2051 = vmatprep.subr.bf16.mxu0 %v1669
        %2052 = vmatpush1.bf16.msra.mxu0 %v1668
        %2053 = vmatprep.subr.bf16.mxu0 %v1671
        %2054 = vmatpush1.bf16.msra.mxu0 %v1670
        %2055 = vmatprep.subr.bf16.mxu0 %v1673
        %2056 = vmatpush1.bf16.msra.mxu0 %v1672
        %2057 = vmatprep.subr.bf16.mxu0 %v1675
        %2058 = vmatpush1.bf16.msra.mxu0 %v1674
        %2059 = vmatprep.subr.bf16.mxu0 %v1677
        %2060 = vmatpush1.bf16.msra.mxu0 %v1676
        %2061 = vmatprep.subr.bf16.mxu0 %v1679
        %2062 = vmatpush1.bf16.msra.mxu0 %v1678
        %2063 = vmatprep.subr.bf16.mxu0 %v1681
        %2064 = vmatpush1.bf16.msra.mxu0 %v1680
        %2065 = vmatprep.subr.bf16.mxu0 %v1683
        %2066 = vmatpush1.bf16.msra.mxu0 %v1682
        %2067 = vmatprep.subr.bf16.mxu0 %v1685
        %2068 = vmatpush1.bf16.msra.mxu0 %v1684
        %2069 = vmatprep.subr.bf16.mxu0 %v1687
        %2070 = vmatpush1.bf16.msra.mxu0 %v1686
        %2071 = vmatprep.subr.bf16.mxu0 %v1689
        %2072 = vmatpush1.bf16.msra.mxu0 %v1688
        %2073 = vmatprep.subr.bf16.mxu0 %v1691
        %2074 = vmatpush1.bf16.msra.mxu0 %v1690
        %2075 = vmatprep.subr.bf16.mxu0 %v1693
        %2076 = vmatpush1.bf16.msra.mxu0 %v1692
        %2077 = vmatprep.subr.bf16.mxu0 %v1695
        %2078 = vmatpush1.bf16.msra.mxu0 %v1694
        %2079 = vmatprep.subr.bf16.mxu0 %v1697
        %2080 = vmatpush1.bf16.msra.mxu0 %v1696
        %2081 = vmatprep.mubr.bf16.mxu0 %v905
        %2082 = vmatmul.mubr.bf16.gmra.mrb[0].mxu0 %v904
        %v2083 = vpop.f32.mrb[0].mxu0
        %v2084 = vadd.f32 %v2031, %v2083
        %v2085 = vpop.f32.mrb[0].mxu0
        %v2086 = vadd.f32 %v2033, %v2085
        %v2087 = vpop.f32.mrb[0].mxu0
        %v2088 = vadd.f32 %v2035, %v2087
        %v2089 = vpop.f32.mrb[0].mxu0
        %v2090 = vadd.f32 %v2037, %v2089
        %2091 = vmatprep.mubr.bf16.mxu0 %v915
        %2092 = vmatmul.mubr.bf16.gmra.mrb[0].mxu0 %v914
        %v2093 = vpop.f32.mrb[0].mxu0
        %v2094 = vadd.f32 %v2041, %v2093
        %v2095 = vpop.f32.mrb[0].mxu0
        %v2096 = vadd.f32 %v2043, %v2095
        %v2097 = vpop.f32.mrb[0].mxu0
        %v2098 = vadd.f32 %v2045, %v2097
        %v2099 = vpop.f32.mrb[0].mxu0
        %v2100 = vadd.f32 %v2047, %v2099
        %2101 = vdwg.mxu0
        %2102 = vmatprep.subr.bf16.mxu0 %v1699
        %2103 = vmatpush1.bf16.msra.mxu0 %v1698
        %2104 = vmatprep.subr.bf16.mxu0 %v1701
        %2105 = vmatpush1.bf16.msra.mxu0 %v1700
        %2106 = vmatprep.subr.bf16.mxu0 %v1703
        %2107 = vmatpush1.bf16.msra.mxu0 %v1702
        %2108 = vmatprep.subr.bf16.mxu0 %v1705
        %2109 = vmatpush1.bf16.msra.mxu0 %v1704
        %2110 = vmatprep.subr.bf16.mxu0 %v1707
        %2111 = vmatpush1.bf16.msra.mxu0 %v1706
        %2112 = vmatprep.subr.bf16.mxu0 %v1709
        %2113 = vmatpush1.bf16.msra.mxu0 %v1708
        %2114 = vmatprep.subr.bf16.mxu0 %v1711
        %2115 = vmatpush1.bf16.msra.mxu0 %v1710
        %2116 = vmatprep.subr.bf16.mxu0 %v1713
        %2117 = vmatpush1.bf16.msra.mxu0 %v1712
        %2118 = vmatprep.subr.bf16.mxu0 %v1715
        %2119 = vmatpush1.bf16.msra.mxu0 %v1714
        %2120 = vmatprep.subr.bf16.mxu0 %v1717
        %2121 = vmatpush1.bf16.msra.mxu0 %v1716
        %2122 = vmatprep.subr.bf16.mxu0 %v1719
        %2123 = vmatpush1.bf16.msra.mxu0 %v1718
        %2124 = vmatprep.subr.bf16.mxu0 %v1721
        %2125 = vmatpush1.bf16.msra.mxu0 %v1720
        %2126 = vmatprep.subr.bf16.mxu0 %v1723
        %2127 = vmatpush1.bf16.msra.mxu0 %v1722
        %2128 = vmatprep.subr.bf16.mxu0 %v1725
        %2129 = vmatpush1.bf16.msra.mxu0 %v1724
        %2130 = vmatprep.subr.bf16.mxu0 %v1727
        %2131 = vmatpush1.bf16.msra.mxu0 %v1726
        %2132 = vmatprep.subr.bf16.mxu0 %v1729
        %2133 = vmatpush1.bf16.msra.mxu0 %v1728
        %2134 = vmatprep.mubr.bf16.mxu0 %v907
        %2135 = vmatmul.mubr.bf16.gmra.mrb[0].mxu0 %v906
        %v2136 = vpop.f32.mrb[0].mxu0
        %v2137 = vadd.f32 %v2084, %v2136
        %v2138 = vpop.f32.mrb[0].mxu0
        %v2139 = vadd.f32 %v2086, %v2138
        %v2140 = vpop.f32.mrb[0].mxu0
        %v2141 = vadd.f32 %v2088, %v2140
        %v2142 = vpop.f32.mrb[0].mxu0
        %v2143 = vadd.f32 %v2090, %v2142
        %2144 = vmatprep.mubr.bf16.mxu0 %v917
        %2145 = vmatmul.mubr.bf16.gmra.mrb[0].mxu0 %v916
        %v2146 = vpop.f32.mrb[0].mxu0
        %v2147 = vadd.f32 %v2094, %v2146
        %v2148 = vpop.f32.mrb[0].mxu0
        %v2149 = vadd.f32 %v2096, %v2148
        %v2150 = vpop.f32.mrb[0].mxu0
        %v2151 = vadd.f32 %v2098, %v2150
        %v2152 = vpop.f32.mrb[0].mxu0
        %v2153 = vadd.f32 %v2100, %v2152
        %2154 = vdwg.mxu0
        %vm2155 = vcmp.gt.f32.partialorder %v2137, 0.0
        %vm2156 = vcmp.gt.f32.partialorder %v2139, 0.0
        %vm2157 = vcmp.gt.f32.partialorder %v2141, 0.0
        %vm2158 = vcmp.gt.f32.partialorder %v2143, 0.0
        %vm2159 = vcmp.gt.f32.partialorder %v2147, 0.0
        %vm2160 = vcmp.gt.f32.partialorder %v2149, 0.0
        %vm2161 = vcmp.gt.f32.partialorder %v2151, 0.0
        %vm2162 = vcmp.gt.f32.partialorder %v2153, 0.0
        %v2163 = vmul.f32 %v2137, 0.2
        %v2164 = vmul.f32 %v2139, 0.2
        %v2165 = vmul.f32 %v2141, 0.2
        %v2166 = vmul.f32 %v2143, 0.2
        %v2167 = vmul.f32 %v2147, 0.2
        %v2168 = vmul.f32 %v2149, 0.2
        %v2169 = vmul.f32 %v2151, 0.2
        %v2170 = vmul.f32 %v2153, 0.2
        %v2171 = vsel %vm2155, %v2137, %v2163
        %v2172 = vsel %vm2156, %v2139, %v2164
        %v2173 = vsel %vm2157, %v2141, %v2165
        %v2174 = vsel %vm2158, %v2143, %v2166
        %v2175 = vsel %vm2159, %v2147, %v2167
        %v2176 = vsel %vm2160, %v2149, %v2168
        %v2177 = vsel %vm2161, %v2151, %v2169
        %v2178 = vsel %vm2162, %v2153, %v2170
        %s2179 = smul.u32 %s33, 24
        %s2180 = ssub.s32 %s2179, 4
        %v2181 = vadd.s32 %v570, 8
        %v2182 = vadd.s32 %v570, 16
        %v2183 = vadd.s32 %v570, 24
        %v2184 = vstv %s2180
        %v2185 = vadd.s32 %v2184, %v570
        %v2186 = vadd.s32 %v2184, %v2181
        %v2187 = vadd.s32 %v2184, %v2182
        %v2188 = vadd.s32 %v2184, %v2183
        %vm2189 = vcmp.ge.s32.totalorder %v2185, 0
        %vm2190 = vcmp.ge.s32.totalorder %v2186, 0
        %vm2191 = vcmp.ge.s32.totalorder %v2187, 0
        %vm2192 = vcmp.ge.s32.totalorder %v2188, 0
        %vm2193 = vcmp.lt.s32.totalorder %v2185, 20
        %vm2194 = vcmp.lt.s32.totalorder %v2186, 20
        %vm2195 = vcmp.lt.s32.totalorder %v2187, 20
        %vm2196 = vcmp.lt.s32.totalorder %v2188, 20
        %vm2197 = vmand %vm2189, %vm2193
        %vm2198 = vmand %vm2190, %vm2194
        %vm2199 = vmand %vm2191, %vm2195
        %vm2200 = vmand %vm2192, %vm2196
        %v2201 = vsel %vm2197, 1, 0
        %v2202 = vsel %vm2198, 1, 0
        %v2203 = vsel %vm2199, 1, 0
        %v2204 = vsel %vm2200, 1, 0
        %vm2205 = vcmp.eq.s32.totalorder %v2201, 1
        %vm2206 = vcmp.eq.s32.totalorder %v2202, 1
        %vm2207 = vcmp.eq.s32.totalorder %v2203, 1
        %vm2208 = vcmp.eq.s32.totalorder %v2204, 1
        %v2209 = vsel %vm2205, %v2171, 0.0
        %v2210 = vsel %vm2205, %v2172, 0.0
        %v2211 = vsel %vm2206, %v2173, 0.0
        %v2212 = vsel %vm2206, %v2174, 0.0
        %v2213 = vsel %vm2207, %v2175, 0.0
        %v2214 = vsel %vm2207, %v2176, 0.0
        %v2215 = vsel %vm2208, %v2177, 0.0
        %v2216 = vsel %vm2208, %v2178, 0.0
        %v2217 = vpack.c.bf16 %v2211, %v2209
        %v2218 = vpack.c.bf16 %v2212, %v2210
        %v2219 = vpack.c.bf16 %v2215, %v2213
        %v2220 = vpack.c.bf16 %v2216, %v2214
        %2221 = vst [vmem:[#allocation3] sm:$0xff] %v2217
        %2222 = vst [vmem:[#allocation3 + $0x8] sm:$0xff] %v2218
        %2223 = vst [vmem:[#allocation3 + $0x10] sm:$0xff] %v2219
        %2224 = vst [vmem:[#allocation3 + $0x18] sm:$0xff] %v2220
        %v2225 = vld [vmem:[#allocation3] sm:$0xfe]
        %v2226 = vld [vmem:[#allocation3 + $0x8] sm:$0xfe]
        %v2227 = vld [vmem:[#allocation3 + $0x10] sm:$0x1f]
        %v2228 = vld [vmem:[#allocation3 + $0x18] sm:$0x1f]
        %v2233 = vunpack.c.l.b16 %v2225
        %v2234 = vunpack.c.l.b16 %v2226
        %v2235 = vunpack.c.h.b16 %v2225
        %v2236 = vunpack.c.h.b16 %v2226
        %v2237 = vunpack.c.l.b16 %v2227
        %v2238 = vunpack.c.l.b16 %v2228
        %v2239 = vunpack.c.h.b16 %v2227
        %v2240 = vunpack.c.h.b16 %v2228
        %v2241 = vpack.c.b16 %v2234, %v2233
        %v2242 = vpack.c.b16 %v2236, %v2235
        %v2243 = vpack.c.b16 %v2238, %v2237
        %v2244 = vpack.c.b16 %v2240, %v2239
        %vm2245 = vcmask 1042432
        %vm2246 = vcmask 1046532
        %vm2247 = vmor %vm2245, %vm2246
        %v2248 = vrot.slane %v2241, 5
        %v2249 = vrot.slane %v2248, 4
        %v2250 = vrot.slane %v2242, 5
        %v2251 = vsel %vm2247, %v2249, %v2250
        %v2252 = vrot.slane %v2250, 4
        %v2253 = vrot.slane %v2243, 5
        %v2254 = vsel %vm2247, %v2252, %v2253
        %v2255 = vrot.slane %v2253, 4
        %v2256 = vrot.slane %v2244, 5
        %v2257 = vsel %vm2247, %v2255, %v2256
        %2261 = vst [vmem:[#allocation5] sm:$0xff] %v2251
        %2262 = vst [vmem:[#allocation5 + $0x28] sm:$0xff] %v2254
        %2263 = vst [vmem:[#allocation5 + $0x50] sm:$0xff] %v2257
        %v2264 = vld [vmem:[#allocation3] sm:$0xfe]
        %v2265 = vld [vmem:[#allocation3 + $0x8] sm:$0xfe]
        %v2266 = vld [vmem:[#allocation3 + $0x10] sm:$0x3f]
        %v2267 = vld [vmem:[#allocation3 + $0x18] sm:$0x3f]
        %v2272 = vunpack.c.l.b16 %v2264
        %v2273 = vunpack.c.l.b16 %v2265
        %v2274 = vunpack.c.h.b16 %v2264
        %v2275 = vunpack.c.h.b16 %v2265
        %v2276 = vunpack.c.l.b16 %v2266
        %v2277 = vunpack.c.l.b16 %v2267
        %v2278 = vunpack.c.h.b16 %v2266
        %v2279 = vunpack.c.h.b16 %v2267
        %v2280 = vpack.c.b16 %v2273, %v2272
        %v2281 = vpack.c.b16 %v2275, %v2274
        %v2282 = vpack.c.b16 %v2277, %v2276
        %v2283 = vpack.c.b16 %v2279, %v2278
        %vm2284 = vsmask.f32 2304
        %vm2285 = vsmask.f32 6416
        %vm2286 = vmor %vm2284, %vm2285
        %v2288 = vshrl.u32 %v2280, 16
        %v2290 = vrot.slane %v2288, 5
        %v2291 = vshll.u32 %v2280, 16
        %v2293 = vrot.slane %v2291, 6
        %v2294 = vor.u32 %v2290, %v2293
        %v2295 = vrot.slane %v2294, 4
        %v2297 = vshrl.u32 %v2281, 16
        %v2299 = vrot.slane %v2297, 5
        %v2300 = vshll.u32 %v2281, 16
        %v2302 = vrot.slane %v2300, 6
        %v2303 = vor.u32 %v2299, %v2302
        %v2304 = vsel %vm2286, %v2295, %v2303
        %v2305 = vrot.slane %v2303, 4
        %v2307 = vshrl.u32 %v2282, 16
        %v2309 = vrot.slane %v2307, 5
        %v2310 = vshll.u32 %v2282, 16
        %v2312 = vrot.slane %v2310, 6
        %v2313 = vor.u32 %v2309, %v2312
        %v2314 = vsel %vm2286, %v2305, %v2313
        %v2315 = vrot.slane %v2313, 4
        %v2317 = vshrl.u32 %v2283, 16
        %v2319 = vrot.slane %v2317, 5
        %v2320 = vshll.u32 %v2283, 16
        %v2322 = vrot.slane %v2320, 6
        %v2323 = vor.u32 %v2319, %v2322
        %v2324 = vsel %vm2286, %v2315, %v2323
        %2328 = vst [vmem:[#allocation5 + $0x8] sm:$0xff] %v2304
        %2329 = vst [vmem:[#allocation5 + $0x30] sm:$0xff] %v2314
        %2330 = vst [vmem:[#allocation5 + $0x58] sm:$0xff] %v2324
        %v2331 = vld [vmem:[#allocation3] sm:$0xfc]
        %v2332 = vld [vmem:[#allocation3 + $0x8] sm:$0xfc]
        %v2333 = vld [vmem:[#allocation3 + $0x10] sm:$0x3f]
        %v2334 = vld [vmem:[#allocation3 + $0x18] sm:$0x3f]
        %v2339 = vunpack.c.l.b16 %v2331
        %v2340 = vunpack.c.l.b16 %v2332
        %v2341 = vunpack.c.h.b16 %v2331
        %v2342 = vunpack.c.h.b16 %v2332
        %v2343 = vunpack.c.l.b16 %v2333
        %v2344 = vunpack.c.l.b16 %v2334
        %v2345 = vunpack.c.h.b16 %v2333
        %v2346 = vunpack.c.h.b16 %v2334
        %v2347 = vpack.c.b16 %v2340, %v2339
        %v2348 = vpack.c.b16 %v2342, %v2341
        %v2349 = vpack.c.b16 %v2344, %v2343
        %v2350 = vpack.c.b16 %v2346, %v2345
        %vm2351 = vcmask 1041408
        %vm2352 = vcmask 1045508
        %vm2353 = vmor %vm2351, %vm2352
        %v2354 = vrot.slane %v2347, 6
        %v2355 = vrot.slane %v2354, 4
        %v2356 = vrot.slane %v2348, 6
        %v2357 = vsel %vm2353, %v2355, %v2356
        %v2358 = vrot.slane %v2356, 4
        %v2359 = vrot.slane %v2349, 6
        %v2360 = vsel %vm2353, %v2358, %v2359
        %v2361 = vrot.slane %v2359, 4
        %v2362 = vrot.slane %v2350, 6
        %v2363 = vsel %vm2353, %v2361, %v2362
        %2367 = vst [vmem:[#allocation5 + $0x10] sm:$0xff] %v2357
        %2368 = vst [vmem:[#allocation5 + $0x38] sm:$0xff] %v2360
        %2369 = vst [vmem:[#allocation5 + $0x60] sm:$0xff] %v2363
        %v2370 = vld [vmem:[#allocation3] sm:$0xfc]
        %v2371 = vld [vmem:[#allocation3 + $0x8] sm:$0xfc]
        %v2372 = vld [vmem:[#allocation3 + $0x10] sm:$0x7f]
        %v2373 = vld [vmem:[#allocation3 + $0x18] sm:$0x7f]
        %v2378 = vunpack.c.l.b16 %v2370
        %v2379 = vunpack.c.l.b16 %v2371
        %v2380 = vunpack.c.h.b16 %v2370
        %v2381 = vunpack.c.h.b16 %v2371
        %v2382 = vunpack.c.l.b16 %v2372
        %v2383 = vunpack.c.l.b16 %v2373
        %v2384 = vunpack.c.h.b16 %v2372
        %v2385 = vunpack.c.h.b16 %v2373
        %v2386 = vpack.c.b16 %v2379, %v2378
        %v2387 = vpack.c.b16 %v2381, %v2380
        %v2388 = vpack.c.b16 %v2383, %v2382
        %v2389 = vpack.c.b16 %v2385, %v2384
        %vm2390 = vsmask.f32 1280
        %vm2391 = vsmask.f32 5392
        %vm2392 = vmor %vm2390, %vm2391
        %v2394 = vshrl.u32 %v2386, 16
        %v2396 = vrot.slane %v2394, 6
        %v2397 = vshll.u32 %v2386, 16
        %v2399 = vrot.slane %v2397, 7
        %v2400 = vor.u32 %v2396, %v2399
        %v2401 = vrot.slane %v2400, 4
        %v2403 = vshrl.u32 %v2387, 16
        %v2405 = vrot.slane %v2403, 6
        %v2406 = vshll.u32 %v2387, 16
        %v2408 = vrot.slane %v2406, 7
        %v2409 = vor.u32 %v2405, %v2408
        %v2410 = vsel %vm2392, %v2401, %v2409
        %v2411 = vrot.slane %v2409, 4
        %v2413 = vshrl.u32 %v2388, 16
        %v2415 = vrot.slane %v2413, 6
        %v2416 = vshll.u32 %v2388, 16
        %v2418 = vrot.slane %v2416, 7
        %v2419 = vor.u32 %v2415, %v2418
        %v2420 = vsel %vm2392, %v2411, %v2419
        %v2421 = vrot.slane %v2419, 4
        %v2423 = vshrl.u32 %v2389, 16
        %v2425 = vrot.slane %v2423, 6
        %v2426 = vshll.u32 %v2389, 16
        %v2428 = vrot.slane %v2426, 7
        %v2429 = vor.u32 %v2425, %v2428
        %v2430 = vsel %vm2392, %v2421, %v2429
        %2434 = vst [vmem:[#allocation5 + $0x18] sm:$0xff] %v2410
        %2435 = vst [vmem:[#allocation5 + $0x40] sm:$0xff] %v2420
        %2436 = vst [vmem:[#allocation5 + $0x68] sm:$0xff] %v2430
        %v2437 = vld [vmem:[#allocation3] sm:$0xf8]
        %v2438 = vld [vmem:[#allocation3 + $0x8] sm:$0xf8]
        %v2439 = vld [vmem:[#allocation3 + $0x10] sm:$0x7f]
        %v2440 = vld [vmem:[#allocation3 + $0x18] sm:$0x7f]
        %v2445 = vunpack.c.l.b16 %v2437
        %v2446 = vunpack.c.l.b16 %v2438
        %v2447 = vunpack.c.h.b16 %v2437
        %v2448 = vunpack.c.h.b16 %v2438
        %v2449 = vunpack.c.l.b16 %v2439
        %v2450 = vunpack.c.l.b16 %v2440
        %v2451 = vunpack.c.h.b16 %v2439
        %v2452 = vunpack.c.h.b16 %v2440
        %v2453 = vpack.c.b16 %v2446, %v2445
        %v2454 = vpack.c.b16 %v2448, %v2447
        %v2455 = vpack.c.b16 %v2450, %v2449
        %v2456 = vpack.c.b16 %v2452, %v2451
        %vm2457 = vcmask 1040384
        %vm2458 = vcmask 1044484
        %vm2459 = vmor %vm2457, %vm2458
        %v2460 = vrot.slane %v2453, 7
        %v2461 = vrot.slane %v2460, 4
        %v2462 = vrot.slane %v2454, 7
        %v2463 = vsel %vm2459, %v2461, %v2462
        %v2464 = vrot.slane %v2462, 4
        %v2465 = vrot.slane %v2455, 7
        %v2466 = vsel %vm2459, %v2464, %v2465
        %v2467 = vrot.slane %v2465, 4
        %v2468 = vrot.slane %v2456, 7
        %v2469 = vsel %vm2459, %v2467, %v2468
        %2473 = vst [vmem:[#allocation5 + $0x20] sm:$0xff] %v2463
        %2474 = vst [vmem:[#allocation5 + $0x48] sm:$0xff] %v2466
        %2475 = vst [vmem:[#allocation5 + $0x70] sm:$0xff] %v2469
        %v2476 = vld [vmem:[#allocation5] sm:$0xff]
        %v2477 = vld [vmem:[#allocation5 + $0x8] sm:$0xff]
        %v2478 = vld [vmem:[#allocation5 + $0x10] sm:$0xff]
        %v2479 = vld [vmem:[#allocation5 + $0x18] sm:$0xff]
        %v2480 = vld [vmem:[#allocation5 + $0x20] sm:$0xff]
        %v2481 = vld [vmem:[#allocation5 + $0x28] sm:$0xff]
        %v2482 = vld [vmem:[#allocation5 + $0x30] sm:$0xff]
        %v2483 = vld [vmem:[#allocation5 + $0x38] sm:$0xff]
        %v2484 = vld [vmem:[#allocation5 + $0x40] sm:$0xff]
        %v2485 = vld [vmem:[#allocation5 + $0x48] sm:$0xff]
        %v2486 = vld [vmem:[#allocation5 + $0x50] sm:$0xff]
        %v2487 = vld [vmem:[#allocation5 + $0x58] sm:$0xff]
        %v2488 = vld [vmem:[#allocation5 + $0x60] sm:$0xff]
        %v2489 = vld [vmem:[#allocation5 + $0x68] sm:$0xff]
        %v2490 = vld [vmem:[#allocation5 + $0x70] sm:$0xff]
        %v2491 = vld [vmem:[#allocation14] sm:$0xff]
        %v2492 = vld [vmem:[#allocation14 + $0x8] sm:$0xff]
        %v2493 = vld [vmem:[#allocation14 + $0x10] sm:$0xff]
        %v2494 = vld [vmem:[#allocation14 + $0x18] sm:$0xff]
        %v2495 = vld [vmem:[#allocation14 + $0x20] sm:$0xff]
        %v2496 = vld [vmem:[#allocation14 + $0x28] sm:$0xff]
        %v2497 = vld [vmem:[#allocation14 + $0x30] sm:$0xff]
        %v2498 = vld [vmem:[#allocation14 + $0x38] sm:$0xff]
        %v2499 = vld [vmem:[#allocation14 + $0x40] sm:$0xff]
        %v2500 = vld [vmem:[#allocation14 + $0x48] sm:$0xff]
        %v2501 = vld [vmem:[#allocation14 + $0x50] sm:$0xff]
        %v2502 = vld [vmem:[#allocation14 + $0x58] sm:$0xff]
        %v2503 = vld [vmem:[#allocation14 + $0x60] sm:$0xff]
        %v2504 = vld [vmem:[#allocation14 + $0x68] sm:$0xff]
        %v2505 = vld [vmem:[#allocation14 + $0x70] sm:$0xff]
        %v2506 = vld [vmem:[#allocation14 + $0x78] sm:$0xff]
        %v2507 = vld [vmem:[#allocation14 + $0x80] sm:$0xff]
        %v2508 = vld [vmem:[#allocation14 + $0x88] sm:$0xff]
        %v2509 = vld [vmem:[#allocation14 + $0x90] sm:$0xff]
        %v2510 = vld [vmem:[#allocation14 + $0x98] sm:$0xff]
        %v2511 = vld [vmem:[#allocation14 + $0xa0] sm:$0xff]
        %v2512 = vld [vmem:[#allocation14 + $0xa8] sm:$0xff]
        %v2513 = vld [vmem:[#allocation14 + $0xb0] sm:$0xff]
        %v2514 = vld [vmem:[#allocation14 + $0xb8] sm:$0xff]
        %v2515 = vld [vmem:[#allocation14 + $0xc0] sm:$0xff]
        %v2516 = vld [vmem:[#allocation14 + $0xc8] sm:$0xff]
        %v2517 = vld [vmem:[#allocation14 + $0xd0] sm:$0xff]
        %v2518 = vld [vmem:[#allocation14 + $0xd8] sm:$0xff]
        %v2519 = vld [vmem:[#allocation14 + $0xe0] sm:$0xff]
        %v2520 = vld [vmem:[#allocation14 + $0xe8] sm:$0xff]
        %v2521 = vld [vmem:[#allocation14 + $0xf0] sm:$0xff]
        %v2522 = vld [vmem:[#allocation14 + $0xf8] sm:$0xff]
        %v2523 = vld [vmem:[#allocation14 + $0x100] sm:$0xff]
        %v2524 = vld [vmem:[#allocation14 + $0x108] sm:$0xff]
        %v2525 = vld [vmem:[#allocation14 + $0x110] sm:$0xff]
        %v2526 = vld [vmem:[#allocation14 + $0x118] sm:$0xff]
        %v2527 = vld [vmem:[#allocation14 + $0x120] sm:$0xff]
        %v2528 = vld [vmem:[#allocation14 + $0x128] sm:$0xff]
        %v2529 = vld [vmem:[#allocation14 + $0x130] sm:$0xff]
        %v2530 = vld [vmem:[#allocation14 + $0x138] sm:$0xff]
        %v2531 = vld [vmem:[#allocation14 + $0x140] sm:$0xff]
        %v2532 = vld [vmem:[#allocation14 + $0x148] sm:$0xff]
        %v2533 = vld [vmem:[#allocation14 + $0x150] sm:$0xff]
        %v2534 = vld [vmem:[#allocation14 + $0x158] sm:$0xff]
        %v2535 = vld [vmem:[#allocation14 + $0x160] sm:$0xff]
        %v2536 = vld [vmem:[#allocation14 + $0x168] sm:$0xff]
        %v2537 = vld [vmem:[#allocation14 + $0x170] sm:$0xff]
        %v2538 = vld [vmem:[#allocation14 + $0x178] sm:$0xff]
        %v2539 = vld [vmem:[#allocation14 + $0x180] sm:$0xff]
        %v2540 = vld [vmem:[#allocation14 + $0x188] sm:$0xff]
        %v2541 = vld [vmem:[#allocation14 + $0x190] sm:$0xff]
        %v2542 = vld [vmem:[#allocation14 + $0x198] sm:$0xff]
        %v2543 = vld [vmem:[#allocation14 + $0x1a0] sm:$0xff]
        %v2544 = vld [vmem:[#allocation14 + $0x1a8] sm:$0xff]
        %v2545 = vld [vmem:[#allocation14 + $0x1b0] sm:$0xff]
        %v2546 = vld [vmem:[#allocation14 + $0x1b8] sm:$0xff]
        %v2547 = vld [vmem:[#allocation14 + $0x1c0] sm:$0xff]
        %v2548 = vld [vmem:[#allocation14 + $0x1c8] sm:$0xff]
        %v2549 = vld [vmem:[#allocation14 + $0x1d0] sm:$0xff]
        %v2550 = vld [vmem:[#allocation14 + $0x1d8] sm:$0xff]
        %v2551 = vld [vmem:[#allocation14 + $0x1e0] sm:$0xff]
        %v2552 = vld [vmem:[#allocation14 + $0x1e8] sm:$0xff]
        %v2553 = vld [vmem:[#allocation14 + $0x1f0] sm:$0xff]
        %v2554 = vld [vmem:[#allocation14 + $0x1f8] sm:$0xff]
        %v2555 = vld [vmem:[#allocation14 + $0x200] sm:$0xff]
        %v2556 = vld [vmem:[#allocation14 + $0x208] sm:$0xff]
        %v2557 = vld [vmem:[#allocation14 + $0x210] sm:$0xff]
        %v2558 = vld [vmem:[#allocation14 + $0x218] sm:$0xff]
        %v2559 = vld [vmem:[#allocation14 + $0x220] sm:$0xff]
        %v2560 = vld [vmem:[#allocation14 + $0x228] sm:$0xff]
        %v2561 = vld [vmem:[#allocation14 + $0x230] sm:$0xff]
        %v2562 = vld [vmem:[#allocation14 + $0x238] sm:$0xff]
        %v2563 = vld [vmem:[#allocation14 + $0x240] sm:$0xff]
        %v2564 = vld [vmem:[#allocation14 + $0x248] sm:$0xff]
        %v2565 = vld [vmem:[#allocation14 + $0x250] sm:$0xff]
        %v2566 = vld [vmem:[#allocation14 + $0x258] sm:$0xff]
        %v2567 = vld [vmem:[#allocation14 + $0x260] sm:$0xff]
        %v2568 = vld [vmem:[#allocation14 + $0x268] sm:$0xff]
        %v2569 = vld [vmem:[#allocation14 + $0x270] sm:$0xff]
        %v2570 = vld [vmem:[#allocation14 + $0x278] sm:$0xff]
        %v2571 = vld [vmem:[#allocation14 + $0x280] sm:$0xff]
        %v2572 = vld [vmem:[#allocation14 + $0x288] sm:$0xff]
        %v2573 = vld [vmem:[#allocation14 + $0x290] sm:$0xff]
        %v2574 = vld [vmem:[#allocation14 + $0x298] sm:$0xff]
        %v2575 = vld [vmem:[#allocation14 + $0x2a0] sm:$0xff]
        %v2576 = vld [vmem:[#allocation14 + $0x2a8] sm:$0xff]
        %v2577 = vld [vmem:[#allocation14 + $0x2b0] sm:$0xff]
        %v2578 = vld [vmem:[#allocation14 + $0x2b8] sm:$0xff]
        %v2579 = vld [vmem:[#allocation14 + $0x2c0] sm:$0xff]
        %v2580 = vld [vmem:[#allocation14 + $0x2c8] sm:$0xff]
        %v2581 = vld [vmem:[#allocation14 + $0x2d0] sm:$0xff]
        %v2582 = vld [vmem:[#allocation14 + $0x2d8] sm:$0xff]
        %v2583 = vld [vmem:[#allocation14 + $0x2e0] sm:$0xff]
        %v2584 = vld [vmem:[#allocation14 + $0x2e8] sm:$0xff]
        %v2585 = vld [vmem:[#allocation14 + $0x2f0] sm:$0xff]
        %v2586 = vld [vmem:[#allocation14 + $0x2f8] sm:$0xff]
        %v2587 = vld [vmem:[#allocation14 + $0x300] sm:$0xff]
        %v2588 = vld [vmem:[#allocation14 + $0x308] sm:$0xff]
        %v2589 = vld [vmem:[#allocation14 + $0x310] sm:$0xff]
        %v2590 = vld [vmem:[#allocation14 + $0x318] sm:$0xff]
        %v2591 = vld [vmem:[#allocation14 + $0x320] sm:$0xff]
        %v2592 = vld [vmem:[#allocation14 + $0x328] sm:$0xff]
        %v2593 = vld [vmem:[#allocation14 + $0x330] sm:$0xff]
        %v2594 = vld [vmem:[#allocation14 + $0x338] sm:$0xff]
        %v2595 = vld [vmem:[#allocation14 + $0x340] sm:$0xff]
        %v2596 = vld [vmem:[#allocation14 + $0x348] sm:$0xff]
        %v2597 = vld [vmem:[#allocation14 + $0x350] sm:$0xff]
        %v2598 = vld [vmem:[#allocation14 + $0x358] sm:$0xff]
        %v2599 = vld [vmem:[#allocation14 + $0x360] sm:$0xff]
        %v2600 = vld [vmem:[#allocation14 + $0x368] sm:$0xff]
        %v2601 = vld [vmem:[#allocation14 + $0x370] sm:$0xff]
        %v2602 = vld [vmem:[#allocation14 + $0x378] sm:$0xff]
        %v2603 = vld [vmem:[#allocation14 + $0x380] sm:$0xff]
        %v2604 = vld [vmem:[#allocation14 + $0x388] sm:$0xff]
        %v2605 = vld [vmem:[#allocation14 + $0x390] sm:$0xff]
        %v2606 = vld [vmem:[#allocation14 + $0x398] sm:$0xff]
        %v2607 = vld [vmem:[#allocation14 + $0x3a0] sm:$0xff]
        %v2608 = vld [vmem:[#allocation14 + $0x3a8] sm:$0xff]
        %v2609 = vld [vmem:[#allocation14 + $0x3b0] sm:$0xff]
        %v2610 = vld [vmem:[#allocation14 + $0x3b8] sm:$0xff]
        %v2611 = vld [vmem:[#allocation14 + $0x3c0] sm:$0xff]
        %v2612 = vld [vmem:[#allocation14 + $0x3c8] sm:$0xff]
        %v2613 = vld [vmem:[#allocation14 + $0x3d0] sm:$0xff]
        %v2614 = vld [vmem:[#allocation14 + $0x3d8] sm:$0xff]
        %v2615 = vld [vmem:[#allocation14 + $0x3e0] sm:$0xff]
        %v2616 = vld [vmem:[#allocation14 + $0x3e8] sm:$0xff]
        %v2617 = vld [vmem:[#allocation14 + $0x3f0] sm:$0xff]
        %v2618 = vld [vmem:[#allocation14 + $0x3f8] sm:$0xff]
        %v2619 = vld [vmem:[#allocation14 + $0x400] sm:$0xff]
        %v2620 = vld [vmem:[#allocation14 + $0x408] sm:$0xff]
        %v2621 = vld [vmem:[#allocation14 + $0x410] sm:$0xff]
        %v2622 = vld [vmem:[#allocation14 + $0x418] sm:$0xff]
        %v2623 = vld [vmem:[#allocation14 + $0x420] sm:$0xff]
        %v2624 = vld [vmem:[#allocation14 + $0x428] sm:$0xff]
        %v2625 = vld [vmem:[#allocation14 + $0x430] sm:$0xff]
        %v2626 = vld [vmem:[#allocation14 + $0x438] sm:$0xff]
        %v2627 = vld [vmem:[#allocation14 + $0x440] sm:$0xff]
        %v2628 = vld [vmem:[#allocation14 + $0x448] sm:$0xff]
        %v2629 = vld [vmem:[#allocation14 + $0x450] sm:$0xff]
        %v2630 = vld [vmem:[#allocation14 + $0x458] sm:$0xff]
        %v2631 = vld [vmem:[#allocation14 + $0x460] sm:$0xff]
        %v2632 = vld [vmem:[#allocation14 + $0x468] sm:$0xff]
        %v2633 = vld [vmem:[#allocation14 + $0x470] sm:$0xff]
        %v2634 = vld [vmem:[#allocation14 + $0x478] sm:$0xff]
        %v2635 = vld [vmem:[#allocation14 + $0x480] sm:$0xff]
        %v2636 = vld [vmem:[#allocation14 + $0x488] sm:$0xff]
        %v2637 = vld [vmem:[#allocation14 + $0x490] sm:$0xff]
        %v2638 = vld [vmem:[#allocation14 + $0x498] sm:$0xff]
        %v2639 = vld [vmem:[#allocation14 + $0x4a0] sm:$0xff]
        %v2640 = vld [vmem:[#allocation14 + $0x4a8] sm:$0xff]
        %v2641 = vld [vmem:[#allocation14 + $0x4b0] sm:$0xff]
        %v2642 = vld [vmem:[#allocation14 + $0x4b8] sm:$0xff]
        %v2643 = vld [vmem:[#allocation14 + $0x4c0] sm:$0xff]
        %v2644 = vld [vmem:[#allocation14 + $0x4c8] sm:$0xff]
        %v2645 = vld [vmem:[#allocation14 + $0x4d0] sm:$0xff]
        %v2646 = vld [vmem:[#allocation14 + $0x4d8] sm:$0xff]
        %v2647 = vld [vmem:[#allocation14 + $0x4e0] sm:$0xff]
        %v2648 = vld [vmem:[#allocation14 + $0x4e8] sm:$0xff]
        %v2649 = vld [vmem:[#allocation14 + $0x4f0] sm:$0xff]
        %v2650 = vld [vmem:[#allocation14 + $0x4f8] sm:$0xff]
        %v2651 = vld [vmem:[%s6] sm:$0x3]
        %v2653 = vlaneseq
        %v2654 = vshrl.u32 %v2653, 7
        %v2655 = vsub.s32 0, %v2654
        %v2656 = vrot.slane %v2651, %v2655
        %v2657 = vlaneseq
        %v2658 = vshrl.u32 %v2657, 7
        %v2659 = vsub.s32 1, %v2658
        %v2660 = vrot.slane %v2651, %v2659
        %v2678 = vunpack.c.l.b16 %v2476
        %v2679 = vunpack.c.h.b16 %v2476
        %v2680 = vunpack.c.l.b16 %v2477
        %v2681 = vunpack.c.h.b16 %v2477
        %v2682 = vunpack.c.l.b16 %v2478
        %v2683 = vunpack.c.h.b16 %v2478
        %v2684 = vunpack.c.l.b16 %v2479
        %v2685 = vunpack.c.h.b16 %v2479
        %v2686 = vunpack.c.l.b16 %v2480
        %v2687 = vunpack.c.h.b16 %v2480
        %v2688 = vunpack.c.l.b16 %v2481
        %v2689 = vunpack.c.h.b16 %v2481
        %v2690 = vunpack.c.l.b16 %v2482
        %v2691 = vunpack.c.h.b16 %v2482
        %v2692 = vunpack.c.l.b16 %v2483
        %v2693 = vunpack.c.h.b16 %v2483
        %v2694 = vunpack.c.l.b16 %v2484
        %v2695 = vunpack.c.h.b16 %v2484
        %v2696 = vunpack.c.l.b16 %v2485
        %v2697 = vunpack.c.h.b16 %v2485
        %v2698 = vunpack.c.l.b16 %v2486
        %v2699 = vunpack.c.h.b16 %v2486
        %v2700 = vunpack.c.l.b16 %v2487
        %v2701 = vunpack.c.h.b16 %v2487
        %v2702 = vunpack.c.l.b16 %v2488
        %v2703 = vunpack.c.h.b16 %v2488
        %v2704 = vunpack.c.l.b16 %v2489
        %v2705 = vunpack.c.h.b16 %v2489
        %v2706 = vunpack.c.l.b16 %v2490
        %v2707 = vunpack.c.h.b16 %v2490
        %v2708 = vpack.c.b16 %v2688, %v2678
        %v2709 = vpack.c.b16 %v2689, %v2679
        %v2710 = vpack.c.b16 %v2690, %v2680
        %v2711 = vpack.c.b16 %v2691, %v2681
        %v2712 = vpack.c.b16 %v2692, %v2682
        %v2713 = vpack.c.b16 %v2693, %v2683
        %v2714 = vpack.c.b16 %v2694, %v2684
        %v2715 = vpack.c.b16 %v2695, %v2685
        %v2716 = vpack.c.b16 %v2696, %v2686
        %v2717 = vpack.c.b16 %v2697, %v2687
        %v2718 = vpack.c.b16 %v2698, %v2698
        %v2719 = vpack.c.b16 %v2699, %v2699
        %v2720 = vpack.c.b16 %v2700, %v2700
        %v2721 = vpack.c.b16 %v2701, %v2701
        %v2722 = vpack.c.b16 %v2702, %v2702
        %v2723 = vpack.c.b16 %v2703, %v2703
        %v2724 = vpack.c.b16 %v2704, %v2704
        %v2725 = vpack.c.b16 %v2705, %v2705
        %v2726 = vpack.c.b16 %v2706, %v2706
        %v2727 = vpack.c.b16 %v2707, %v2707
        %v2908 = vunpack.c.l.b16 %v2491
        %v2909 = vunpack.c.h.b16 %v2491
        %v2910 = vunpack.c.l.b16 %v2492
        %v2911 = vunpack.c.h.b16 %v2492
        %v2912 = vunpack.c.l.b16 %v2493
        %v2913 = vunpack.c.h.b16 %v2493
        %v2914 = vunpack.c.l.b16 %v2494
        %v2915 = vunpack.c.h.b16 %v2494
        %v2916 = vunpack.c.l.b16 %v2495
        %v2917 = vunpack.c.h.b16 %v2495
        %v2918 = vunpack.c.l.b16 %v2496
        %v2919 = vunpack.c.h.b16 %v2496
        %v2920 = vunpack.c.l.b16 %v2497
        %v2921 = vunpack.c.h.b16 %v2497
        %v2922 = vunpack.c.l.b16 %v2498
        %v2923 = vunpack.c.h.b16 %v2498
        %v2924 = vunpack.c.l.b16 %v2499
        %v2925 = vunpack.c.h.b16 %v2499
        %v2926 = vunpack.c.l.b16 %v2500
        %v2927 = vunpack.c.h.b16 %v2500
        %v2928 = vunpack.c.l.b16 %v2501
        %v2929 = vunpack.c.h.b16 %v2501
        %v2930 = vunpack.c.l.b16 %v2502
        %v2931 = vunpack.c.h.b16 %v2502
        %v2932 = vunpack.c.l.b16 %v2503
        %v2933 = vunpack.c.h.b16 %v2503
        %v2934 = vunpack.c.l.b16 %v2504
        %v2935 = vunpack.c.h.b16 %v2504
        %v2936 = vunpack.c.l.b16 %v2505
        %v2937 = vunpack.c.h.b16 %v2505
        %v2938 = vunpack.c.l.b16 %v2506
        %v2939 = vunpack.c.h.b16 %v2506
        %v2940 = vunpack.c.l.b16 %v2507
        %v2941 = vunpack.c.h.b16 %v2507
        %v2942 = vunpack.c.l.b16 %v2508
        %v2943 = vunpack.c.h.b16 %v2508
        %v2944 = vunpack.c.l.b16 %v2509
        %v2945 = vunpack.c.h.b16 %v2509
        %v2946 = vunpack.c.l.b16 %v2510
        %v2947 = vunpack.c.h.b16 %v2510
        %v2948 = vunpack.c.l.b16 %v2511
        %v2949 = vunpack.c.h.b16 %v2511
        %v2950 = vunpack.c.l.b16 %v2512
        %v2951 = vunpack.c.h.b16 %v2512
        %v2952 = vunpack.c.l.b16 %v2513
        %v2953 = vunpack.c.h.b16 %v2513
        %v2954 = vunpack.c.l.b16 %v2514
        %v2955 = vunpack.c.h.b16 %v2514
        %v2956 = vunpack.c.l.b16 %v2515
        %v2957 = vunpack.c.h.b16 %v2515
        %v2958 = vunpack.c.l.b16 %v2516
        %v2959 = vunpack.c.h.b16 %v2516
        %v2960 = vunpack.c.l.b16 %v2517
        %v2961 = vunpack.c.h.b16 %v2517
        %v2962 = vunpack.c.l.b16 %v2518
        %v2963 = vunpack.c.h.b16 %v2518
        %v2964 = vunpack.c.l.b16 %v2519
        %v2965 = vunpack.c.h.b16 %v2519
        %v2966 = vunpack.c.l.b16 %v2520
        %v2967 = vunpack.c.h.b16 %v2520
        %v2968 = vunpack.c.l.b16 %v2521
        %v2969 = vunpack.c.h.b16 %v2521
        %v2970 = vunpack.c.l.b16 %v2522
        %v2971 = vunpack.c.h.b16 %v2522
        %v2972 = vunpack.c.l.b16 %v2523
        %v2973 = vunpack.c.h.b16 %v2523
        %v2974 = vunpack.c.l.b16 %v2524
        %v2975 = vunpack.c.h.b16 %v2524
        %v2976 = vunpack.c.l.b16 %v2525
        %v2977 = vunpack.c.h.b16 %v2525
        %v2978 = vunpack.c.l.b16 %v2526
        %v2979 = vunpack.c.h.b16 %v2526
        %v2980 = vunpack.c.l.b16 %v2527
        %v2981 = vunpack.c.h.b16 %v2527
        %v2982 = vunpack.c.l.b16 %v2528
        %v2983 = vunpack.c.h.b16 %v2528
        %v2984 = vunpack.c.l.b16 %v2529
        %v2985 = vunpack.c.h.b16 %v2529
        %v2986 = vunpack.c.l.b16 %v2530
        %v2987 = vunpack.c.h.b16 %v2530
        %v2988 = vunpack.c.l.b16 %v2531
        %v2989 = vunpack.c.h.b16 %v2531
        %v2990 = vunpack.c.l.b16 %v2532
        %v2991 = vunpack.c.h.b16 %v2532
        %v2992 = vunpack.c.l.b16 %v2533
        %v2993 = vunpack.c.h.b16 %v2533
        %v2994 = vunpack.c.l.b16 %v2534
        %v2995 = vunpack.c.h.b16 %v2534
        %v2996 = vunpack.c.l.b16 %v2535
        %v2997 = vunpack.c.h.b16 %v2535
        %v2998 = vunpack.c.l.b16 %v2536
        %v2999 = vunpack.c.h.b16 %v2536
        %v3000 = vunpack.c.l.b16 %v2537
        %v3001 = vunpack.c.h.b16 %v2537
        %v3002 = vunpack.c.l.b16 %v2538
        %v3003 = vunpack.c.h.b16 %v2538
        %v3004 = vunpack.c.l.b16 %v2539
        %v3005 = vunpack.c.h.b16 %v2539
        %v3006 = vunpack.c.l.b16 %v2540
        %v3007 = vunpack.c.h.b16 %v2540
        %v3008 = vunpack.c.l.b16 %v2541
        %v3009 = vunpack.c.h.b16 %v2541
        %v3010 = vunpack.c.l.b16 %v2542
        %v3011 = vunpack.c.h.b16 %v2542
        %v3012 = vunpack.c.l.b16 %v2543
        %v3013 = vunpack.c.h.b16 %v2543
        %v3014 = vunpack.c.l.b16 %v2544
        %v3015 = vunpack.c.h.b16 %v2544
        %v3016 = vunpack.c.l.b16 %v2545
        %v3017 = vunpack.c.h.b16 %v2545
        %v3018 = vunpack.c.l.b16 %v2546
        %v3019 = vunpack.c.h.b16 %v2546
        %v3020 = vunpack.c.l.b16 %v2547
        %v3021 = vunpack.c.h.b16 %v2547
        %v3022 = vunpack.c.l.b16 %v2548
        %v3023 = vunpack.c.h.b16 %v2548
        %v3024 = vunpack.c.l.b16 %v2549
        %v3025 = vunpack.c.h.b16 %v2549
        %v3026 = vunpack.c.l.b16 %v2550
        %v3027 = vunpack.c.h.b16 %v2550
        %v3028 = vunpack.c.l.b16 %v2551
        %v3029 = vunpack.c.h.b16 %v2551
        %v3030 = vunpack.c.l.b16 %v2552
        %v3031 = vunpack.c.h.b16 %v2552
        %v3032 = vunpack.c.l.b16 %v2553
        %v3033 = vunpack.c.h.b16 %v2553
        %v3034 = vunpack.c.l.b16 %v2554
        %v3035 = vunpack.c.h.b16 %v2554
        %v3036 = vunpack.c.l.b16 %v2555
        %v3037 = vunpack.c.h.b16 %v2555
        %v3038 = vunpack.c.l.b16 %v2556
        %v3039 = vunpack.c.h.b16 %v2556
        %v3040 = vunpack.c.l.b16 %v2557
        %v3041 = vunpack.c.h.b16 %v2557
        %v3042 = vunpack.c.l.b16 %v2558
        %v3043 = vunpack.c.h.b16 %v2558
        %v3044 = vunpack.c.l.b16 %v2559
        %v3045 = vunpack.c.h.b16 %v2559
        %v3046 = vunpack.c.l.b16 %v2560
        %v3047 = vunpack.c.h.b16 %v2560
        %v3048 = vunpack.c.l.b16 %v2561
        %v3049 = vunpack.c.h.b16 %v2561
        %v3050 = vunpack.c.l.b16 %v2562
        %v3051 = vunpack.c.h.b16 %v2562
        %v3052 = vunpack.c.l.b16 %v2563
        %v3053 = vunpack.c.h.b16 %v2563
        %v3054 = vunpack.c.l.b16 %v2564
        %v3055 = vunpack.c.h.b16 %v2564
        %v3056 = vunpack.c.l.b16 %v2565
        %v3057 = vunpack.c.h.b16 %v2565
        %v3058 = vunpack.c.l.b16 %v2566
        %v3059 = vunpack.c.h.b16 %v2566
        %v3060 = vunpack.c.l.b16 %v2567
        %v3061 = vunpack.c.h.b16 %v2567
        %v3062 = vunpack.c.l.b16 %v2568
        %v3063 = vunpack.c.h.b16 %v2568
        %v3064 = vunpack.c.l.b16 %v2569
        %v3065 = vunpack.c.h.b16 %v2569
        %v3066 = vunpack.c.l.b16 %v2570
        %v3067 = vunpack.c.h.b16 %v2570
        %v3068 = vunpack.c.l.b16 %v2571
        %v3069 = vunpack.c.h.b16 %v2571
        %v3070 = vunpack.c.l.b16 %v2572
        %v3071 = vunpack.c.h.b16 %v2572
        %v3072 = vunpack.c.l.b16 %v2573
        %v3073 = vunpack.c.h.b16 %v2573
        %v3074 = vunpack.c.l.b16 %v2574
        %v3075 = vunpack.c.h.b16 %v2574
        %v3076 = vunpack.c.l.b16 %v2575
        %v3077 = vunpack.c.h.b16 %v2575
        %v3078 = vunpack.c.l.b16 %v2576
        %v3079 = vunpack.c.h.b16 %v2576
        %v3080 = vunpack.c.l.b16 %v2577
        %v3081 = vunpack.c.h.b16 %v2577
        %v3082 = vunpack.c.l.b16 %v2578
        %v3083 = vunpack.c.h.b16 %v2578
        %v3084 = vunpack.c.l.b16 %v2579
        %v3085 = vunpack.c.h.b16 %v2579
        %v3086 = vunpack.c.l.b16 %v2580
        %v3087 = vunpack.c.h.b16 %v2580
        %v3088 = vunpack.c.l.b16 %v2581
        %v3089 = vunpack.c.h.b16 %v2581
        %v3090 = vunpack.c.l.b16 %v2582
        %v3091 = vunpack.c.h.b16 %v2582
        %v3092 = vunpack.c.l.b16 %v2583
        %v3093 = vunpack.c.h.b16 %v2583
        %v3094 = vunpack.c.l.b16 %v2584
        %v3095 = vunpack.c.h.b16 %v2584
        %v3096 = vunpack.c.l.b16 %v2585
        %v3097 = vunpack.c.h.b16 %v2585
        %v3098 = vunpack.c.l.b16 %v2586
        %v3099 = vunpack.c.h.b16 %v2586
        %v3100 = vunpack.c.l.b16 %v2587
        %v3101 = vunpack.c.h.b16 %v2587
        %v3102 = vunpack.c.l.b16 %v2588
        %v3103 = vunpack.c.h.b16 %v2588
        %v3104 = vunpack.c.l.b16 %v2589
        %v3105 = vunpack.c.h.b16 %v2589
        %v3106 = vunpack.c.l.b16 %v2590
        %v3107 = vunpack.c.h.b16 %v2590
        %v3108 = vunpack.c.l.b16 %v2591
        %v3109 = vunpack.c.h.b16 %v2591
        %v3110 = vunpack.c.l.b16 %v2592
        %v3111 = vunpack.c.h.b16 %v2592
        %v3112 = vunpack.c.l.b16 %v2593
        %v3113 = vunpack.c.h.b16 %v2593
        %v3114 = vunpack.c.l.b16 %v2594
        %v3115 = vunpack.c.h.b16 %v2594
        %v3116 = vunpack.c.l.b16 %v2595
        %v3117 = vunpack.c.h.b16 %v2595
        %v3118 = vunpack.c.l.b16 %v2596
        %v3119 = vunpack.c.h.b16 %v2596
        %v3120 = vunpack.c.l.b16 %v2597
        %v3121 = vunpack.c.h.b16 %v2597
        %v3122 = vunpack.c.l.b16 %v2598
        %v3123 = vunpack.c.h.b16 %v2598
        %v3124 = vunpack.c.l.b16 %v2599
        %v3125 = vunpack.c.h.b16 %v2599
        %v3126 = vunpack.c.l.b16 %v2600
        %v3127 = vunpack.c.h.b16 %v2600
        %v3128 = vunpack.c.l.b16 %v2601
        %v3129 = vunpack.c.h.b16 %v2601
        %v3130 = vunpack.c.l.b16 %v2602
        %v3131 = vunpack.c.h.b16 %v2602
        %v3132 = vunpack.c.l.b16 %v2603
        %v3133 = vunpack.c.h.b16 %v2603
        %v3134 = vunpack.c.l.b16 %v2604
        %v3135 = vunpack.c.h.b16 %v2604
        %v3136 = vunpack.c.l.b16 %v2605
        %v3137 = vunpack.c.h.b16 %v2605
        %v3138 = vunpack.c.l.b16 %v2606
        %v3139 = vunpack.c.h.b16 %v2606
        %v3140 = vunpack.c.l.b16 %v2607
        %v3141 = vunpack.c.h.b16 %v2607
        %v3142 = vunpack.c.l.b16 %v2608
        %v3143 = vunpack.c.h.b16 %v2608
        %v3144 = vunpack.c.l.b16 %v2609
        %v3145 = vunpack.c.h.b16 %v2609
        %v3146 = vunpack.c.l.b16 %v2610
        %v3147 = vunpack.c.h.b16 %v2610
        %v3148 = vunpack.c.l.b16 %v2611
        %v3149 = vunpack.c.h.b16 %v2611
        %v3150 = vunpack.c.l.b16 %v2612
        %v3151 = vunpack.c.h.b16 %v2612
        %v3152 = vunpack.c.l.b16 %v2613
        %v3153 = vunpack.c.h.b16 %v2613
        %v3154 = vunpack.c.l.b16 %v2614
        %v3155 = vunpack.c.h.b16 %v2614
        %v3156 = vunpack.c.l.b16 %v2615
        %v3157 = vunpack.c.h.b16 %v2615
        %v3158 = vunpack.c.l.b16 %v2616
        %v3159 = vunpack.c.h.b16 %v2616
        %v3160 = vunpack.c.l.b16 %v2617
        %v3161 = vunpack.c.h.b16 %v2617
        %v3162 = vunpack.c.l.b16 %v2618
        %v3163 = vunpack.c.h.b16 %v2618
        %v3164 = vunpack.c.l.b16 %v2619
        %v3165 = vunpack.c.h.b16 %v2619
        %v3166 = vunpack.c.l.b16 %v2620
        %v3167 = vunpack.c.h.b16 %v2620
        %v3168 = vunpack.c.l.b16 %v2621
        %v3169 = vunpack.c.h.b16 %v2621
        %v3170 = vunpack.c.l.b16 %v2622
        %v3171 = vunpack.c.h.b16 %v2622
        %v3172 = vunpack.c.l.b16 %v2623
        %v3173 = vunpack.c.h.b16 %v2623
        %v3174 = vunpack.c.l.b16 %v2624
        %v3175 = vunpack.c.h.b16 %v2624
        %v3176 = vunpack.c.l.b16 %v2625
        %v3177 = vunpack.c.h.b16 %v2625
        %v3178 = vunpack.c.l.b16 %v2626
        %v3179 = vunpack.c.h.b16 %v2626
        %v3180 = vunpack.c.l.b16 %v2627
        %v3181 = vunpack.c.h.b16 %v2627
        %v3182 = vunpack.c.l.b16 %v2628
        %v3183 = vunpack.c.h.b16 %v2628
        %v3184 = vunpack.c.l.b16 %v2629
        %v3185 = vunpack.c.h.b16 %v2629
        %v3186 = vunpack.c.l.b16 %v2630
        %v3187 = vunpack.c.h.b16 %v2630
        %v3188 = vunpack.c.l.b16 %v2631
        %v3189 = vunpack.c.h.b16 %v2631
        %v3190 = vunpack.c.l.b16 %v2632
        %v3191 = vunpack.c.h.b16 %v2632
        %v3192 = vunpack.c.l.b16 %v2633
        %v3193 = vunpack.c.h.b16 %v2633
        %v3194 = vunpack.c.l.b16 %v2634
        %v3195 = vunpack.c.h.b16 %v2634
        %v3196 = vunpack.c.l.b16 %v2635
        %v3197 = vunpack.c.h.b16 %v2635
        %v3198 = vunpack.c.l.b16 %v2636
        %v3199 = vunpack.c.h.b16 %v2636
        %v3200 = vunpack.c.l.b16 %v2637
        %v3201 = vunpack.c.h.b16 %v2637
        %v3202 = vunpack.c.l.b16 %v2638
        %v3203 = vunpack.c.h.b16 %v2638
        %v3204 = vunpack.c.l.b16 %v2639
        %v3205 = vunpack.c.h.b16 %v2639
        %v3206 = vunpack.c.l.b16 %v2640
        %v3207 = vunpack.c.h.b16 %v2640
        %v3208 = vunpack.c.l.b16 %v2641
        %v3209 = vunpack.c.h.b16 %v2641
        %v3210 = vunpack.c.l.b16 %v2642
        %v3211 = vunpack.c.h.b16 %v2642
        %v3212 = vunpack.c.l.b16 %v2643
        %v3213 = vunpack.c.h.b16 %v2643
        %v3214 = vunpack.c.l.b16 %v2644
        %v3215 = vunpack.c.h.b16 %v2644
        %v3216 = vunpack.c.l.b16 %v2645
        %v3217 = vunpack.c.h.b16 %v2645
        %v3218 = vunpack.c.l.b16 %v2646
        %v3219 = vunpack.c.h.b16 %v2646
        %v3220 = vunpack.c.l.b16 %v2647
        %v3221 = vunpack.c.h.b16 %v2647
        %v3222 = vunpack.c.l.b16 %v2648
        %v3223 = vunpack.c.h.b16 %v2648
        %v3224 = vunpack.c.l.b16 %v2649
        %v3225 = vunpack.c.h.b16 %v2649
        %v3226 = vunpack.c.l.b16 %v2650
        %v3227 = vunpack.c.h.b16 %v2650
        %v3228 = vpack.c.b16 %v2910, %v2908
        %v3229 = vpack.c.b16 %v2911, %v2909
        %v3230 = vpack.c.b16 %v2914, %v2912
        %v3231 = vpack.c.b16 %v2915, %v2913
        %v3232 = vpack.c.b16 %v2918, %v2916
        %v3233 = vpack.c.b16 %v2919, %v2917
        %v3234 = vpack.c.b16 %v2922, %v2920
        %v3235 = vpack.c.b16 %v2923, %v2921
        %v3236 = vpack.c.b16 %v2926, %v2924
        %v3237 = vpack.c.b16 %v2927, %v2925
        %v3238 = vpack.c.b16 %v2930, %v2928
        %v3239 = vpack.c.b16 %v2931, %v2929
        %v3240 = vpack.c.b16 %v2934, %v2932
        %v3241 = vpack.c.b16 %v2935, %v2933
        %v3242 = vpack.c.b16 %v2938, %v2936
        %v3243 = vpack.c.b16 %v2939, %v2937
        %v3244 = vpack.c.b16 %v2942, %v2940
        %v3245 = vpack.c.b16 %v2943, %v2941
        %v3246 = vpack.c.b16 %v2946, %v2944
        %v3247 = vpack.c.b16 %v2947, %v2945
        %v3248 = vpack.c.b16 %v2950, %v2948
        %v3249 = vpack.c.b16 %v2951, %v2949
        %v3250 = vpack.c.b16 %v2954, %v2952
        %v3251 = vpack.c.b16 %v2955, %v2953
        %v3252 = vpack.c.b16 %v2958, %v2956
        %v3253 = vpack.c.b16 %v2959, %v2957
        %v3254 = vpack.c.b16 %v2962, %v2960
        %v3255 = vpack.c.b16 %v2963, %v2961
        %v3256 = vpack.c.b16 %v2966, %v2964
        %v3257 = vpack.c.b16 %v2967, %v2965
        %v3258 = vpack.c.b16 %v2970, %v2968
        %v3259 = vpack.c.b16 %v2971, %v2969
        %v3260 = vpack.c.b16 %v2974, %v2972
        %v3261 = vpack.c.b16 %v2975, %v2973
        %v3262 = vpack.c.b16 %v2978, %v2976
        %v3263 = vpack.c.b16 %v2979, %v2977
        %v3264 = vpack.c.b16 %v2982, %v2980
        %v3265 = vpack.c.b16 %v2983, %v2981
        %v3266 = vpack.c.b16 %v2986, %v2984
        %v3267 = vpack.c.b16 %v2987, %v2985
        %v3268 = vpack.c.b16 %v2990, %v2988
        %v3269 = vpack.c.b16 %v2991, %v2989
        %v3270 = vpack.c.b16 %v2994, %v2992
        %v3271 = vpack.c.b16 %v2995, %v2993
        %v3272 = vpack.c.b16 %v2998, %v2996
        %v3273 = vpack.c.b16 %v2999, %v2997
        %v3274 = vpack.c.b16 %v3002, %v3000
        %v3275 = vpack.c.b16 %v3003, %v3001
        %v3276 = vpack.c.b16 %v3006, %v3004
        %v3277 = vpack.c.b16 %v3007, %v3005
        %v3278 = vpack.c.b16 %v3010, %v3008
        %v3279 = vpack.c.b16 %v3011, %v3009
        %v3280 = vpack.c.b16 %v3014, %v3012
        %v3281 = vpack.c.b16 %v3015, %v3013
        %v3282 = vpack.c.b16 %v3018, %v3016
        %v3283 = vpack.c.b16 %v3019, %v3017
        %v3284 = vpack.c.b16 %v3022, %v3020
        %v3285 = vpack.c.b16 %v3023, %v3021
        %v3286 = vpack.c.b16 %v3026, %v3024
        %v3287 = vpack.c.b16 %v3027, %v3025
        %v3288 = vpack.c.b16 %v3030, %v3028
        %v3289 = vpack.c.b16 %v3031, %v3029
        %v3290 = vpack.c.b16 %v3034, %v3032
        %v3291 = vpack.c.b16 %v3035, %v3033
        %v3292 = vpack.c.b16 %v3038, %v3036
        %v3293 = vpack.c.b16 %v3039, %v3037
        %v3294 = vpack.c.b16 %v3042, %v3040
        %v3295 = vpack.c.b16 %v3043, %v3041
        %v3296 = vpack.c.b16 %v3046, %v3044
        %v3297 = vpack.c.b16 %v3047, %v3045
        %v3298 = vpack.c.b16 %v3050, %v3048
        %v3299 = vpack.c.b16 %v3051, %v3049
        %v3300 = vpack.c.b16 %v3054, %v3052
        %v3301 = vpack.c.b16 %v3055, %v3053
        %v3302 = vpack.c.b16 %v3058, %v3056
        %v3303 = vpack.c.b16 %v3059, %v3057
        %v3304 = vpack.c.b16 %v3062, %v3060
        %v3305 = vpack.c.b16 %v3063, %v3061
        %v3306 = vpack.c.b16 %v3066, %v3064
        %v3307 = vpack.c.b16 %v3067, %v3065
        %v3308 = vpack.c.b16 %v3070, %v3068
        %v3309 = vpack.c.b16 %v3071, %v3069
        %v3310 = vpack.c.b16 %v3074, %v3072
        %v3311 = vpack.c.b16 %v3075, %v3073
        %v3312 = vpack.c.b16 %v3078, %v3076
        %v3313 = vpack.c.b16 %v3079, %v3077
        %v3314 = vpack.c.b16 %v3082, %v3080
        %v3315 = vpack.c.b16 %v3083, %v3081
        %v3316 = vpack.c.b16 %v3086, %v3084
        %v3317 = vpack.c.b16 %v3087, %v3085
        %v3318 = vpack.c.b16 %v3090, %v3088
        %v3319 = vpack.c.b16 %v3091, %v3089
        %v3320 = vpack.c.b16 %v3094, %v3092
        %v3321 = vpack.c.b16 %v3095, %v3093
        %v3322 = vpack.c.b16 %v3098, %v3096
        %v3323 = vpack.c.b16 %v3099, %v3097
        %v3324 = vpack.c.b16 %v3102, %v3100
        %v3325 = vpack.c.b16 %v3103, %v3101
        %v3326 = vpack.c.b16 %v3106, %v3104
        %v3327 = vpack.c.b16 %v3107, %v3105
        %v3328 = vpack.c.b16 %v3110, %v3108
        %v3329 = vpack.c.b16 %v3111, %v3109
        %v3330 = vpack.c.b16 %v3114, %v3112
        %v3331 = vpack.c.b16 %v3115, %v3113
        %v3332 = vpack.c.b16 %v3118, %v3116
        %v3333 = vpack.c.b16 %v3119, %v3117
        %v3334 = vpack.c.b16 %v3122, %v3120
        %v3335 = vpack.c.b16 %v3123, %v3121
        %v3336 = vpack.c.b16 %v3126, %v3124
        %v3337 = vpack.c.b16 %v3127, %v3125
        %v3338 = vpack.c.b16 %v3130, %v3128
        %v3339 = vpack.c.b16 %v3131, %v3129
        %v3340 = vpack.c.b16 %v3134, %v3132
        %v3341 = vpack.c.b16 %v3135, %v3133
        %v3342 = vpack.c.b16 %v3138, %v3136
        %v3343 = vpack.c.b16 %v3139, %v3137
        %v3344 = vpack.c.b16 %v3142, %v3140
        %v3345 = vpack.c.b16 %v3143, %v3141
        %v3346 = vpack.c.b16 %v3146, %v3144
        %v3347 = vpack.c.b16 %v3147, %v3145
        %v3348 = vpack.c.b16 %v3150, %v3148
        %v3349 = vpack.c.b16 %v3151, %v3149
        %v3350 = vpack.c.b16 %v3154, %v3152
        %v3351 = vpack.c.b16 %v3155, %v3153
        %v3352 = vpack.c.b16 %v3158, %v3156
        %v3353 = vpack.c.b16 %v3159, %v3157
        %v3354 = vpack.c.b16 %v3162, %v3160
        %v3355 = vpack.c.b16 %v3163, %v3161
        %v3356 = vpack.c.b16 %v3166, %v3164
        %v3357 = vpack.c.b16 %v3167, %v3165
        %v3358 = vpack.c.b16 %v3170, %v3168
        %v3359 = vpack.c.b16 %v3171, %v3169
        %v3360 = vpack.c.b16 %v3174, %v3172
        %v3361 = vpack.c.b16 %v3175, %v3173
        %v3362 = vpack.c.b16 %v3178, %v3176
        %v3363 = vpack.c.b16 %v3179, %v3177
        %v3364 = vpack.c.b16 %v3182, %v3180
        %v3365 = vpack.c.b16 %v3183, %v3181
        %v3366 = vpack.c.b16 %v3186, %v3184
        %v3367 = vpack.c.b16 %v3187, %v3185
        %v3368 = vpack.c.b16 %v3190, %v3188
        %v3369 = vpack.c.b16 %v3191, %v3189
        %v3370 = vpack.c.b16 %v3194, %v3192
        %v3371 = vpack.c.b16 %v3195, %v3193
        %v3372 = vpack.c.b16 %v3198, %v3196
        %v3373 = vpack.c.b16 %v3199, %v3197
        %v3374 = vpack.c.b16 %v3202, %v3200
        %v3375 = vpack.c.b16 %v3203, %v3201
        %v3376 = vpack.c.b16 %v3206, %v3204
        %v3377 = vpack.c.b16 %v3207, %v3205
        %v3378 = vpack.c.b16 %v3210, %v3208
        %v3379 = vpack.c.b16 %v3211, %v3209
        %v3380 = vpack.c.b16 %v3214, %v3212
        %v3381 = vpack.c.b16 %v3215, %v3213
        %v3382 = vpack.c.b16 %v3218, %v3216
        %v3383 = vpack.c.b16 %v3219, %v3217
        %v3384 = vpack.c.b16 %v3222, %v3220
        %v3385 = vpack.c.b16 %v3223, %v3221
        %v3386 = vpack.c.b16 %v3226, %v3224
        %v3387 = vpack.c.b16 %v3227, %v3225
        %3548 = vmatprep.subr.bf16.mxu0 %v3229
        %3549 = vmatpush1.bf16.msra.mxu0 %v3228
        %3550 = vmatprep.subr.bf16.mxu0 %v3231
        %3551 = vmatpush1.bf16.msra.mxu0 %v3230
        %3552 = vmatprep.subr.bf16.mxu0 %v3233
        %3553 = vmatpush1.bf16.msra.mxu0 %v3232
        %3554 = vmatprep.subr.bf16.mxu0 %v3235
        %3555 = vmatpush1.bf16.msra.mxu0 %v3234
        %3556 = vmatprep.subr.bf16.mxu0 %v3237
        %3557 = vmatpush1.bf16.msra.mxu0 %v3236
        %3558 = vmatprep.subr.bf16.mxu0 %v3239
        %3559 = vmatpush1.bf16.msra.mxu0 %v3238
        %3560 = vmatprep.subr.bf16.mxu0 %v3241
        %3561 = vmatpush1.bf16.msra.mxu0 %v3240
        %3562 = vmatprep.subr.bf16.mxu0 %v3243
        %3563 = vmatpush1.bf16.msra.mxu0 %v3242
        %3564 = vmatprep.subr.bf16.mxu0 %v3245
        %3565 = vmatpush1.bf16.msra.mxu0 %v3244
        %3566 = vmatprep.subr.bf16.mxu0 %v3247
        %3567 = vmatpush1.bf16.msra.mxu0 %v3246
        %3568 = vmatprep.subr.bf16.mxu0 %v3249
        %3569 = vmatpush1.bf16.msra.mxu0 %v3248
        %3570 = vmatprep.subr.bf16.mxu0 %v3251
        %3571 = vmatpush1.bf16.msra.mxu0 %v3250
        %3572 = vmatprep.subr.bf16.mxu0 %v3253
        %3573 = vmatpush1.bf16.msra.mxu0 %v3252
        %3574 = vmatprep.subr.bf16.mxu0 %v3255
        %3575 = vmatpush1.bf16.msra.mxu0 %v3254
        %3576 = vmatprep.subr.bf16.mxu0 %v3257
        %3577 = vmatpush1.bf16.msra.mxu0 %v3256
        %3578 = vmatprep.subr.bf16.mxu0 %v3259
        %3579 = vmatpush1.bf16.msra.mxu0 %v3258
        %3580 = vmatprep.mubr.bf16.mxu0 %v2709
        %3581 = vmatmul.mubr.bf16.gmra.mrb[0].mxu0 %v2708
        %v3582 = vpop.f32.mrb[0].mxu0
        %v3583 = vadd.f32 %v2656, %v3582
        %v3584 = vpop.f32.mrb[0].mxu0
        %v3585 = vadd.f32 %v2660, %v3584
        %v3586 = vpop.f32.mrb[0].mxu0
        %v3587 = vadd.f32 %v2656, %v3586
        %v3588 = vpop.f32.mrb[0].mxu0
        %v3589 = vadd.f32 %v2660, %v3588
        %3590 = vmatprep.mubr.bf16.mxu0 %v2719
        %3591 = vmatmul.mubr.bf16.gmra.mrb[0].mxu0 %v2718
        %v3592 = vpop.f32.mrb[0].mxu0
        %v3593 = vadd.f32 %v2656, %v3592
        %v3594 = vpop.f32.mrb[0].mxu0
        %v3595 = vadd.f32 %v2660, %v3594
        %v3596 = vpop.f32.mrb[0].mxu0
        %v3597 = vpop.f32.mrb[0].mxu0
        %3598 = vdwg.mxu0
        %3599 = vmatprep.subr.bf16.mxu0 %v3261
        %3600 = vmatpush1.bf16.msra.mxu0 %v3260
        %3601 = vmatprep.subr.bf16.mxu0 %v3263
        %3602 = vmatpush1.bf16.msra.mxu0 %v3262
        %3603 = vmatprep.subr.bf16.mxu0 %v3265
        %3604 = vmatpush1.bf16.msra.mxu0 %v3264
        %3605 = vmatprep.subr.bf16.mxu0 %v3267
        %3606 = vmatpush1.bf16.msra.mxu0 %v3266
        %3607 = vmatprep.subr.bf16.mxu0 %v3269
        %3608 = vmatpush1.bf16.msra.mxu0 %v3268
        %3609 = vmatprep.subr.bf16.mxu0 %v3271
        %3610 = vmatpush1.bf16.msra.mxu0 %v3270
        %3611 = vmatprep.subr.bf16.mxu0 %v3273
        %3612 = vmatpush1.bf16.msra.mxu0 %v3272
        %3613 = vmatprep.subr.bf16.mxu0 %v3275
        %3614 = vmatpush1.bf16.msra.mxu0 %v3274
        %3615 = vmatprep.subr.bf16.mxu0 %v3277
        %3616 = vmatpush1.bf16.msra.mxu0 %v3276
        %3617 = vmatprep.subr.bf16.mxu0 %v3279
        %3618 = vmatpush1.bf16.msra.mxu0 %v3278
        %3619 = vmatprep.subr.bf16.mxu0 %v3281
        %3620 = vmatpush1.bf16.msra.mxu0 %v3280
        %3621 = vmatprep.subr.bf16.mxu0 %v3283
        %3622 = vmatpush1.bf16.msra.mxu0 %v3282
        %3623 = vmatprep.subr.bf16.mxu0 %v3285
        %3624 = vmatpush1.bf16.msra.mxu0 %v3284
        %3625 = vmatprep.subr.bf16.mxu0 %v3287
        %3626 = vmatpush1.bf16.msra.mxu0 %v3286
        %3627 = vmatprep.subr.bf16.mxu0 %v3289
        %3628 = vmatpush1.bf16.msra.mxu0 %v3288
        %3629 = vmatprep.subr.bf16.mxu0 %v3291
        %3630 = vmatpush1.bf16.msra.mxu0 %v3290
        %3631 = vmatprep.mubr.bf16.mxu0 %v2711
        %3632 = vmatmul.mubr.bf16.gmra.mrb[0].mxu0 %v2710
        %v3633 = vpop.f32.mrb[0].mxu0
        %v3634 = vadd.f32 %v3583, %v3633
        %v3635 = vpop.f32.mrb[0].mxu0
        %v3636 = vadd.f32 %v3585, %v3635
        %v3637 = vpop.f32.mrb[0].mxu0
        %v3638 = vadd.f32 %v3587, %v3637
        %v3639 = vpop.f32.mrb[0].mxu0
        %v3640 = vadd.f32 %v3589, %v3639
        %3641 = vmatprep.mubr.bf16.mxu0 %v2721
        %3642 = vmatmul.mubr.bf16.gmra.mrb[0].mxu0 %v2720
        %v3643 = vpop.f32.mrb[0].mxu0
        %v3644 = vadd.f32 %v3593, %v3643
        %v3645 = vpop.f32.mrb[0].mxu0
        %v3646 = vadd.f32 %v3595, %v3645
        %v3647 = vpop.f32.mrb[0].mxu0
        %v3648 = vpop.f32.mrb[0].mxu0
        %3649 = vdwg.mxu0
        %3650 = vmatprep.subr.bf16.mxu0 %v3293
        %3651 = vmatpush1.bf16.msra.mxu0 %v3292
        %3652 = vmatprep.subr.bf16.mxu0 %v3295
        %3653 = vmatpush1.bf16.msra.mxu0 %v3294
        %3654 = vmatprep.subr.bf16.mxu0 %v3297
        %3655 = vmatpush1.bf16.msra.mxu0 %v3296
        %3656 = vmatprep.subr.bf16.mxu0 %v3299
        %3657 = vmatpush1.bf16.msra.mxu0 %v3298
        %3658 = vmatprep.subr.bf16.mxu0 %v3301
        %3659 = vmatpush1.bf16.msra.mxu0 %v3300
        %3660 = vmatprep.subr.bf16.mxu0 %v3303
        %3661 = vmatpush1.bf16.msra.mxu0 %v3302
        %3662 = vmatprep.subr.bf16.mxu0 %v3305
        %3663 = vmatpush1.bf16.msra.mxu0 %v3304
        %3664 = vmatprep.subr.bf16.mxu0 %v3307
        %3665 = vmatpush1.bf16.msra.mxu0 %v3306
        %3666 = vmatprep.subr.bf16.mxu0 %v3309
        %3667 = vmatpush1.bf16.msra.mxu0 %v3308
        %3668 = vmatprep.subr.bf16.mxu0 %v3311
        %3669 = vmatpush1.bf16.msra.mxu0 %v3310
        %3670 = vmatprep.subr.bf16.mxu0 %v3313
        %3671 = vmatpush1.bf16.msra.mxu0 %v3312
        %3672 = vmatprep.subr.bf16.mxu0 %v3315
        %3673 = vmatpush1.bf16.msra.mxu0 %v3314
        %3674 = vmatprep.subr.bf16.mxu0 %v3317
        %3675 = vmatpush1.bf16.msra.mxu0 %v3316
        %3676 = vmatprep.subr.bf16.mxu0 %v3319
        %3677 = vmatpush1.bf16.msra.mxu0 %v3318
        %3678 = vmatprep.subr.bf16.mxu0 %v3321
        %3679 = vmatpush1.bf16.msra.mxu0 %v3320
        %3680 = vmatprep.subr.bf16.mxu0 %v3323
        %3681 = vmatpush1.bf16.msra.mxu0 %v3322
        %3682 = vmatprep.mubr.bf16.mxu0 %v2713
        %3683 = vmatmul.mubr.bf16.gmra.mrb[0].mxu0 %v2712
        %v3684 = vpop.f32.mrb[0].mxu0
        %v3685 = vadd.f32 %v3634, %v3684
        %v3686 = vpop.f32.mrb[0].mxu0
        %v3687 = vadd.f32 %v3636, %v3686
        %v3688 = vpop.f32.mrb[0].mxu0
        %v3689 = vadd.f32 %v3638, %v3688
        %v3690 = vpop.f32.mrb[0].mxu0
        %v3691 = vadd.f32 %v3640, %v3690
        %3692 = vmatprep.mubr.bf16.mxu0 %v2723
        %3693 = vmatmul.mubr.bf16.gmra.mrb[0].mxu0 %v2722
        %v3694 = vpop.f32.mrb[0].mxu0
        %v3695 = vadd.f32 %v3644, %v3694
        %v3696 = vpop.f32.mrb[0].mxu0
        %v3697 = vadd.f32 %v3646, %v3696
        %v3698 = vpop.f32.mrb[0].mxu0
        %v3699 = vpop.f32.mrb[0].mxu0
        %3700 = vdwg.mxu0
        %3701 = vmatprep.subr.bf16.mxu0 %v3325
        %3702 = vmatpush1.bf16.msra.mxu0 %v3324
        %3703 = vmatprep.subr.bf16.mxu0 %v3327
        %3704 = vmatpush1.bf16.msra.mxu0 %v3326
        %3705 = vmatprep.subr.bf16.mxu0 %v3329
        %3706 = vmatpush1.bf16.msra.mxu0 %v3328
        %3707 = vmatprep.subr.bf16.mxu0 %v3331
        %3708 = vmatpush1.bf16.msra.mxu0 %v3330
        %3709 = vmatprep.subr.bf16.mxu0 %v3333
        %3710 = vmatpush1.bf16.msra.mxu0 %v3332
        %3711 = vmatprep.subr.bf16.mxu0 %v3335
        %3712 = vmatpush1.bf16.msra.mxu0 %v3334
        %3713 = vmatprep.subr.bf16.mxu0 %v3337
        %3714 = vmatpush1.bf16.msra.mxu0 %v3336
        %3715 = vmatprep.subr.bf16.mxu0 %v3339
        %3716 = vmatpush1.bf16.msra.mxu0 %v3338
        %3717 = vmatprep.subr.bf16.mxu0 %v3341
        %3718 = vmatpush1.bf16.msra.mxu0 %v3340
        %3719 = vmatprep.subr.bf16.mxu0 %v3343
        %3720 = vmatpush1.bf16.msra.mxu0 %v3342
        %3721 = vmatprep.subr.bf16.mxu0 %v3345
        %3722 = vmatpush1.bf16.msra.mxu0 %v3344
        %3723 = vmatprep.subr.bf16.mxu0 %v3347
        %3724 = vmatpush1.bf16.msra.mxu0 %v3346
        %3725 = vmatprep.subr.bf16.mxu0 %v3349
        %3726 = vmatpush1.bf16.msra.mxu0 %v3348
        %3727 = vmatprep.subr.bf16.mxu0 %v3351
        %3728 = vmatpush1.bf16.msra.mxu0 %v3350
        %3729 = vmatprep.subr.bf16.mxu0 %v3353
        %3730 = vmatpush1.bf16.msra.mxu0 %v3352
        %3731 = vmatprep.subr.bf16.mxu0 %v3355
        %3732 = vmatpush1.bf16.msra.mxu0 %v3354
        %3733 = vmatprep.mubr.bf16.mxu0 %v2715
        %3734 = vmatmul.mubr.bf16.gmra.mrb[0].mxu0 %v2714
        %v3735 = vpop.f32.mrb[0].mxu0
        %v3736 = vadd.f32 %v3685, %v3735
        %v3737 = vpop.f32.mrb[0].mxu0
        %v3738 = vadd.f32 %v3687, %v3737
        %v3739 = vpop.f32.mrb[0].mxu0
        %v3740 = vadd.f32 %v3689, %v3739
        %v3741 = vpop.f32.mrb[0].mxu0
        %v3742 = vadd.f32 %v3691, %v3741
        %3743 = vmatprep.mubr.bf16.mxu0 %v2725
        %3744 = vmatmul.mubr.bf16.gmra.mrb[0].mxu0 %v2724
        %v3745 = vpop.f32.mrb[0].mxu0
        %v3746 = vadd.f32 %v3695, %v3745
        %v3747 = vpop.f32.mrb[0].mxu0
        %v3748 = vadd.f32 %v3697, %v3747
        %v3749 = vpop.f32.mrb[0].mxu0
        %v3750 = vpop.f32.mrb[0].mxu0
        %3751 = vdwg.mxu0
        %3752 = vmatprep.subr.bf16.mxu0 %v3357
        %3753 = vmatpush1.bf16.msra.mxu0 %v3356
        %3754 = vmatprep.subr.bf16.mxu0 %v3359
        %3755 = vmatpush1.bf16.msra.mxu0 %v3358
        %3756 = vmatprep.subr.bf16.mxu0 %v3361
        %3757 = vmatpush1.bf16.msra.mxu0 %v3360
        %3758 = vmatprep.subr.bf16.mxu0 %v3363
        %3759 = vmatpush1.bf16.msra.mxu0 %v3362
        %3760 = vmatprep.subr.bf16.mxu0 %v3365
        %3761 = vmatpush1.bf16.msra.mxu0 %v3364
        %3762 = vmatprep.subr.bf16.mxu0 %v3367
        %3763 = vmatpush1.bf16.msra.mxu0 %v3366
        %3764 = vmatprep.subr.bf16.mxu0 %v3369
        %3765 = vmatpush1.bf16.msra.mxu0 %v3368
        %3766 = vmatprep.subr.bf16.mxu0 %v3371
        %3767 = vmatpush1.bf16.msra.mxu0 %v3370
        %3768 = vmatprep.subr.bf16.mxu0 %v3373
        %3769 = vmatpush1.bf16.msra.mxu0 %v3372
        %3770 = vmatprep.subr.bf16.mxu0 %v3375
        %3771 = vmatpush1.bf16.msra.mxu0 %v3374
        %3772 = vmatprep.subr.bf16.mxu0 %v3377
        %3773 = vmatpush1.bf16.msra.mxu0 %v3376
        %3774 = vmatprep.subr.bf16.mxu0 %v3379
        %3775 = vmatpush1.bf16.msra.mxu0 %v3378
        %3776 = vmatprep.subr.bf16.mxu0 %v3381
        %3777 = vmatpush1.bf16.msra.mxu0 %v3380
        %3778 = vmatprep.subr.bf16.mxu0 %v3383
        %3779 = vmatpush1.bf16.msra.mxu0 %v3382
        %3780 = vmatprep.subr.bf16.mxu0 %v3385
        %3781 = vmatpush1.bf16.msra.mxu0 %v3384
        %3782 = vmatprep.subr.bf16.mxu0 %v3387
        %3783 = vmatpush1.bf16.msra.mxu0 %v3386
        %3784 = vmatprep.mubr.bf16.mxu0 %v2717
        %3785 = vmatmul.mubr.bf16.gmra.mrb[0].mxu0 %v2716
        %v3786 = vpop.f32.mrb[0].mxu0
        %v3787 = vadd.f32 %v3736, %v3786
        %v3788 = vpop.f32.mrb[0].mxu0
        %v3789 = vadd.f32 %v3738, %v3788
        %v3790 = vpop.f32.mrb[0].mxu0
        %v3791 = vadd.f32 %v3740, %v3790
        %v3792 = vpop.f32.mrb[0].mxu0
        %v3793 = vadd.f32 %v3742, %v3792
        %3794 = vmatprep.mubr.bf16.mxu0 %v2727
        %3795 = vmatmul.mubr.bf16.gmra.mrb[0].mxu0 %v2726
        %v3796 = vpop.f32.mrb[0].mxu0
        %v3797 = vadd.f32 %v3746, %v3796
        %v3798 = vpop.f32.mrb[0].mxu0
        %v3799 = vadd.f32 %v3748, %v3798
        %v3800 = vpop.f32.mrb[0].mxu0
        %v3801 = vpop.f32.mrb[0].mxu0
        %3802 = vdwg.mxu0
        %v3803 = vld [vmem:[%s383] sm:$0xff]
        %v3804 = vld [vmem:[%s383 + $0x8] sm:$0xff]
        %v3805 = vld [vmem:[%s383 + $0x10] sm:$0xff]
        %v3806 = vld [vmem:[%s383 + $0x18] sm:$0xff]
        %v3807 = vld [vmem:[%s383 + $0x20] sm:$0xff]
        %v3808 = vld [vmem:[%s383 + $0x28] sm:$0xff]
        %v3809 = vadd.f32 %v3803, %v3787
        %v3810 = vadd.f32 %v3804, %v3789
        %v3811 = vadd.f32 %v3805, %v3791
        %v3812 = vadd.f32 %v3806, %v3793
        %v3813 = vadd.f32 %v3807, %v3797
        %v3814 = vadd.f32 %v3808, %v3799
        %3815 = vst [vmem:[%s449] sm:$0xff] %v3809
        %3816 = vst [vmem:[%s449 + $0x8] sm:$0xff] %v3810
        %3817 = vst [vmem:[%s449 + $0x10] sm:$0xff] %v3811
        %3818 = vst [vmem:[%s449 + $0x18] sm:$0xff] %v3812
        %3819 = vst [vmem:[%s449 + $0x20] sm:$0xff] %v3813
        %3820 = vst [vmem:[%s449 + $0x28] sm:$0xff] %v3814
        %s3821 = sand.u32 %s234, 1
        %s3822 = scalar_lea.sflag [#allocation8], %s3821
        %s3823 = sand.u32 %s234, 1
        %s3824 = smul.addr %s3823, 48
        %s3825 = scalar_lea.vmem [#allocation15], %s3824
        // Predicated region
        $region77: #{tpu_custom_call.1} parent=47 // pred_check
          %p3826 = pneg %p244
        $region78: #{tpu_custom_call.1} parent=47 // pred_check_branch
          %3828 = sbr.rel (%p3826) target = $region80
        $region79: #{tpu_custom_call.1} parent=47 // pred_region
          %s3829 = smul.u32 3, %s33
          %s3831 = ssub.s32 768, 768
          %3832 = vsyncadd %s3822, %s3831
          %s3833 = smul.addr %s3829, 2
          %s3834 = smul.addr %s32, 6
          %s3835 = sadd.s32 %s3833, %s3834
          %s3836 = smul.addr %s3835, 128
          %s3837 = scalar_lea.hbm %s7, %s3836
          %s3838 = sshll.u32 %s3825, 4
          %s3839 = int_to_ptr.vmem [resolvable:$true] %s3838
          %3844 = dma.vmem_to_hbm [thread:$0]  %s3839, 768, %s3837, %s3822, 256, 256, 16
        $region80: #{tpu_custom_call.1} parent=47 // pred_fallthru
          _
      $region48: #{tpu_custom_call.1} parent=5 // pred_fallthru
        _
      %p3845 = scmp.le.s32.totalorder 2, %s23
      // Predicated region
      $region81: #{tpu_custom_call.1} parent=5 // pred_check
        %p3846 = pneg %p3845
      $region82: #{tpu_custom_call.1} parent=5 // pred_check_branch
        %3848 = sbr.rel (%p3846) target = $region84
      $region83: #{tpu_custom_call.1} parent=5 // pred_region
        %s3849 = ssub.s32 %s23, 2
        // Predicated region
        $region85: #{tpu_custom_call.1} parent=83 // pred_check
          %p3850 = pneg %p250
        $region86: #{tpu_custom_call.1} parent=83 // pred_check_branch
          %3852 = sbr.rel (%p3850) target = $region88
        $region87: #{tpu_custom_call.1} parent=83 // pred_region
          %s3853 = sand.u32 %s235, 1
          %s3854 = scalar_lea.sflag [#allocation8], %s3853
          %s3855 = sand.u32 %s235, 1
          %s3856 = smul.addr %s3855, 48
          %s3857 = scalar_lea.vmem [#allocation15], %s3856
          %3858 = dma.done %s3854, 768
        $region88: #{tpu_custom_call.1} parent=83 // pred_fallthru
          _
      $region84: #{tpu_custom_call.1} parent=5 // pred_fallthru
        _
    $region6: #{tpu_custom_call.1} parent=1 // loop_footer
      %s27 = sadd.s32 1, %s23
    $region7: #{tpu_custom_call.1} parent=1 // loop_footer_branch
      %22 = sbr.rel target = $region3
    $region8: #{tpu_custom_call.1} parent=1 // loop_exit
      _
    %3859 = vsyncpa [#allocation7], 1
    %s3860 = scalar_lea.sflag [#allocation7], 1
    %3861 = vsyncpa %s3860, 1
    %3862 = vsyncpa [#allocation10], 1
    %s3863 = scalar_lea.sflag [#allocation10], 1
    %3864 = vsyncpa %s3863, 1
    %3865 = vsyncpa [#allocation13], 1
    %3866 = vsyncpa [#allocation8], 1
    %s3867 = scalar_lea.sflag [#allocation8], 1
    %3868 = vsyncpa %s3867, 1

</llo_original>
